<compile_context>
chip_gen: v6e
topology: v6e:2x2x1
jax: 0.10.0
libtpu: 0.0.40
codegen_flags: <defaults>
</compile_context>

<pallas_src>
import jax
import jax.numpy as jnp
from jax import lax
from jax.experimental import pallas as pl
from jax.experimental.pallas import tpu as pltpu
import numpy as np

# ---------------- model hyper-params (small, consistent with the module) ----
VOCAB_SIZE    = 50
INTENTS_COUNT = 7
TAGS_COUNT    = 9
EMB_DIM       = 64               # emb_dim
HIDDEN        = 128              # lstm_hidden_dim
IN_DIM        = 2 * EMB_DIM      # LSTM input = cat(intents_emb, tags_emb)
SEQ_LEN       = 8
BATCH         = 2                # batch > 1  =>  .squeeze(0) in torch is a no-op


# ---------------- Pallas kernel ---------------------------------------------
def shared_model_kernel(embs_ref,                       # (S*B, IN_DIM)   f32
                        w_x_ref,                        # (IN_DIM, 8H)    bf16  [fwd i,f,o,g | bwd i,f,o,g]
                        b_x_ref,                        # (1, 8H)         f32
                        whh_f_ref, whh_b_ref,           # (H, 4H)         bf16  [i,f,o,g]
                        wint_f_ref, wint_b_ref, bint_ref,   # (H,I) bf16 x2, (1,I) f32
                        wtag_f_ref, wtag_b_ref, btag_ref,   # (H,T) bf16 x2, (1,T) f32
                        intents_ref,                    # out: (B, I)     f32
                        tags_ref,                       # out: (S*B, T)   f32
                        xg_ref,                         # scratch (S*B, 8H) f32
                        outf_ref,                       # scratch (S*B, H)  f32
                        outb_ref):                      # scratch (S*B, H)  f32
    H = whh_f_ref.shape[0]
    S = SEQ_LEN
    B = BATCH

    # ---- hoisted input projection: one well-shaped MXU pass for the whole
    # sequence and BOTH directions, biases folded in.  (16,128)x(128,1024).
    xg_ref[...] = (jnp.dot(embs_ref[...].astype(jnp.bfloat16), w_x_ref[...],
                           preferred_element_type=jnp.float32)
                   + b_x_ref[...])

    whh_f = whh_f_ref[...]
    whh_b = whh_b_ref[...]

    def cell(x_gates, h, c, whh):
        # x_gates already contains x @ W_ih + b (gate order [i, f, o, g]).
        gates = x_gates + jnp.dot(h.astype(jnp.bfloat16), whh,
                                  preferred_element_type=jnp.float32)
        s = jax.nn.sigmoid(gates[:, 0:3 * H])          # [i | f | o] in one EUP pass
        g = jnp.tanh(gates[:, 3 * H:4 * H])            # g
        i_g = s[:, 0:H]
        f_g = s[:, H:2 * H]
        o_g = s[:, 2 * H:3 * H]
        c_new = f_g * c + i_g * g
        h_new = o_g * jnp.tanh(c_new)
        return h_new, c_new

    zeros = jnp.zeros((B, H), jnp.float32)

    # ---- forward direction (fully unrolled, S = 8) --------------------------
    h, c = zeros, zeros
    for t in range(S):
        r = t * B
        h, c = cell(xg_ref[r:r + B, 0:4 * H], h, c, whh_f)
        outf_ref[r:r + B, :] = h
    h_fwd_last = h

    # ---- backward direction (fully unrolled) --------------------------------
    h, c = zeros, zeros
    for t in range(S - 1, -1, -1):
        r = t * B
        h, c = cell(xg_ref[r:r + B, 4 * H:8 * H], h, c, whh_b)
        outb_ref[r:r + B, :] = h
    h_bwd_last = h

    # ---- intents head: split weights, no concat ------------------------------
    intents_ref[...] = (
        jnp.dot(h_fwd_last.astype(jnp.bfloat16), wint_f_ref[...],
                preferred_element_type=jnp.float32)
        + jnp.dot(h_bwd_last.astype(jnp.bfloat16), wint_b_ref[...],
                  preferred_element_type=jnp.float32)
        + bint_ref[...]).astype(intents_ref.dtype)

    # ---- tags head: one batched pass over the whole sequence -----------------
    tags_ref[...] = (
        jnp.dot(outf_ref[...].astype(jnp.bfloat16), wtag_f_ref[...],
                preferred_element_type=jnp.float32)
        + jnp.dot(outb_ref[...].astype(jnp.bfloat16), wtag_b_ref[...],
                  preferred_element_type=jnp.float32)
        + btag_ref[...]).astype(tags_ref.dtype)


def shared_model_forward(inputs, kp):
    """inputs: (S, B) int32 token ids; kp: packed kernel params."""
    S, B = inputs.shape
    # ---- plain-JAX glue: embedding gathers + concat + flatten ----------------
    intents_embs = kp["emb_int"][inputs]                           # (S, B, E)
    tags_embs    = kp["emb_tag"][inputs]                           # (S, B, E)
    embs = jnp.concatenate([intents_embs, tags_embs], axis=-1)     # (S, B, 2E)
    embs2d = embs.reshape(S * B, IN_DIM)                           # (S*B, 2E)

    out_shapes = (
        jax.ShapeDtypeStruct((B, INTENTS_COUNT), jnp.float32),
        jax.ShapeDtypeStruct((S * B, TAGS_COUNT), jnp.float32),
    )
    vmem = pl.BlockSpec(memory_space=pltpu.MemorySpace.VMEM)
    intents, tags2d = pl.pallas_call(
        shared_model_kernel,
        out_shape=out_shapes,
        in_specs=[vmem] * 11,
        out_specs=(vmem, vmem),
        scratch_shapes=[
            pltpu.VMEM((S * B, 8 * HIDDEN), jnp.float32),   # hoisted input gates
            pltpu.VMEM((S * B, HIDDEN), jnp.float32),       # fwd hidden states
            pltpu.VMEM((S * B, HIDDEN), jnp.float32),       # bwd hidden states
        ],
    )(embs2d,
      kp["w_x"], kp["b_x"],
      kp["whh_f"], kp["whh_b"],
      kp["wint_f"], kp["wint_b"], kp["bint"],
      kp["wtag_f"], kp["wtag_b"], kp["btag"])

    # torch does intents.squeeze(0): with BATCH > 1 it is a no-op.
    return intents, tags2d.reshape(S, B, TAGS_COUNT)


# ---------------- parameter init (canonical PyTorch layout) -----------------
def init_params(key):
    ks = jax.random.split(key, 14)
    k_lstm = 1.0 / np.sqrt(HIDDEN)
    k_lin  = 1.0 / np.sqrt(2 * HIDDEN)

    def unif(k, shape, bound):
        return jax.random.uniform(k, shape, jnp.float32, -bound, bound)

    p = {
        "emb_int": jax.random.normal(ks[0], (VOCAB_SIZE, EMB_DIM), jnp.float32),
        "emb_tag": jax.random.normal(ks[1], (VOCAB_SIZE, EMB_DIM), jnp.float32),
    }
    # LSTM weights in PyTorch layout: rows ordered [i, f, g, o].
    for d, kk in (("f", ks[2:6]), ("b", ks[6:10])):
        p[f"wih_{d}"] = unif(kk[0], (4 * HIDDEN, IN_DIM), k_lstm)
        p[f"whh_{d}"] = unif(kk[1], (4 * HIDDEN, HIDDEN), k_lstm)
        p[f"bih_{d}"] = unif(kk[2], (4 * HIDDEN,), k_lstm)
        p[f"bhh_{d}"] = unif(kk[3], (4 * HIDDEN,), k_lstm)
    p["wint"] = unif(ks[10], (INTENTS_COUNT, 2 * HIDDEN), k_lin)
    p["bint"] = unif(ks[11], (INTENTS_COUNT,), k_lin)
    p["wtag"] = unif(ks[12], (TAGS_COUNT, 2 * HIDDEN), k_lin)
    p["btag"] = unif(ks[13], (TAGS_COUNT,), k_lin)
    return p


# ---------------- repack params for the kernel -------------------------------
def pack_params(p):
    H = HIDDEN

    def reorder(w):
        # PyTorch gate order along axis 0 is [i, f, g, o] -> repack to [i, f, o, g]
        # so the three sigmoid gates are contiguous (one EUP pass).
        return jnp.concatenate([w[:2 * H], w[3 * H:4 * H], w[2 * H:3 * H]], axis=0)

    def pack_dir(d):
        wih = reorder(p[f"wih_{d}"]).T.astype(jnp.bfloat16)          # (IN, 4H)
        whh = reorder(p[f"whh_{d}"]).T.astype(jnp.bfloat16)          # (H, 4H)
        b   = reorder(p[f"bih_{d}"] + p[f"bhh_{d}"])[None, :]        # (1, 4H) f32
        return wih, whh, b

    wih_f, whh_f, b_f = pack_dir("f")
    wih_b, whh_b, b_b = pack_dir("b")

    return {
        "emb_int": p["emb_int"],
        "emb_tag": p["emb_tag"],
        "w_x":   jnp.concatenate([wih_f, wih_b], axis=1),            # (IN, 8H) bf16
        "b_x":   jnp.concatenate([b_f, b_b], axis=1),                # (1, 8H)  f32
        "whh_f": whh_f,                                              # (H, 4H)  bf16
        "whh_b": whh_b,
        "wint_f": p["wint"][:, :H].T.astype(jnp.bfloat16),           # (H, I)
        "wint_b": p["wint"][:, H:].T.astype(jnp.bfloat16),
        "bint":  p["bint"][None, :],                                 # (1, I)
        "wtag_f": p["wtag"][:, :H].T.astype(jnp.bfloat16),           # (H, T)
        "wtag_b": p["wtag"][:, H:].T.astype(jnp.bfloat16),
        "btag":  p["btag"][None, :],                                 # (1, T)
    }


# ---------------- pure-JAX reference (PyTorch semantics, f32) ----------------
def reference_forward(inputs, p):
    H = HIDDEN
    embs = jnp.concatenate([p["emb_int"][inputs], p["emb_tag"][inputs]], axis=-1)

    def run(seq, wih, whh, bih, bhh):
        wih_T, whh_T = wih.T, whh.T
        b = (bih + bhh)[None, :]

        def step(carry, x):
            h, c = carry
            g = x @ wih_T + h @ whh_T + b
            i = jax.nn.sigmoid(g[:, :H])
            f = jax.nn.sigmoid(g[:, H:2 * H])
            gg = jnp.tanh(g[:, 2 * H:3 * H])
            o = jax.nn.sigmoid(g[:, 3 * H:])
            c = f * c + i * gg
            h = o * jnp.tanh(c)
            return (h, c), h

        B = seq.shape[1]
        init = (jnp.zeros((B, H), jnp.float32), jnp.zeros((B, H), jnp.float32))
        (h, _), outs = lax.scan(step, init, seq)
        return outs, h

    out_f, h_f = run(embs, p["wih_f"], p["whh_f"], p["bih_f"], p["bhh_f"])
    out_b_rev, h_b = run(embs[::-1], p["wih_b"], p["whh_b"], p["bih_b"], p["bhh_b"])
    out_b = out_b_rev[::-1]
    output = jnp.concatenate([out_f, out_b], axis=-1)          # (S, B, 2H)
    hid_cat = jnp.concatenate([h_f, h_b], axis=-1)             # (B, 2H)
    intents = hid_cat @ p["wint"].T + p["bint"]
    tags = output @ p["wtag"].T + p["btag"]
    return intents, tags


if __name__ == "__main__":
    key = jax.random.PRNGKey(0)
    k_par, k_in = jax.random.split(key)
    params  = init_params(k_par)
    kparams = pack_params(params)
    inputs = jax.random.randint(k_in, (SEQ_LEN, BATCH), 0, VOCAB_SIZE,
                                dtype=jnp.int32)

    intents, tags = shared_model_forward(inputs, kparams)
    jax.block_until_ready((intents, tags))

    assert intents.shape == (BATCH, INTENTS_COUNT)
    assert tags.shape == (SEQ_LEN, BATCH, TAGS_COUNT)

    ref_int, ref_tags = reference_forward(inputs, params)
    np.testing.assert_allclose(np.asarray(intents), np.asarray(ref_int),
                               rtol=2e-2, atol=2e-2)
    np.testing.assert_allclose(np.asarray(tags), np.asarray(ref_tags),
                               rtol=2e-2, atol=2e-2)

    print("KERNEL_OK")
</pallas_src>

<mosaic_0001>
module attributes {stable_mosaic.version = 11 : i64} {
  func.func @shared_model_kernel(%arg0: memref<16x128xf32, #tpu.memory_space<vmem>>, %arg1: memref<128x1024xbf16, #tpu.memory_space<vmem>>, %arg2: memref<1x1024xf32, #tpu.memory_space<vmem>>, %arg3: memref<128x512xbf16, #tpu.memory_space<vmem>>, %arg4: memref<128x512xbf16, #tpu.memory_space<vmem>>, %arg5: memref<128x7xbf16, #tpu.memory_space<vmem>>, %arg6: memref<128x7xbf16, #tpu.memory_space<vmem>>, %arg7: memref<1x7xf32, #tpu.memory_space<vmem>>, %arg8: memref<128x9xbf16, #tpu.memory_space<vmem>>, %arg9: memref<128x9xbf16, #tpu.memory_space<vmem>>, %arg10: memref<1x9xf32, #tpu.memory_space<vmem>>, %arg11: memref<2x7xf32, #tpu.memory_space<vmem>>, %arg12: memref<16x9xf32, #tpu.memory_space<vmem>>, %arg13: memref<16x1024xf32, #tpu.memory_space<vmem>>, %arg14: memref<16x128xf32, #tpu.memory_space<vmem>>, %arg15: memref<16x128xf32, #tpu.memory_space<vmem>>) attributes {dimension_semantics = [], scalar_prefetch = 0 : i64, scratch_operands = 3 : i64, tpu.core_type = #tpu.core_type<tc>} {
    %c0 = arith.constant 0 : index
    %c0_0 = arith.constant 0 : index
    %0 = vector.load %arg0[%c0, %c0_0] : memref<16x128xf32, #tpu.memory_space<vmem>>, vector<16x128xf32>
    %1 = arith.truncf %0 : vector<16x128xf32> to vector<16x128xbf16>
    %c0_1 = arith.constant 0 : index
    %c0_2 = arith.constant 0 : index
    %2 = vector.load %arg1[%c0_1, %c0_2] : memref<128x1024xbf16, #tpu.memory_space<vmem>>, vector<128x1024xbf16>
    %cst = arith.constant dense<0.000000e+00> : vector<16x1024xf32>
    %3 = tpu.matmul %1, %2, %cst {dimension_numbers = #tpu.dot_dimension_numbers<[1], [0], [0], [1], [0, 0, 1, 1], [], []>} : vector<16x128xbf16>, vector<128x1024xbf16>, vector<16x1024xf32> -> vector<16x1024xf32>
    %c0_3 = arith.constant 0 : index
    %c0_4 = arith.constant 0 : index
    %4 = vector.load %arg2[%c0_3, %c0_4] : memref<1x1024xf32, #tpu.memory_space<vmem>>, vector<1x1024xf32>
    %5 = vector.broadcast %4 : vector<1x1024xf32> to vector<16x1024xf32>
    %6 = arith.addf %3, %5 : vector<16x1024xf32>
    %c0_5 = arith.constant 0 : index
    %c0_6 = arith.constant 0 : index
    %7 = vector.load %arg13[%c0_5, %c0_6] : memref<16x1024xf32, #tpu.memory_space<vmem>>, vector<16x1024xf32>
    tpu.vector_store %arg13[%c0_5, %c0_6], %6 {strides = array<i32>} : memref<16x1024xf32, #tpu.memory_space<vmem>>, vector<16x1024xf32>,
    %c0_7 = arith.constant 0 : index
    %c0_8 = arith.constant 0 : index
    %8 = vector.load %arg3[%c0_7, %c0_8] : memref<128x512xbf16, #tpu.memory_space<vmem>>, vector<128x512xbf16>
    %c0_9 = arith.constant 0 : index
    %c0_10 = arith.constant 0 : index
    %9 = vector.load %arg4[%c0_9, %c0_10] : memref<128x512xbf16, #tpu.memory_space<vmem>>, vector<128x512xbf16>
    %cst_11 = arith.constant 0.000000e+00 : f32
    %10 = vector.broadcast %cst_11 : f32 to vector<2x128xf32>
    %c0_12 = arith.constant 0 : index
    %c0_13 = arith.constant 0 : index
    %11 = vector.load %arg13[%c0_12, %c0_13] : memref<16x1024xf32, #tpu.memory_space<vmem>>, vector<2x512xf32>
    %12 = arith.truncf %10 : vector<2x128xf32> to vector<2x128xbf16>
    %cst_14 = arith.constant dense<0.000000e+00> : vector<2x512xf32>
    %13 = tpu.matmul %12, %8, %cst_14 {dimension_numbers = #tpu.dot_dimension_numbers<[1], [0], [0], [1], [0, 0, 1, 1], [], []>} : vector<2x128xbf16>, vector<128x512xbf16>, vector<2x512xf32> -> vector<2x512xf32>
    %14 = arith.addf %11, %13 : vector<2x512xf32>
    %15 = vector.extract_strided_slice %14 {offsets = [0, 0], sizes = [2, 384], strides = [1, 1]} : vector<2x512xf32> to vector<2x384xf32>
    %16 = arith.negf %15 : vector<2x384xf32>
    %17 = math.exp %16 : vector<2x384xf32>
    %cst_15 = arith.constant 1.000000e+00 : f32
    %18 = vector.broadcast %cst_15 : f32 to vector<2x384xf32>
    %19 = arith.addf %18, %17 : vector<2x384xf32>
    %20 = arith.divf %18, %19 : vector<2x384xf32>
    %21 = vector.extract_strided_slice %14 {offsets = [0, 384], sizes = [2, 128], strides = [1, 1]} : vector<2x512xf32> to vector<2x128xf32>
    %22 = math.tanh %21 : vector<2x128xf32>
    %23 = vector.extract_strided_slice %20 {offsets = [0, 0], sizes = [2, 128], strides = [1, 1]} : vector<2x384xf32> to vector<2x128xf32>
    %24 = vector.extract_strided_slice %20 {offsets = [0, 128], sizes = [2, 128], strides = [1, 1]} : vector<2x384xf32> to vector<2x128xf32>
    %25 = vector.extract_strided_slice %20 {offsets = [0, 256], sizes = [2, 128], strides = [1, 1]} : vector<2x384xf32> to vector<2x128xf32>
    %26 = arith.mulf %24, %10 : vector<2x128xf32>
    %27 = arith.mulf %23, %22 : vector<2x128xf32>
    %28 = arith.addf %26, %27 : vector<2x128xf32>
    %29 = math.tanh %28 : vector<2x128xf32>
    %30 = arith.mulf %25, %29 : vector<2x128xf32>
    %c0_16 = arith.constant 0 : index
    %c0_17 = arith.constant 0 : index
    %31 = vector.load %arg14[%c0_16, %c0_17] : memref<16x128xf32, #tpu.memory_space<vmem>>, vector<2x128xf32>
    tpu.vector_store %arg14[%c0_16, %c0_17], %30 {strides = array<i32>} : memref<16x128xf32, #tpu.memory_space<vmem>>, vector<2x128xf32>,
    %c2 = arith.constant 2 : index
    %c0_18 = arith.constant 0 : index
    %32 = vector.load %arg13[%c2, %c0_18] : memref<16x1024xf32, #tpu.memory_space<vmem>>, vector<2x512xf32>
    %33 = arith.truncf %30 : vector<2x128xf32> to vector<2x128xbf16>
    %cst_19 = arith.constant dense<0.000000e+00> : vector<2x512xf32>
    %34 = tpu.matmul %33, %8, %cst_19 {dimension_numbers = #tpu.dot_dimension_numbers<[1], [0], [0], [1], [0, 0, 1, 1], [], []>} : vector<2x128xbf16>, vector<128x512xbf16>, vector<2x512xf32> -> vector<2x512xf32>
    %35 = arith.addf %32, %34 : vector<2x512xf32>
    %36 = vector.extract_strided_slice %35 {offsets = [0, 0], sizes = [2, 384], strides = [1, 1]} : vector<2x512xf32> to vector<2x384xf32>
    %37 = arith.negf %36 : vector<2x384xf32>
    %38 = math.exp %37 : vector<2x384xf32>
    %cst_20 = arith.constant 1.000000e+00 : f32
    %39 = vector.broadcast %cst_20 : f32 to vector<2x384xf32>
    %40 = arith.addf %39, %38 : vector<2x384xf32>
    %41 = arith.divf %39, %40 : vector<2x384xf32>
    %42 = vector.extract_strided_slice %35 {offsets = [0, 384], sizes = [2, 128], strides = [1, 1]} : vector<2x512xf32> to vector<2x128xf32>
    %43 = math.tanh %42 : vector<2x128xf32>
    %44 = vector.extract_strided_slice %41 {offsets = [0, 0], sizes = [2, 128], strides = [1, 1]} : vector<2x384xf32> to vector<2x128xf32>
    %45 = vector.extract_strided_slice %41 {offsets = [0, 128], sizes = [2, 128], strides = [1, 1]} : vector<2x384xf32> to vector<2x128xf32>
    %46 = vector.extract_strided_slice %41 {offsets = [0, 256], sizes = [2, 128], strides = [1, 1]} : vector<2x384xf32> to vector<2x128xf32>
    %47 = arith.mulf %45, %28 : vector<2x128xf32>
    %48 = arith.mulf %44, %43 : vector<2x128xf32>
    %49 = arith.addf %47, %48 : vector<2x128xf32>
    %50 = math.tanh %49 : vector<2x128xf32>
    %51 = arith.mulf %46, %50 : vector<2x128xf32>
    %c2_21 = arith.constant 2 : index
    %c0_22 = arith.constant 0 : index
    %52 = vector.load %arg14[%c2_21, %c0_22] : memref<16x128xf32, #tpu.memory_space<vmem>>, vector<2x128xf32>
    tpu.vector_store %arg14[%c2_21, %c0_22], %51 {strides = array<i32>} : memref<16x128xf32, #tpu.memory_space<vmem>>, vector<2x128xf32>,
    %c4 = arith.constant 4 : index
    %c0_23 = arith.constant 0 : index
    %53 = vector.load %arg13[%c4, %c0_23] : memref<16x1024xf32, #tpu.memory_space<vmem>>, vector<2x512xf32>
    %54 = arith.truncf %51 : vector<2x128xf32> to vector<2x128xbf16>
    %cst_24 = arith.constant dense<0.000000e+00> : vector<2x512xf32>
    %55 = tpu.matmul %54, %8, %cst_24 {dimension_numbers = #tpu.dot_dimension_numbers<[1], [0], [0], [1], [0, 0, 1, 1], [], []>} : vector<2x128xbf16>, vector<128x512xbf16>, vector<2x512xf32> -> vector<2x512xf32>
    %56 = arith.addf %53, %55 : vector<2x512xf32>
    %57 = vector.extract_strided_slice %56 {offsets = [0, 0], sizes = [2, 384], strides = [1, 1]} : vector<2x512xf32> to vector<2x384xf32>
    %58 = arith.negf %57 : vector<2x384xf32>
    %59 = math.exp %58 : vector<2x384xf32>
    %cst_25 = arith.constant 1.000000e+00 : f32
    %60 = vector.broadcast %cst_25 : f32 to vector<2x384xf32>
    %61 = arith.addf %60, %59 : vector<2x384xf32>
    %62 = arith.divf %60, %61 : vector<2x384xf32>
    %63 = vector.extract_strided_slice %56 {offsets = [0, 384], sizes = [2, 128], strides = [1, 1]} : vector<2x512xf32> to vector<2x128xf32>
    %64 = math.tanh %63 : vector<2x128xf32>
    %65 = vector.extract_strided_slice %62 {offsets = [0, 0], sizes = [2, 128], strides = [1, 1]} : vector<2x384xf32> to vector<2x128xf32>
    %66 = vector.extract_strided_slice %62 {offsets = [0, 128], sizes = [2, 128], strides = [1, 1]} : vector<2x384xf32> to vector<2x128xf32>
    %67 = vector.extract_strided_slice %62 {offsets = [0, 256], sizes = [2, 128], strides = [1, 1]} : vector<2x384xf32> to vector<2x128xf32>
    %68 = arith.mulf %66, %49 : vector<2x128xf32>
    %69 = arith.mulf %65, %64 : vector<2x128xf32>
    %70 = arith.addf %68, %69 : vector<2x128xf32>
    %71 = math.tanh %70 : vector<2x128xf32>
    %72 = arith.mulf %67, %71 : vector<2x128xf32>
    %c4_26 = arith.constant 4 : index
    %c0_27 = arith.constant 0 : index
    %73 = vector.load %arg14[%c4_26, %c0_27] : memref<16x128xf32, #tpu.memory_space<vmem>>, vector<2x128xf32>
    tpu.vector_store %arg14[%c4_26, %c0_27], %72 {strides = array<i32>} : memref<16x128xf32, #tpu.memory_space<vmem>>, vector<2x128xf32>,
    %c6 = arith.constant 6 : index
    %c0_28 = arith.constant 0 : index
    %74 = vector.load %arg13[%c6, %c0_28] : memref<16x1024xf32, #tpu.memory_space<vmem>>, vector<2x512xf32>
    %75 = arith.truncf %72 : vector<2x128xf32> to vector<2x128xbf16>
    %cst_29 = arith.constant dense<0.000000e+00> : vector<2x512xf32>
    %76 = tpu.matmul %75, %8, %cst_29 {dimension_numbers = #tpu.dot_dimension_numbers<[1], [0], [0], [1], [0, 0, 1, 1], [], []>} : vector<2x128xbf16>, vector<128x512xbf16>, vector<2x512xf32> -> vector<2x512xf32>
    %77 = arith.addf %74, %76 : vector<2x512xf32>
    %78 = vector.extract_strided_slice %77 {offsets = [0, 0], sizes = [2, 384], strides = [1, 1]} : vector<2x512xf32> to vector<2x384xf32>
    %79 = arith.negf %78 : vector<2x384xf32>
    %80 = math.exp %79 : vector<2x384xf32>
    %cst_30 = arith.constant 1.000000e+00 : f32
    %81 = vector.broadcast %cst_30 : f32 to vector<2x384xf32>
    %82 = arith.addf %81, %80 : vector<2x384xf32>
    %83 = arith.divf %81, %82 : vector<2x384xf32>
    %84 = vector.extract_strided_slice %77 {offsets = [0, 384], sizes = [2, 128], strides = [1, 1]} : vector<2x512xf32> to vector<2x128xf32>
    %85 = math.tanh %84 : vector<2x128xf32>
    %86 = vector.extract_strided_slice %83 {offsets = [0, 0], sizes = [2, 128], strides = [1, 1]} : vector<2x384xf32> to vector<2x128xf32>
    %87 = vector.extract_strided_slice %83 {offsets = [0, 128], sizes = [2, 128], strides = [1, 1]} : vector<2x384xf32> to vector<2x128xf32>
    %88 = vector.extract_strided_slice %83 {offsets = [0, 256], sizes = [2, 128], strides = [1, 1]} : vector<2x384xf32> to vector<2x128xf32>
    %89 = arith.mulf %87, %70 : vector<2x128xf32>
    %90 = arith.mulf %86, %85 : vector<2x128xf32>
    %91 = arith.addf %89, %90 : vector<2x128xf32>
    %92 = math.tanh %91 : vector<2x128xf32>
    %93 = arith.mulf %88, %92 : vector<2x128xf32>
    %c6_31 = arith.constant 6 : index
    %c0_32 = arith.constant 0 : index
    %94 = vector.load %arg14[%c6_31, %c0_32] : memref<16x128xf32, #tpu.memory_space<vmem>>, vector<2x128xf32>
    tpu.vector_store %arg14[%c6_31, %c0_32], %93 {strides = array<i32>} : memref<16x128xf32, #tpu.memory_space<vmem>>, vector<2x128xf32>,
    %c8 = arith.constant 8 : index
    %c0_33 = arith.constant 0 : index
    %95 = vector.load %arg13[%c8, %c0_33] : memref<16x1024xf32, #tpu.memory_space<vmem>>, vector<2x512xf32>
    %96 = arith.truncf %93 : vector<2x128xf32> to vector<2x128xbf16>
    %cst_34 = arith.constant dense<0.000000e+00> : vector<2x512xf32>
    %97 = tpu.matmul %96, %8, %cst_34 {dimension_numbers = #tpu.dot_dimension_numbers<[1], [0], [0], [1], [0, 0, 1, 1], [], []>} : vector<2x128xbf16>, vector<128x512xbf16>, vector<2x512xf32> -> vector<2x512xf32>
    %98 = arith.addf %95, %97 : vector<2x512xf32>
    %99 = vector.extract_strided_slice %98 {offsets = [0, 0], sizes = [2, 384], strides = [1, 1]} : vector<2x512xf32> to vector<2x384xf32>
    %100 = arith.negf %99 : vector<2x384xf32>
    %101 = math.exp %100 : vector<2x384xf32>
    %cst_35 = arith.constant 1.000000e+00 : f32
    %102 = vector.broadcast %cst_35 : f32 to vector<2x384xf32>
    %103 = arith.addf %102, %101 : vector<2x384xf32>
    %104 = arith.divf %102, %103 : vector<2x384xf32>
    %105 = vector.extract_strided_slice %98 {offsets = [0, 384], sizes = [2, 128], strides = [1, 1]} : vector<2x512xf32> to vector<2x128xf32>
    %106 = math.tanh %105 : vector<2x128xf32>
    %107 = vector.extract_strided_slice %104 {offsets = [0, 0], sizes = [2, 128], strides = [1, 1]} : vector<2x384xf32> to vector<2x128xf32>
    %108 = vector.extract_strided_slice %104 {offsets = [0, 128], sizes = [2, 128], strides = [1, 1]} : vector<2x384xf32> to vector<2x128xf32>
    %109 = vector.extract_strided_slice %104 {offsets = [0, 256], sizes = [2, 128], strides = [1, 1]} : vector<2x384xf32> to vector<2x128xf32>
    %110 = arith.mulf %108, %91 : vector<2x128xf32>
    %111 = arith.mulf %107, %106 : vector<2x128xf32>
    %112 = arith.addf %110, %111 : vector<2x128xf32>
    %113 = math.tanh %112 : vector<2x128xf32>
    %114 = arith.mulf %109, %113 : vector<2x128xf32>
    %c8_36 = arith.constant 8 : index
    %c0_37 = arith.constant 0 : index
    %115 = vector.load %arg14[%c8_36, %c0_37] : memref<16x128xf32, #tpu.memory_space<vmem>>, vector<2x128xf32>
    tpu.vector_store %arg14[%c8_36, %c0_37], %114 {strides = array<i32>} : memref<16x128xf32, #tpu.memory_space<vmem>>, vector<2x128xf32>,
    %c10 = arith.constant 10 : index
    %c0_38 = arith.constant 0 : index
    %116 = vector.load %arg13[%c10, %c0_38] : memref<16x1024xf32, #tpu.memory_space<vmem>>, vector<2x512xf32>
    %117 = arith.truncf %114 : vector<2x128xf32> to vector<2x128xbf16>
    %cst_39 = arith.constant dense<0.000000e+00> : vector<2x512xf32>
    %118 = tpu.matmul %117, %8, %cst_39 {dimension_numbers = #tpu.dot_dimension_numbers<[1], [0], [0], [1], [0, 0, 1, 1], [], []>} : vector<2x128xbf16>, vector<128x512xbf16>, vector<2x512xf32> -> vector<2x512xf32>
    %119 = arith.addf %116, %118 : vector<2x512xf32>
    %120 = vector.extract_strided_slice %119 {offsets = [0, 0], sizes = [2, 384], strides = [1, 1]} : vector<2x512xf32> to vector<2x384xf32>
    %121 = arith.negf %120 : vector<2x384xf32>
    %122 = math.exp %121 : vector<2x384xf32>
    %cst_40 = arith.constant 1.000000e+00 : f32
    %123 = vector.broadcast %cst_40 : f32 to vector<2x384xf32>
    %124 = arith.addf %123, %122 : vector<2x384xf32>
    %125 = arith.divf %123, %124 : vector<2x384xf32>
    %126 = vector.extract_strided_slice %119 {offsets = [0, 384], sizes = [2, 128], strides = [1, 1]} : vector<2x512xf32> to vector<2x128xf32>
    %127 = math.tanh %126 : vector<2x128xf32>
    %128 = vector.extract_strided_slice %125 {offsets = [0, 0], sizes = [2, 128], strides = [1, 1]} : vector<2x384xf32> to vector<2x128xf32>
    %129 = vector.extract_strided_slice %125 {offsets = [0, 128], sizes = [2, 128], strides = [1, 1]} : vector<2x384xf32> to vector<2x128xf32>
    %130 = vector.extract_strided_slice %125 {offsets = [0, 256], sizes = [2, 128], strides = [1, 1]} : vector<2x384xf32> to vector<2x128xf32>
    %131 = arith.mulf %129, %112 : vector<2x128xf32>
    %132 = arith.mulf %128, %127 : vector<2x128xf32>
    %133 = arith.addf %131, %132 : vector<2x128xf32>
    %134 = math.tanh %133 : vector<2x128xf32>
    %135 = arith.mulf %130, %134 : vector<2x128xf32>
    %c10_41 = arith.constant 10 : index
    %c0_42 = arith.constant 0 : index
    %136 = vector.load %arg14[%c10_41, %c0_42] : memref<16x128xf32, #tpu.memory_space<vmem>>, vector<2x128xf32>
    tpu.vector_store %arg14[%c10_41, %c0_42], %135 {strides = array<i32>} : memref<16x128xf32, #tpu.memory_space<vmem>>, vector<2x128xf32>,
    %c12 = arith.constant 12 : index
    %c0_43 = arith.constant 0 : index
    %137 = vector.load %arg13[%c12, %c0_43] : memref<16x1024xf32, #tpu.memory_space<vmem>>, vector<2x512xf32>
    %138 = arith.truncf %135 : vector<2x128xf32> to vector<2x128xbf16>
    %cst_44 = arith.constant dense<0.000000e+00> : vector<2x512xf32>
    %139 = tpu.matmul %138, %8, %cst_44 {dimension_numbers = #tpu.dot_dimension_numbers<[1], [0], [0], [1], [0, 0, 1, 1], [], []>} : vector<2x128xbf16>, vector<128x512xbf16>, vector<2x512xf32> -> vector<2x512xf32>
    %140 = arith.addf %137, %139 : vector<2x512xf32>
    %141 = vector.extract_strided_slice %140 {offsets = [0, 0], sizes = [2, 384], strides = [1, 1]} : vector<2x512xf32> to vector<2x384xf32>
    %142 = arith.negf %141 : vector<2x384xf32>
    %143 = math.exp %142 : vector<2x384xf32>
    %cst_45 = arith.constant 1.000000e+00 : f32
    %144 = vector.broadcast %cst_45 : f32 to vector<2x384xf32>
    %145 = arith.addf %144, %143 : vector<2x384xf32>
    %146 = arith.divf %144, %145 : vector<2x384xf32>
    %147 = vector.extract_strided_slice %140 {offsets = [0, 384], sizes = [2, 128], strides = [1, 1]} : vector<2x512xf32> to vector<2x128xf32>
    %148 = math.tanh %147 : vector<2x128xf32>
    %149 = vector.extract_strided_slice %146 {offsets = [0, 0], sizes = [2, 128], strides = [1, 1]} : vector<2x384xf32> to vector<2x128xf32>
    %150 = vector.extract_strided_slice %146 {offsets = [0, 128], sizes = [2, 128], strides = [1, 1]} : vector<2x384xf32> to vector<2x128xf32>
    %151 = vector.extract_strided_slice %146 {offsets = [0, 256], sizes = [2, 128], strides = [1, 1]} : vector<2x384xf32> to vector<2x128xf32>
    %152 = arith.mulf %150, %133 : vector<2x128xf32>
    %153 = arith.mulf %149, %148 : vector<2x128xf32>
    %154 = arith.addf %152, %153 : vector<2x128xf32>
    %155 = math.tanh %154 : vector<2x128xf32>
    %156 = arith.mulf %151, %155 : vector<2x128xf32>
    %c12_46 = arith.constant 12 : index
    %c0_47 = arith.constant 0 : index
    %157 = vector.load %arg14[%c12_46, %c0_47] : memref<16x128xf32, #tpu.memory_space<vmem>>, vector<2x128xf32>
    tpu.vector_store %arg14[%c12_46, %c0_47], %156 {strides = array<i32>} : memref<16x128xf32, #tpu.memory_space<vmem>>, vector<2x128xf32>,
    %c14 = arith.constant 14 : index
    %c0_48 = arith.constant 0 : index
    %158 = vector.load %arg13[%c14, %c0_48] : memref<16x1024xf32, #tpu.memory_space<vmem>>, vector<2x512xf32>
    %159 = arith.truncf %156 : vector<2x128xf32> to vector<2x128xbf16>
    %cst_49 = arith.constant dense<0.000000e+00> : vector<2x512xf32>
    %160 = tpu.matmul %159, %8, %cst_49 {dimension_numbers = #tpu.dot_dimension_numbers<[1], [0], [0], [1], [0, 0, 1, 1], [], []>} : vector<2x128xbf16>, vector<128x512xbf16>, vector<2x512xf32> -> vector<2x512xf32>
    %161 = arith.addf %158, %160 : vector<2x512xf32>
    %162 = vector.extract_strided_slice %161 {offsets = [0, 0], sizes = [2, 384], strides = [1, 1]} : vector<2x512xf32> to vector<2x384xf32>
    %163 = arith.negf %162 : vector<2x384xf32>
    %164 = math.exp %163 : vector<2x384xf32>
    %cst_50 = arith.constant 1.000000e+00 : f32
    %165 = vector.broadcast %cst_50 : f32 to vector<2x384xf32>
    %166 = arith.addf %165, %164 : vector<2x384xf32>
    %167 = arith.divf %165, %166 : vector<2x384xf32>
    %168 = vector.extract_strided_slice %161 {offsets = [0, 384], sizes = [2, 128], strides = [1, 1]} : vector<2x512xf32> to vector<2x128xf32>
    %169 = math.tanh %168 : vector<2x128xf32>
    %170 = vector.extract_strided_slice %167 {offsets = [0, 0], sizes = [2, 128], strides = [1, 1]} : vector<2x384xf32> to vector<2x128xf32>
    %171 = vector.extract_strided_slice %167 {offsets = [0, 128], sizes = [2, 128], strides = [1, 1]} : vector<2x384xf32> to vector<2x128xf32>
    %172 = vector.extract_strided_slice %167 {offsets = [0, 256], sizes = [2, 128], strides = [1, 1]} : vector<2x384xf32> to vector<2x128xf32>
    %173 = arith.mulf %171, %154 : vector<2x128xf32>
    %174 = arith.mulf %170, %169 : vector<2x128xf32>
    %175 = arith.addf %173, %174 : vector<2x128xf32>
    %176 = math.tanh %175 : vector<2x128xf32>
    %177 = arith.mulf %172, %176 : vector<2x128xf32>
    %c14_51 = arith.constant 14 : index
    %c0_52 = arith.constant 0 : index
    %178 = vector.load %arg14[%c14_51, %c0_52] : memref<16x128xf32, #tpu.memory_space<vmem>>, vector<2x128xf32>
    tpu.vector_store %arg14[%c14_51, %c0_52], %177 {strides = array<i32>} : memref<16x128xf32, #tpu.memory_space<vmem>>, vector<2x128xf32>,
    %c14_53 = arith.constant 14 : index
    %c512 = arith.constant 512 : index
    %179 = vector.load %arg13[%c14_53, %c512] : memref<16x1024xf32, #tpu.memory_space<vmem>>, vector<2x512xf32>
    %180 = arith.truncf %10 : vector<2x128xf32> to vector<2x128xbf16>
    %cst_54 = arith.constant dense<0.000000e+00> : vector<2x512xf32>
    %181 = tpu.matmul %180, %9, %cst_54 {dimension_numbers = #tpu.dot_dimension_numbers<[1], [0], [0], [1], [0, 0, 1, 1], [], []>} : vector<2x128xbf16>, vector<128x512xbf16>, vector<2x512xf32> -> vector<2x512xf32>
    %182 = arith.addf %179, %181 : vector<2x512xf32>
    %183 = vector.extract_strided_slice %182 {offsets = [0, 0], sizes = [2, 384], strides = [1, 1]} : vector<2x512xf32> to vector<2x384xf32>
    %184 = arith.negf %183 : vector<2x384xf32>
    %185 = math.exp %184 : vector<2x384xf32>
    %cst_55 = arith.constant 1.000000e+00 : f32
    %186 = vector.broadcast %cst_55 : f32 to vector<2x384xf32>
    %187 = arith.addf %186, %185 : vector<2x384xf32>
    %188 = arith.divf %186, %187 : vector<2x384xf32>
    %189 = vector.extract_strided_slice %182 {offsets = [0, 384], sizes = [2, 128], strides = [1, 1]} : vector<2x512xf32> to vector<2x128xf32>
    %190 = math.tanh %189 : vector<2x128xf32>
    %191 = vector.extract_strided_slice %188 {offsets = [0, 0], sizes = [2, 128], strides = [1, 1]} : vector<2x384xf32> to vector<2x128xf32>
    %192 = vector.extract_strided_slice %188 {offsets = [0, 128], sizes = [2, 128], strides = [1, 1]} : vector<2x384xf32> to vector<2x128xf32>
    %193 = vector.extract_strided_slice %188 {offsets = [0, 256], sizes = [2, 128], strides = [1, 1]} : vector<2x384xf32> to vector<2x128xf32>
    %194 = arith.mulf %192, %10 : vector<2x128xf32>
    %195 = arith.mulf %191, %190 : vector<2x128xf32>
    %196 = arith.addf %194, %195 : vector<2x128xf32>
    %197 = math.tanh %196 : vector<2x128xf32>
    %198 = arith.mulf %193, %197 : vector<2x128xf32>
    %c14_56 = arith.constant 14 : index
    %c0_57 = arith.constant 0 : index
    %199 = vector.load %arg15[%c14_56, %c0_57] : memref<16x128xf32, #tpu.memory_space<vmem>>, vector<2x128xf32>
    tpu.vector_store %arg15[%c14_56, %c0_57], %198 {strides = array<i32>} : memref<16x128xf32, #tpu.memory_space<vmem>>, vector<2x128xf32>,
    %c12_58 = arith.constant 12 : index
    %c512_59 = arith.constant 512 : index
    %200 = vector.load %arg13[%c12_58, %c512_59] : memref<16x1024xf32, #tpu.memory_space<vmem>>, vector<2x512xf32>
    %201 = arith.truncf %198 : vector<2x128xf32> to vector<2x128xbf16>
    %cst_60 = arith.constant dense<0.000000e+00> : vector<2x512xf32>
    %202 = tpu.matmul %201, %9, %cst_60 {dimension_numbers = #tpu.dot_dimension_numbers<[1], [0], [0], [1], [0, 0, 1, 1], [], []>} : vector<2x128xbf16>, vector<128x512xbf16>, vector<2x512xf32> -> vector<2x512xf32>
    %203 = arith.addf %200, %202 : vector<2x512xf32>
    %204 = vector.extract_strided_slice %203 {offsets = [0, 0], sizes = [2, 384], strides = [1, 1]} : vector<2x512xf32> to vector<2x384xf32>
    %205 = arith.negf %204 : vector<2x384xf32>
    %206 = math.exp %205 : vector<2x384xf32>
    %cst_61 = arith.constant 1.000000e+00 : f32
    %207 = vector.broadcast %cst_61 : f32 to vector<2x384xf32>
    %208 = arith.addf %207, %206 : vector<2x384xf32>
    %209 = arith.divf %207, %208 : vector<2x384xf32>
    %210 = vector.extract_strided_slice %203 {offsets = [0, 384], sizes = [2, 128], strides = [1, 1]} : vector<2x512xf32> to vector<2x128xf32>
    %211 = math.tanh %210 : vector<2x128xf32>
    %212 = vector.extract_strided_slice %209 {offsets = [0, 0], sizes = [2, 128], strides = [1, 1]} : vector<2x384xf32> to vector<2x128xf32>
    %213 = vector.extract_strided_slice %209 {offsets = [0, 128], sizes = [2, 128], strides = [1, 1]} : vector<2x384xf32> to vector<2x128xf32>
    %214 = vector.extract_strided_slice %209 {offsets = [0, 256], sizes = [2, 128], strides = [1, 1]} : vector<2x384xf32> to vector<2x128xf32>
    %215 = arith.mulf %213, %196 : vector<2x128xf32>
    %216 = arith.mulf %212, %211 : vector<2x128xf32>
    %217 = arith.addf %215, %216 : vector<2x128xf32>
    %218 = math.tanh %217 : vector<2x128xf32>
    %219 = arith.mulf %214, %218 : vector<2x128xf32>
    %c12_62 = arith.constant 12 : index
    %c0_63 = arith.constant 0 : index
    %220 = vector.load %arg15[%c12_62, %c0_63] : memref<16x128xf32, #tpu.memory_space<vmem>>, vector<2x128xf32>
    tpu.vector_store %arg15[%c12_62, %c0_63], %219 {strides = array<i32>} : memref<16x128xf32, #tpu.memory_space<vmem>>, vector<2x128xf32>,
    %c10_64 = arith.constant 10 : index
    %c512_65 = arith.constant 512 : index
    %221 = vector.load %arg13[%c10_64, %c512_65] : memref<16x1024xf32, #tpu.memory_space<vmem>>, vector<2x512xf32>
    %222 = arith.truncf %219 : vector<2x128xf32> to vector<2x128xbf16>
    %cst_66 = arith.constant dense<0.000000e+00> : vector<2x512xf32>
    %223 = tpu.matmul %222, %9, %cst_66 {dimension_numbers = #tpu.dot_dimension_numbers<[1], [0], [0], [1], [0, 0, 1, 1], [], []>} : vector<2x128xbf16>, vector<128x512xbf16>, vector<2x512xf32> -> vector<2x512xf32>
    %224 = arith.addf %221, %223 : vector<2x512xf32>
    %225 = vector.extract_strided_slice %224 {offsets = [0, 0], sizes = [2, 384], strides = [1, 1]} : vector<2x512xf32> to vector<2x384xf32>
    %226 = arith.negf %225 : vector<2x384xf32>
    %227 = math.exp %226 : vector<2x384xf32>
    %cst_67 = arith.constant 1.000000e+00 : f32
    %228 = vector.broadcast %cst_67 : f32 to vector<2x384xf32>
    %229 = arith.addf %228, %227 : vector<2x384xf32>
    %230 = arith.divf %228, %229 : vector<2x384xf32>
    %231 = vector.extract_strided_slice %224 {offsets = [0, 384], sizes = [2, 128], strides = [1, 1]} : vector<2x512xf32> to vector<2x128xf32>
    %232 = math.tanh %231 : vector<2x128xf32>
    %233 = vector.extract_strided_slice %230 {offsets = [0, 0], sizes = [2, 128], strides = [1, 1]} : vector<2x384xf32> to vector<2x128xf32>
    %234 = vector.extract_strided_slice %230 {offsets = [0, 128], sizes = [2, 128], strides = [1, 1]} : vector<2x384xf32> to vector<2x128xf32>
    %235 = vector.extract_strided_slice %230 {offsets = [0, 256], sizes = [2, 128], strides = [1, 1]} : vector<2x384xf32> to vector<2x128xf32>
    %236 = arith.mulf %234, %217 : vector<2x128xf32>
    %237 = arith.mulf %233, %232 : vector<2x128xf32>
    %238 = arith.addf %236, %237 : vector<2x128xf32>
    %239 = math.tanh %238 : vector<2x128xf32>
    %240 = arith.mulf %235, %239 : vector<2x128xf32>
    %c10_68 = arith.constant 10 : index
    %c0_69 = arith.constant 0 : index
    %241 = vector.load %arg15[%c10_68, %c0_69] : memref<16x128xf32, #tpu.memory_space<vmem>>, vector<2x128xf32>
    tpu.vector_store %arg15[%c10_68, %c0_69], %240 {strides = array<i32>} : memref<16x128xf32, #tpu.memory_space<vmem>>, vector<2x128xf32>,
    %c8_70 = arith.constant 8 : index
    %c512_71 = arith.constant 512 : index
    %242 = vector.load %arg13[%c8_70, %c512_71] : memref<16x1024xf32, #tpu.memory_space<vmem>>, vector<2x512xf32>
    %243 = arith.truncf %240 : vector<2x128xf32> to vector<2x128xbf16>
    %cst_72 = arith.constant dense<0.000000e+00> : vector<2x512xf32>
    %244 = tpu.matmul %243, %9, %cst_72 {dimension_numbers = #tpu.dot_dimension_numbers<[1], [0], [0], [1], [0, 0, 1, 1], [], []>} : vector<2x128xbf16>, vector<128x512xbf16>, vector<2x512xf32> -> vector<2x512xf32>
    %245 = arith.addf %242, %244 : vector<2x512xf32>
    %246 = vector.extract_strided_slice %245 {offsets = [0, 0], sizes = [2, 384], strides = [1, 1]} : vector<2x512xf32> to vector<2x384xf32>
    %247 = arith.negf %246 : vector<2x384xf32>
    %248 = math.exp %247 : vector<2x384xf32>
    %cst_73 = arith.constant 1.000000e+00 : f32
    %249 = vector.broadcast %cst_73 : f32 to vector<2x384xf32>
    %250 = arith.addf %249, %248 : vector<2x384xf32>
    %251 = arith.divf %249, %250 : vector<2x384xf32>
    %252 = vector.extract_strided_slice %245 {offsets = [0, 384], sizes = [2, 128], strides = [1, 1]} : vector<2x512xf32> to vector<2x128xf32>
    %253 = math.tanh %252 : vector<2x128xf32>
    %254 = vector.extract_strided_slice %251 {offsets = [0, 0], sizes = [2, 128], strides = [1, 1]} : vector<2x384xf32> to vector<2x128xf32>
    %255 = vector.extract_strided_slice %251 {offsets = [0, 128], sizes = [2, 128], strides = [1, 1]} : vector<2x384xf32> to vector<2x128xf32>
    %256 = vector.extract_strided_slice %251 {offsets = [0, 256], sizes = [2, 128], strides = [1, 1]} : vector<2x384xf32> to vector<2x128xf32>
    %257 = arith.mulf %255, %238 : vector<2x128xf32>
    %258 = arith.mulf %254, %253 : vector<2x128xf32>
    %259 = arith.addf %257, %258 : vector<2x128xf32>
    %260 = math.tanh %259 : vector<2x128xf32>
    %261 = arith.mulf %256, %260 : vector<2x128xf32>
    %c8_74 = arith.constant 8 : index
    %c0_75 = arith.constant 0 : index
    %262 = vector.load %arg15[%c8_74, %c0_75] : memref<16x128xf32, #tpu.memory_space<vmem>>, vector<2x128xf32>
    tpu.vector_store %arg15[%c8_74, %c0_75], %261 {strides = array<i32>} : memref<16x128xf32, #tpu.memory_space<vmem>>, vector<2x128xf32>,
    %c6_76 = arith.constant 6 : index
    %c512_77 = arith.constant 512 : index
    %263 = vector.load %arg13[%c6_76, %c512_77] : memref<16x1024xf32, #tpu.memory_space<vmem>>, vector<2x512xf32>
    %264 = arith.truncf %261 : vector<2x128xf32> to vector<2x128xbf16>
    %cst_78 = arith.constant dense<0.000000e+00> : vector<2x512xf32>
    %265 = tpu.matmul %264, %9, %cst_78 {dimension_numbers = #tpu.dot_dimension_numbers<[1], [0], [0], [1], [0, 0, 1, 1], [], []>} : vector<2x128xbf16>, vector<128x512xbf16>, vector<2x512xf32> -> vector<2x512xf32>
    %266 = arith.addf %263, %265 : vector<2x512xf32>
    %267 = vector.extract_strided_slice %266 {offsets = [0, 0], sizes = [2, 384], strides = [1, 1]} : vector<2x512xf32> to vector<2x384xf32>
    %268 = arith.negf %267 : vector<2x384xf32>
    %269 = math.exp %268 : vector<2x384xf32>
    %cst_79 = arith.constant 1.000000e+00 : f32
    %270 = vector.broadcast %cst_79 : f32 to vector<2x384xf32>
    %271 = arith.addf %270, %269 : vector<2x384xf32>
    %272 = arith.divf %270, %271 : vector<2x384xf32>
    %273 = vector.extract_strided_slice %266 {offsets = [0, 384], sizes = [2, 128], strides = [1, 1]} : vector<2x512xf32> to vector<2x128xf32>
    %274 = math.tanh %273 : vector<2x128xf32>
    %275 = vector.extract_strided_slice %272 {offsets = [0, 0], sizes = [2, 128], strides = [1, 1]} : vector<2x384xf32> to vector<2x128xf32>
    %276 = vector.extract_strided_slice %272 {offsets = [0, 128], sizes = [2, 128], strides = [1, 1]} : vector<2x384xf32> to vector<2x128xf32>
    %277 = vector.extract_strided_slice %272 {offsets = [0, 256], sizes = [2, 128], strides = [1, 1]} : vector<2x384xf32> to vector<2x128xf32>
    %278 = arith.mulf %276, %259 : vector<2x128xf32>
    %279 = arith.mulf %275, %274 : vector<2x128xf32>
    %280 = arith.addf %278, %279 : vector<2x128xf32>
    %281 = math.tanh %280 : vector<2x128xf32>
    %282 = arith.mulf %277, %281 : vector<2x128xf32>
    %c6_80 = arith.constant 6 : index
    %c0_81 = arith.constant 0 : index
    %283 = vector.load %arg15[%c6_80, %c0_81] : memref<16x128xf32, #tpu.memory_space<vmem>>, vector<2x128xf32>
    tpu.vector_store %arg15[%c6_80, %c0_81], %282 {strides = array<i32>} : memref<16x128xf32, #tpu.memory_space<vmem>>, vector<2x128xf32>,
    %c4_82 = arith.constant 4 : index
    %c512_83 = arith.constant 512 : index
    %284 = vector.load %arg13[%c4_82, %c512_83] : memref<16x1024xf32, #tpu.memory_space<vmem>>, vector<2x512xf32>
    %285 = arith.truncf %282 : vector<2x128xf32> to vector<2x128xbf16>
    %cst_84 = arith.constant dense<0.000000e+00> : vector<2x512xf32>
    %286 = tpu.matmul %285, %9, %cst_84 {dimension_numbers = #tpu.dot_dimension_numbers<[1], [0], [0], [1], [0, 0, 1, 1], [], []>} : vector<2x128xbf16>, vector<128x512xbf16>, vector<2x512xf32> -> vector<2x512xf32>
    %287 = arith.addf %284, %286 : vector<2x512xf32>
    %288 = vector.extract_strided_slice %287 {offsets = [0, 0], sizes = [2, 384], strides = [1, 1]} : vector<2x512xf32> to vector<2x384xf32>
    %289 = arith.negf %288 : vector<2x384xf32>
    %290 = math.exp %289 : vector<2x384xf32>
    %cst_85 = arith.constant 1.000000e+00 : f32
    %291 = vector.broadcast %cst_85 : f32 to vector<2x384xf32>
    %292 = arith.addf %291, %290 : vector<2x384xf32>
    %293 = arith.divf %291, %292 : vector<2x384xf32>
    %294 = vector.extract_strided_slice %287 {offsets = [0, 384], sizes = [2, 128], strides = [1, 1]} : vector<2x512xf32> to vector<2x128xf32>
    %295 = math.tanh %294 : vector<2x128xf32>
    %296 = vector.extract_strided_slice %293 {offsets = [0, 0], sizes = [2, 128], strides = [1, 1]} : vector<2x384xf32> to vector<2x128xf32>
    %297 = vector.extract_strided_slice %293 {offsets = [0, 128], sizes = [2, 128], strides = [1, 1]} : vector<2x384xf32> to vector<2x128xf32>
    %298 = vector.extract_strided_slice %293 {offsets = [0, 256], sizes = [2, 128], strides = [1, 1]} : vector<2x384xf32> to vector<2x128xf32>
    %299 = arith.mulf %297, %280 : vector<2x128xf32>
    %300 = arith.mulf %296, %295 : vector<2x128xf32>
    %301 = arith.addf %299, %300 : vector<2x128xf32>
    %302 = math.tanh %301 : vector<2x128xf32>
    %303 = arith.mulf %298, %302 : vector<2x128xf32>
    %c4_86 = arith.constant 4 : index
    %c0_87 = arith.constant 0 : index
    %304 = vector.load %arg15[%c4_86, %c0_87] : memref<16x128xf32, #tpu.memory_space<vmem>>, vector<2x128xf32>
    tpu.vector_store %arg15[%c4_86, %c0_87], %303 {strides = array<i32>} : memref<16x128xf32, #tpu.memory_space<vmem>>, vector<2x128xf32>,
    %c2_88 = arith.constant 2 : index
    %c512_89 = arith.constant 512 : index
    %305 = vector.load %arg13[%c2_88, %c512_89] : memref<16x1024xf32, #tpu.memory_space<vmem>>, vector<2x512xf32>
    %306 = arith.truncf %303 : vector<2x128xf32> to vector<2x128xbf16>
    %cst_90 = arith.constant dense<0.000000e+00> : vector<2x512xf32>
    %307 = tpu.matmul %306, %9, %cst_90 {dimension_numbers = #tpu.dot_dimension_numbers<[1], [0], [0], [1], [0, 0, 1, 1], [], []>} : vector<2x128xbf16>, vector<128x512xbf16>, vector<2x512xf32> -> vector<2x512xf32>
    %308 = arith.addf %305, %307 : vector<2x512xf32>
    %309 = vector.extract_strided_slice %308 {offsets = [0, 0], sizes = [2, 384], strides = [1, 1]} : vector<2x512xf32> to vector<2x384xf32>
    %310 = arith.negf %309 : vector<2x384xf32>
    %311 = math.exp %310 : vector<2x384xf32>
    %cst_91 = arith.constant 1.000000e+00 : f32
    %312 = vector.broadcast %cst_91 : f32 to vector<2x384xf32>
    %313 = arith.addf %312, %311 : vector<2x384xf32>
    %314 = arith.divf %312, %313 : vector<2x384xf32>
    %315 = vector.extract_strided_slice %308 {offsets = [0, 384], sizes = [2, 128], strides = [1, 1]} : vector<2x512xf32> to vector<2x128xf32>
    %316 = math.tanh %315 : vector<2x128xf32>
    %317 = vector.extract_strided_slice %314 {offsets = [0, 0], sizes = [2, 128], strides = [1, 1]} : vector<2x384xf32> to vector<2x128xf32>
    %318 = vector.extract_strided_slice %314 {offsets = [0, 128], sizes = [2, 128], strides = [1, 1]} : vector<2x384xf32> to vector<2x128xf32>
    %319 = vector.extract_strided_slice %314 {offsets = [0, 256], sizes = [2, 128], strides = [1, 1]} : vector<2x384xf32> to vector<2x128xf32>
    %320 = arith.mulf %318, %301 : vector<2x128xf32>
    %321 = arith.mulf %317, %316 : vector<2x128xf32>
    %322 = arith.addf %320, %321 : vector<2x128xf32>
    %323 = math.tanh %322 : vector<2x128xf32>
    %324 = arith.mulf %319, %323 : vector<2x128xf32>
    %c2_92 = arith.constant 2 : index
    %c0_93 = arith.constant 0 : index
    %325 = vector.load %arg15[%c2_92, %c0_93] : memref<16x128xf32, #tpu.memory_space<vmem>>, vector<2x128xf32>
    tpu.vector_store %arg15[%c2_92, %c0_93], %324 {strides = array<i32>} : memref<16x128xf32, #tpu.memory_space<vmem>>, vector<2x128xf32>,
    %c0_94 = arith.constant 0 : index
    %c512_95 = arith.constant 512 : index
    %326 = vector.load %arg13[%c0_94, %c512_95] : memref<16x1024xf32, #tpu.memory_space<vmem>>, vector<2x512xf32>
    %327 = arith.truncf %324 : vector<2x128xf32> to vector<2x128xbf16>
    %cst_96 = arith.constant dense<0.000000e+00> : vector<2x512xf32>
    %328 = tpu.matmul %327, %9, %cst_96 {dimension_numbers = #tpu.dot_dimension_numbers<[1], [0], [0], [1], [0, 0, 1, 1], [], []>} : vector<2x128xbf16>, vector<128x512xbf16>, vector<2x512xf32> -> vector<2x512xf32>
    %329 = arith.addf %326, %328 : vector<2x512xf32>
    %330 = vector.extract_strided_slice %329 {offsets = [0, 0], sizes = [2, 384], strides = [1, 1]} : vector<2x512xf32> to vector<2x384xf32>
    %331 = arith.negf %330 : vector<2x384xf32>
    %332 = math.exp %331 : vector<2x384xf32>
    %cst_97 = arith.constant 1.000000e+00 : f32
    %333 = vector.broadcast %cst_97 : f32 to vector<2x384xf32>
    %334 = arith.addf %333, %332 : vector<2x384xf32>
    %335 = arith.divf %333, %334 : vector<2x384xf32>
    %336 = vector.extract_strided_slice %329 {offsets = [0, 384], sizes = [2, 128], strides = [1, 1]} : vector<2x512xf32> to vector<2x128xf32>
    %337 = math.tanh %336 : vector<2x128xf32>
    %338 = vector.extract_strided_slice %335 {offsets = [0, 0], sizes = [2, 128], strides = [1, 1]} : vector<2x384xf32> to vector<2x128xf32>
    %339 = vector.extract_strided_slice %335 {offsets = [0, 128], sizes = [2, 128], strides = [1, 1]} : vector<2x384xf32> to vector<2x128xf32>
    %340 = vector.extract_strided_slice %335 {offsets = [0, 256], sizes = [2, 128], strides = [1, 1]} : vector<2x384xf32> to vector<2x128xf32>
    %341 = arith.mulf %339, %322 : vector<2x128xf32>
    %342 = arith.mulf %338, %337 : vector<2x128xf32>
    %343 = arith.addf %341, %342 : vector<2x128xf32>
    %344 = math.tanh %343 : vector<2x128xf32>
    %345 = arith.mulf %340, %344 : vector<2x128xf32>
    %c0_98 = arith.constant 0 : index
    %c0_99 = arith.constant 0 : index
    %346 = vector.load %arg15[%c0_98, %c0_99] : memref<16x128xf32, #tpu.memory_space<vmem>>, vector<2x128xf32>
    tpu.vector_store %arg15[%c0_98, %c0_99], %345 {strides = array<i32>} : memref<16x128xf32, #tpu.memory_space<vmem>>, vector<2x128xf32>,
    %347 = arith.truncf %177 : vector<2x128xf32> to vector<2x128xbf16>
    %c0_100 = arith.constant 0 : index
    %c0_101 = arith.constant 0 : index
    %348 = vector.load %arg5[%c0_100, %c0_101] : memref<128x7xbf16, #tpu.memory_space<vmem>>, vector<128x7xbf16>
    %cst_102 = arith.constant dense<0.000000e+00> : vector<2x7xf32>
    %349 = tpu.matmul %347, %348, %cst_102 {dimension_numbers = #tpu.dot_dimension_numbers<[1], [0], [0], [1], [0, 0, 1, 1], [], []>} : vector<2x128xbf16>, vector<128x7xbf16>, vector<2x7xf32> -> vector<2x7xf32>
    %350 = arith.truncf %345 : vector<2x128xf32> to vector<2x128xbf16>
    %c0_103 = arith.constant 0 : index
    %c0_104 = arith.constant 0 : index
    %351 = vector.load %arg6[%c0_103, %c0_104] : memref<128x7xbf16, #tpu.memory_space<vmem>>, vector<128x7xbf16>
    %cst_105 = arith.constant dense<0.000000e+00> : vector<2x7xf32>
    %352 = tpu.matmul %350, %351, %cst_105 {dimension_numbers = #tpu.dot_dimension_numbers<[1], [0], [0], [1], [0, 0, 1, 1], [], []>} : vector<2x128xbf16>, vector<128x7xbf16>, vector<2x7xf32> -> vector<2x7xf32>
    %353 = arith.addf %349, %352 : vector<2x7xf32>
    %c0_106 = arith.constant 0 : index
    %c0_107 = arith.constant 0 : index
    %354 = vector.load %arg7[%c0_106, %c0_107] : memref<1x7xf32, #tpu.memory_space<vmem>>, vector<1x7xf32>
    %355 = vector.broadcast %354 : vector<1x7xf32> to vector<2x7xf32>
    %356 = arith.addf %353, %355 : vector<2x7xf32>
    %c0_108 = arith.constant 0 : index
    %c0_109 = arith.constant 0 : index
    %357 = vector.load %arg11[%c0_108, %c0_109] : memref<2x7xf32, #tpu.memory_space<vmem>>, vector<2x7xf32>
    tpu.vector_store %arg11[%c0_108, %c0_109], %356 {strides = array<i32>} : memref<2x7xf32, #tpu.memory_space<vmem>>, vector<2x7xf32>,
    %c0_110 = arith.constant 0 : index
    %c0_111 = arith.constant 0 : index
    %358 = vector.load %arg14[%c0_110, %c0_111] : memref<16x128xf32, #tpu.memory_space<vmem>>, vector<16x128xf32>
    %359 = arith.truncf %358 : vector<16x128xf32> to vector<16x128xbf16>
    %c0_112 = arith.constant 0 : index
    %c0_113 = arith.constant 0 : index
    %360 = vector.load %arg8[%c0_112, %c0_113] : memref<128x9xbf16, #tpu.memory_space<vmem>>, vector<128x9xbf16>
    %cst_114 = arith.constant dense<0.000000e+00> : vector<16x9xf32>
    %361 = tpu.matmul %359, %360, %cst_114 {dimension_numbers = #tpu.dot_dimension_numbers<[1], [0], [0], [1], [0, 0, 1, 1], [], []>} : vector<16x128xbf16>, vector<128x9xbf16>, vector<16x9xf32> -> vector<16x9xf32>
    %c0_115 = arith.constant 0 : index
    %c0_116 = arith.constant 0 : index
    %362 = vector.load %arg15[%c0_115, %c0_116] : memref<16x128xf32, #tpu.memory_space<vmem>>, vector<16x128xf32>
    %363 = arith.truncf %362 : vector<16x128xf32> to vector<16x128xbf16>
    %c0_117 = arith.constant 0 : index
    %c0_118 = arith.constant 0 : index
    %364 = vector.load %arg9[%c0_117, %c0_118] : memref<128x9xbf16, #tpu.memory_space<vmem>>, vector<128x9xbf16>
    %cst_119 = arith.constant dense<0.000000e+00> : vector<16x9xf32>
    %365 = tpu.matmul %363, %364, %cst_119 {dimension_numbers = #tpu.dot_dimension_numbers<[1], [0], [0], [1], [0, 0, 1, 1], [], []>} : vector<16x128xbf16>, vector<128x9xbf16>, vector<16x9xf32> -> vector<16x9xf32>
    %366 = arith.addf %361, %365 : vector<16x9xf32>
    %c0_120 = arith.constant 0 : index
    %c0_121 = arith.constant 0 : index
    %367 = vector.load %arg10[%c0_120, %c0_121] : memref<1x9xf32, #tpu.memory_space<vmem>>, vector<1x9xf32>
    %368 = vector.broadcast %367 : vector<1x9xf32> to vector<16x9xf32>
    %369 = arith.addf %366, %368 : vector<16x9xf32>
    %c0_122 = arith.constant 0 : index
    %c0_123 = arith.constant 0 : index
    %370 = vector.load %arg12[%c0_122, %c0_123] : memref<16x9xf32, #tpu.memory_space<vmem>>, vector<16x9xf32>
    tpu.vector_store %arg12[%c0_122, %c0_123], %369 {strides = array<i32>} : memref<16x9xf32, #tpu.memory_space<vmem>>, vector<16x9xf32>,
    return
  }
}

</mosaic_0001>

<llo_original>
// kernel: tpu_custom_call.1
$region0: #{tpu_custom_call.1}
  #allocation0 [shape = 'u32[]', space=smem, size = 0x4, offset = 0x4, fixed_abs, tag = 'smem constant byte address 0x4 - core index']
  #allocation1 [shape = 'u32[144,128]{1,0:T(1,128)}', space=vmem, size = 0x12000, scoped, tag = 'internal scratch']
  #allocation2 [shape = 'f32[16,1024]{1,0:T(8,128)}', space=vmem, size = 0x10000, scoped, tag = 'scratch operand']
  #allocation3 [shape = 'f32[16,128]{1,0:T(8,128)}', space=vmem, size = 0x2000, scoped, tag = 'scratch operand']
  #allocation4 [shape = 'f32[16,128]{1,0:T(8,128)}', space=vmem, size = 0x2000, scoped, tag = 'scratch operand']
  %s0 = inlined_call_operand.vmem [shape: f32[16,128], index: 0, kind: input, shape index: {}]
  %s1 = inlined_call_operand.hbm [shape: bf16[128,1024], index: 1, kind: input, shape index: {}]
  %s2 = inlined_call_operand.hbm [shape: f32[1,1024], index: 2, kind: input, shape index: {}]
  %s3 = inlined_call_operand.vmem [shape: bf16[128,512], index: 3, kind: input, shape index: {}]
  %s4 = inlined_call_operand.hbm [shape: bf16[128,512], index: 4, kind: input, shape index: {}]
  %s5 = inlined_call_operand.vmem [shape: bf16[128,7], index: 5, kind: input, shape index: {}]
  %s6 = inlined_call_operand.vmem [shape: bf16[128,7], index: 6, kind: input, shape index: {}]
  %s7 = inlined_call_operand.vmem [shape: f32[1,7], index: 7, kind: input, shape index: {}]
  %s8 = inlined_call_operand.vmem [shape: bf16[128,9], index: 8, kind: input, shape index: {}]
  %s9 = inlined_call_operand.vmem [shape: bf16[128,9], index: 9, kind: input, shape index: {}]
  %s10 = inlined_call_operand.vmem [shape: f32[1,9], index: 10, kind: input, shape index: {}]
  %s11 = inlined_call_operand.hbm [shape: f32[2,7], index: 11, kind: output, shape index: {0}]
  %s12 = inlined_call_operand.hbm [shape: f32[16,9], index: 12, kind: output, shape index: {1}]
  %13 = xla_tuple %s11, %s12
  %s14 = sld [smem:[#allocation0]]
  $region74: #{tpu_custom_call.1} parent=0
    _
  %s16 = ssub.s32 1, %s14
  %s17 = scalar_select 0, %s16, %s14
  $region1: #{tpu_custom_call.1} parent=0
    #allocation5 [shape = 'u8[262144]{0}', space=vmem, size = 0x40000, scoped, tag = 'input window, operand 1, single buffered']
    #allocation6 [shape = 's32[1]{0}', space=sflag, size = 0x4, scoped, tag = 'scoped memory for tpu_custom_call.1']
    #allocation7 [shape = 's32[1]{0}', space=sflag, size = 0x4, scoped, tag = 'scoped memory for tpu_custom_call.1']
    #allocation8 [shape = 'u8[4096]{0}', space=vmem, size = 0x1000, scoped, tag = 'input window, operand 2, single buffered']
    #allocation9 [shape = 's32[1]{0}', space=sflag, size = 0x4, scoped, tag = 'scoped memory for tpu_custom_call.1']
    #allocation10 [shape = 'u8[131072]{0}', space=vmem, size = 0x20000, scoped, tag = 'input window, operand 4, single buffered']
    #allocation11 [shape = 'u8[1024]{0}', space=vmem, size = 0x400, scoped, tag = 'output window, operand 0, single buffered']
    #allocation12 [shape = 'u8[8192]{0}', space=vmem, size = 0x2000, scoped, tag = 'output window, operand 1, single buffered']
    #allocation13 [shape = 's32[1]{0}', space=sflag, size = 0x4, scoped, tag = 'scoped memory for tpu_custom_call.1']
    %18 = vsyncpa [#allocation6], 0
    %19 = vsyncpa [#allocation9], 0
    %20 = vsyncpa [#allocation7], 0
    %21 = vsyncpa [#allocation13], 0
    // Predicated region
    $region2: #{tpu_custom_call.1} parent=1 // pred_check
      _
    $region3: #{tpu_custom_call.1} parent=1 // pred_check_branch
      %23 = sbr.rel (0) target = $region5
    $region4: #{tpu_custom_call.1} parent=1 // pred_region
      _
    $region5: #{tpu_custom_call.1} parent=1 // pred_fallthru
      _
    // Predicated region
    $region6: #{tpu_custom_call.1} parent=1 // pred_check
      _
    $region7: #{tpu_custom_call.1} parent=1 // pred_check_branch
      %25 = sbr.rel (0) target = $region9
    $region8: #{tpu_custom_call.1} parent=1 // pred_region
      %s27 = ssub.s32 8192, 8192
      %28 = vsyncadd [#allocation6], %s27
      %s29 = sshll.u32 [#allocation5], 4
      %s30 = int_to_ptr.vmem [resolvable:$true] %s29
      %35 = dma.hbm_to_vmem [thread:$0]  %s1, 8192, %s30, [#allocation6], 512, 512, 32
    $region9: #{tpu_custom_call.1} parent=1 // pred_fallthru
      _
    // Predicated region
    $region10: #{tpu_custom_call.1} parent=1 // pred_check
      _
    $region11: #{tpu_custom_call.1} parent=1 // pred_check_branch
      %37 = sbr.rel (0) target = $region13
    $region12: #{tpu_custom_call.1} parent=1 // pred_region
      %s39 = ssub.s32 128, 128
      %40 = vsyncadd [#allocation9], %s39
      %s42 = sshll.u32 [#allocation8], 4
      %s43 = int_to_ptr.vmem [resolvable:$true] %s42
      %45 = dma.hbm_to_vmem [thread:$0]  %s2, 128, %s43, [#allocation9]
    $region13: #{tpu_custom_call.1} parent=1 // pred_fallthru
      _
    // Predicated region
    $region14: #{tpu_custom_call.1} parent=1 // pred_check
      _
    $region15: #{tpu_custom_call.1} parent=1 // pred_check_branch
      %47 = sbr.rel (0) target = $region17
    $region16: #{tpu_custom_call.1} parent=1 // pred_region
      _
    $region17: #{tpu_custom_call.1} parent=1 // pred_fallthru
      _
    // Predicated region
    $region18: #{tpu_custom_call.1} parent=1 // pred_check
      _
    $region19: #{tpu_custom_call.1} parent=1 // pred_check_branch
      %49 = sbr.rel (0) target = $region21
    $region20: #{tpu_custom_call.1} parent=1 // pred_region
      %s51 = ssub.s32 4096, 4096
      %52 = vsyncadd [#allocation9], %s51
      %s53 = sshll.u32 [#allocation10], 4
      %s54 = int_to_ptr.vmem [resolvable:$true] %s53
      %59 = dma.hbm_to_vmem [thread:$0]  %s4, 4096, %s54, [#allocation9], 256, 256, 16
    $region21: #{tpu_custom_call.1} parent=1 // pred_fallthru
      _
    // Predicated region
    $region22: #{tpu_custom_call.1} parent=1 // pred_check
      _
    $region23: #{tpu_custom_call.1} parent=1 // pred_check_branch
      %61 = sbr.rel (0) target = $region25
    $region24: #{tpu_custom_call.1} parent=1 // pred_region
      _
    $region25: #{tpu_custom_call.1} parent=1 // pred_fallthru
      _
    // Predicated region
    $region26: #{tpu_custom_call.1} parent=1 // pred_check
      _
    $region27: #{tpu_custom_call.1} parent=1 // pred_check_branch
      %63 = sbr.rel (0) target = $region29
    $region28: #{tpu_custom_call.1} parent=1 // pred_region
      _
    $region29: #{tpu_custom_call.1} parent=1 // pred_fallthru
      _
    // Predicated region
    $region30: #{tpu_custom_call.1} parent=1 // pred_check
      _
    $region31: #{tpu_custom_call.1} parent=1 // pred_check_branch
      %65 = sbr.rel (0) target = $region33
    $region32: #{tpu_custom_call.1} parent=1 // pred_region
      _
    $region33: #{tpu_custom_call.1} parent=1 // pred_fallthru
      _
    // Predicated region
    $region34: #{tpu_custom_call.1} parent=1 // pred_check
      _
    $region35: #{tpu_custom_call.1} parent=1 // pred_check_branch
      %67 = sbr.rel (0) target = $region37
    $region36: #{tpu_custom_call.1} parent=1 // pred_region
      _
    $region37: #{tpu_custom_call.1} parent=1 // pred_fallthru
      _
    // Predicated region
    $region38: #{tpu_custom_call.1} parent=1 // pred_check
      _
    $region39: #{tpu_custom_call.1} parent=1 // pred_check_branch
      %69 = sbr.rel (0) target = $region41
    $region40: #{tpu_custom_call.1} parent=1 // pred_region
      _
    $region41: #{tpu_custom_call.1} parent=1 // pred_fallthru
      _
    // Predicated region
    $region42: #{tpu_custom_call.1} parent=1 // pred_check
      _
    $region43: #{tpu_custom_call.1} parent=1 // pred_check_branch
      %71 = sbr.rel (0) target = $region45
    $region44: #{tpu_custom_call.1} parent=1 // pred_region
      _
    $region45: #{tpu_custom_call.1} parent=1 // pred_fallthru
      _
    // Predicated region
    $region46: #{tpu_custom_call.1} parent=1 // pred_check
      _
    $region47: #{tpu_custom_call.1} parent=1 // pred_check_branch
      %73 = sbr.rel (0) target = $region49
    $region48: #{tpu_custom_call.1} parent=1 // pred_region
      %74 = dma.done [#allocation6], 8192
    $region49: #{tpu_custom_call.1} parent=1 // pred_fallthru
      _
    // Predicated region
    $region50: #{tpu_custom_call.1} parent=1 // pred_check
      _
    $region51: #{tpu_custom_call.1} parent=1 // pred_check_branch
      %76 = sbr.rel (0) target = $region53
    $region52: #{tpu_custom_call.1} parent=1 // pred_region
      %77 = dma.done [#allocation9], 128
    $region53: #{tpu_custom_call.1} parent=1 // pred_fallthru
      _
    // Predicated region
    $region54: #{tpu_custom_call.1} parent=1 // pred_check
      _
    $region55: #{tpu_custom_call.1} parent=1 // pred_check_branch
      %79 = sbr.rel (0) target = $region57
    $region56: #{tpu_custom_call.1} parent=1 // pred_region
      %80 = dma.done [#allocation9], 4096
    $region57: #{tpu_custom_call.1} parent=1 // pred_fallthru
      _
    %v82 = vld [vmem:[%s0] sm:$0xff]
    %v83 = vld [vmem:[%s0 + $0x8] sm:$0xff]
    %v84 = vpack.c.bf16 %v83, %v82
    %v85 = vld [vmem:[#allocation5] sm:$0xff]
    %v86 = vld [vmem:[#allocation5 + $0x8] sm:$0xff]
    %v87 = vld [vmem:[#allocation5 + $0x10] sm:$0xff]
    %v88 = vld [vmem:[#allocation5 + $0x18] sm:$0xff]
    %v89 = vld [vmem:[#allocation5 + $0x20] sm:$0xff]
    %v90 = vld [vmem:[#allocation5 + $0x28] sm:$0xff]
    %v91 = vld [vmem:[#allocation5 + $0x30] sm:$0xff]
    %v92 = vld [vmem:[#allocation5 + $0x38] sm:$0xff]
    %v93 = vld [vmem:[#allocation5 + $0x40] sm:$0xff]
    %v94 = vld [vmem:[#allocation5 + $0x48] sm:$0xff]
    %v95 = vld [vmem:[#allocation5 + $0x50] sm:$0xff]
    %v96 = vld [vmem:[#allocation5 + $0x58] sm:$0xff]
    %v97 = vld [vmem:[#allocation5 + $0x60] sm:$0xff]
    %v98 = vld [vmem:[#allocation5 + $0x68] sm:$0xff]
    %v99 = vld [vmem:[#allocation5 + $0x70] sm:$0xff]
    %v100 = vld [vmem:[#allocation5 + $0x78] sm:$0xff]
    %v101 = vld [vmem:[#allocation5 + $0x80] sm:$0xff]
    %v102 = vld [vmem:[#allocation5 + $0x88] sm:$0xff]
    %v103 = vld [vmem:[#allocation5 + $0x90] sm:$0xff]
    %v104 = vld [vmem:[#allocation5 + $0x98] sm:$0xff]
    %v105 = vld [vmem:[#allocation5 + $0xa0] sm:$0xff]
    %v106 = vld [vmem:[#allocation5 + $0xa8] sm:$0xff]
    %v107 = vld [vmem:[#allocation5 + $0xb0] sm:$0xff]
    %v108 = vld [vmem:[#allocation5 + $0xb8] sm:$0xff]
    %v109 = vld [vmem:[#allocation5 + $0xc0] sm:$0xff]
    %v110 = vld [vmem:[#allocation5 + $0xc8] sm:$0xff]
    %v111 = vld [vmem:[#allocation5 + $0xd0] sm:$0xff]
    %v112 = vld [vmem:[#allocation5 + $0xd8] sm:$0xff]
    %v113 = vld [vmem:[#allocation5 + $0xe0] sm:$0xff]
    %v114 = vld [vmem:[#allocation5 + $0xe8] sm:$0xff]
    %v115 = vld [vmem:[#allocation5 + $0xf0] sm:$0xff]
    %v116 = vld [vmem:[#allocation5 + $0xf8] sm:$0xff]
    %v117 = vld [vmem:[#allocation5 + $0x100] sm:$0xff]
    %v118 = vld [vmem:[#allocation5 + $0x108] sm:$0xff]
    %v119 = vld [vmem:[#allocation5 + $0x110] sm:$0xff]
    %v120 = vld [vmem:[#allocation5 + $0x118] sm:$0xff]
    %v121 = vld [vmem:[#allocation5 + $0x120] sm:$0xff]
    %v122 = vld [vmem:[#allocation5 + $0x128] sm:$0xff]
    %v123 = vld [vmem:[#allocation5 + $0x130] sm:$0xff]
    %v124 = vld [vmem:[#allocation5 + $0x138] sm:$0xff]
    %v125 = vld [vmem:[#allocation5 + $0x140] sm:$0xff]
    %v126 = vld [vmem:[#allocation5 + $0x148] sm:$0xff]
    %v127 = vld [vmem:[#allocation5 + $0x150] sm:$0xff]
    %v128 = vld [vmem:[#allocation5 + $0x158] sm:$0xff]
    %v129 = vld [vmem:[#allocation5 + $0x160] sm:$0xff]
    %v130 = vld [vmem:[#allocation5 + $0x168] sm:$0xff]
    %v131 = vld [vmem:[#allocation5 + $0x170] sm:$0xff]
    %v132 = vld [vmem:[#allocation5 + $0x178] sm:$0xff]
    %v133 = vld [vmem:[#allocation5 + $0x180] sm:$0xff]
    %v134 = vld [vmem:[#allocation5 + $0x188] sm:$0xff]
    %v135 = vld [vmem:[#allocation5 + $0x190] sm:$0xff]
    %v136 = vld [vmem:[#allocation5 + $0x198] sm:$0xff]
    %v137 = vld [vmem:[#allocation5 + $0x1a0] sm:$0xff]
    %v138 = vld [vmem:[#allocation5 + $0x1a8] sm:$0xff]
    %v139 = vld [vmem:[#allocation5 + $0x1b0] sm:$0xff]
    %v140 = vld [vmem:[#allocation5 + $0x1b8] sm:$0xff]
    %v141 = vld [vmem:[#allocation5 + $0x1c0] sm:$0xff]
    %v142 = vld [vmem:[#allocation5 + $0x1c8] sm:$0xff]
    %v143 = vld [vmem:[#allocation5 + $0x1d0] sm:$0xff]
    %v144 = vld [vmem:[#allocation5 + $0x1d8] sm:$0xff]
    %v145 = vld [vmem:[#allocation5 + $0x1e0] sm:$0xff]
    %v146 = vld [vmem:[#allocation5 + $0x1e8] sm:$0xff]
    %v147 = vld [vmem:[#allocation5 + $0x1f0] sm:$0xff]
    %v148 = vld [vmem:[#allocation5 + $0x1f8] sm:$0xff]
    %v149 = vld [vmem:[#allocation8] sm:$0xff]
    %v151 = vlaneseq
    %v152 = vshrl.u32 %v151, 7
    %v153 = vsub.s32 0, %v152
    %v154 = vrot.slane %v149, %v153
    %v155 = vlaneseq
    %v156 = vshrl.u32 %v155, 7
    %v157 = vsub.s32 1, %v156
    %v158 = vrot.slane %v149, %v157
    %v159 = vlaneseq
    %v160 = vshrl.u32 %v159, 7
    %v161 = vsub.s32 2, %v160
    %v162 = vrot.slane %v149, %v161
    %v163 = vlaneseq
    %v164 = vshrl.u32 %v163, 7
    %v165 = vsub.s32 3, %v164
    %v166 = vrot.slane %v149, %v165
    %v167 = vlaneseq
    %v168 = vshrl.u32 %v167, 7
    %v169 = vsub.s32 4, %v168
    %v170 = vrot.slane %v149, %v169
    %v171 = vlaneseq
    %v172 = vshrl.u32 %v171, 7
    %v173 = vsub.s32 5, %v172
    %v174 = vrot.slane %v149, %v173
    %v175 = vlaneseq
    %v176 = vshrl.u32 %v175, 7
    %v177 = vsub.s32 6, %v176
    %v178 = vrot.slane %v149, %v177
    %v179 = vlaneseq
    %v180 = vshrl.u32 %v179, 7
    %v181 = vsub.s32 7, %v180
    %v182 = vrot.slane %v149, %v181
    %v255 = vunpack.c.l.b16 %v85
    %v256 = vunpack.c.h.b16 %v85
    %v257 = vunpack.c.l.b16 %v86
    %v258 = vunpack.c.h.b16 %v86
    %v259 = vunpack.c.l.b16 %v87
    %v260 = vunpack.c.h.b16 %v87
    %v261 = vunpack.c.l.b16 %v88
    %v262 = vunpack.c.h.b16 %v88
    %v263 = vunpack.c.l.b16 %v89
    %v264 = vunpack.c.h.b16 %v89
    %v265 = vunpack.c.l.b16 %v90
    %v266 = vunpack.c.h.b16 %v90
    %v267 = vunpack.c.l.b16 %v91
    %v268 = vunpack.c.h.b16 %v91
    %v269 = vunpack.c.l.b16 %v92
    %v270 = vunpack.c.h.b16 %v92
    %v271 = vunpack.c.l.b16 %v93
    %v272 = vunpack.c.h.b16 %v93
    %v273 = vunpack.c.l.b16 %v94
    %v274 = vunpack.c.h.b16 %v94
    %v275 = vunpack.c.l.b16 %v95
    %v276 = vunpack.c.h.b16 %v95
    %v277 = vunpack.c.l.b16 %v96
    %v278 = vunpack.c.h.b16 %v96
    %v279 = vunpack.c.l.b16 %v97
    %v280 = vunpack.c.h.b16 %v97
    %v281 = vunpack.c.l.b16 %v98
    %v282 = vunpack.c.h.b16 %v98
    %v283 = vunpack.c.l.b16 %v99
    %v284 = vunpack.c.h.b16 %v99
    %v285 = vunpack.c.l.b16 %v100
    %v286 = vunpack.c.h.b16 %v100
    %v287 = vunpack.c.l.b16 %v101
    %v288 = vunpack.c.h.b16 %v101
    %v289 = vunpack.c.l.b16 %v102
    %v290 = vunpack.c.h.b16 %v102
    %v291 = vunpack.c.l.b16 %v103
    %v292 = vunpack.c.h.b16 %v103
    %v293 = vunpack.c.l.b16 %v104
    %v294 = vunpack.c.h.b16 %v104
    %v295 = vunpack.c.l.b16 %v105
    %v296 = vunpack.c.h.b16 %v105
    %v297 = vunpack.c.l.b16 %v106
    %v298 = vunpack.c.h.b16 %v106
    %v299 = vunpack.c.l.b16 %v107
    %v300 = vunpack.c.h.b16 %v107
    %v301 = vunpack.c.l.b16 %v108
    %v302 = vunpack.c.h.b16 %v108
    %v303 = vunpack.c.l.b16 %v109
    %v304 = vunpack.c.h.b16 %v109
    %v305 = vunpack.c.l.b16 %v110
    %v306 = vunpack.c.h.b16 %v110
    %v307 = vunpack.c.l.b16 %v111
    %v308 = vunpack.c.h.b16 %v111
    %v309 = vunpack.c.l.b16 %v112
    %v310 = vunpack.c.h.b16 %v112
    %v311 = vunpack.c.l.b16 %v113
    %v312 = vunpack.c.h.b16 %v113
    %v313 = vunpack.c.l.b16 %v114
    %v314 = vunpack.c.h.b16 %v114
    %v315 = vunpack.c.l.b16 %v115
    %v316 = vunpack.c.h.b16 %v115
    %v317 = vunpack.c.l.b16 %v116
    %v318 = vunpack.c.h.b16 %v116
    %v319 = vunpack.c.l.b16 %v117
    %v320 = vunpack.c.h.b16 %v117
    %v321 = vunpack.c.l.b16 %v118
    %v322 = vunpack.c.h.b16 %v118
    %v323 = vunpack.c.l.b16 %v119
    %v324 = vunpack.c.h.b16 %v119
    %v325 = vunpack.c.l.b16 %v120
    %v326 = vunpack.c.h.b16 %v120
    %v327 = vunpack.c.l.b16 %v121
    %v328 = vunpack.c.h.b16 %v121
    %v329 = vunpack.c.l.b16 %v122
    %v330 = vunpack.c.h.b16 %v122
    %v331 = vunpack.c.l.b16 %v123
    %v332 = vunpack.c.h.b16 %v123
    %v333 = vunpack.c.l.b16 %v124
    %v334 = vunpack.c.h.b16 %v124
    %v335 = vunpack.c.l.b16 %v125
    %v336 = vunpack.c.h.b16 %v125
    %v337 = vunpack.c.l.b16 %v126
    %v338 = vunpack.c.h.b16 %v126
    %v339 = vunpack.c.l.b16 %v127
    %v340 = vunpack.c.h.b16 %v127
    %v341 = vunpack.c.l.b16 %v128
    %v342 = vunpack.c.h.b16 %v128
    %v343 = vunpack.c.l.b16 %v129
    %v344 = vunpack.c.h.b16 %v129
    %v345 = vunpack.c.l.b16 %v130
    %v346 = vunpack.c.h.b16 %v130
    %v347 = vunpack.c.l.b16 %v131
    %v348 = vunpack.c.h.b16 %v131
    %v349 = vunpack.c.l.b16 %v132
    %v350 = vunpack.c.h.b16 %v132
    %v351 = vunpack.c.l.b16 %v133
    %v352 = vunpack.c.h.b16 %v133
    %v353 = vunpack.c.l.b16 %v134
    %v354 = vunpack.c.h.b16 %v134
    %v355 = vunpack.c.l.b16 %v135
    %v356 = vunpack.c.h.b16 %v135
    %v357 = vunpack.c.l.b16 %v136
    %v358 = vunpack.c.h.b16 %v136
    %v359 = vunpack.c.l.b16 %v137
    %v360 = vunpack.c.h.b16 %v137
    %v361 = vunpack.c.l.b16 %v138
    %v362 = vunpack.c.h.b16 %v138
    %v363 = vunpack.c.l.b16 %v139
    %v364 = vunpack.c.h.b16 %v139
    %v365 = vunpack.c.l.b16 %v140
    %v366 = vunpack.c.h.b16 %v140
    %v367 = vunpack.c.l.b16 %v141
    %v368 = vunpack.c.h.b16 %v141
    %v369 = vunpack.c.l.b16 %v142
    %v370 = vunpack.c.h.b16 %v142
    %v371 = vunpack.c.l.b16 %v143
    %v372 = vunpack.c.h.b16 %v143
    %v373 = vunpack.c.l.b16 %v144
    %v374 = vunpack.c.h.b16 %v144
    %v375 = vunpack.c.l.b16 %v145
    %v376 = vunpack.c.h.b16 %v145
    %v377 = vunpack.c.l.b16 %v146
    %v378 = vunpack.c.h.b16 %v146
    %v379 = vunpack.c.l.b16 %v147
    %v380 = vunpack.c.h.b16 %v147
    %v381 = vunpack.c.l.b16 %v148
    %v382 = vunpack.c.h.b16 %v148
    %v383 = vpack.c.b16 %v263, %v255
    %v384 = vpack.c.b16 %v264, %v256
    %v385 = vpack.c.b16 %v265, %v257
    %v386 = vpack.c.b16 %v266, %v258
    %v387 = vpack.c.b16 %v267, %v259
    %v388 = vpack.c.b16 %v268, %v260
    %v389 = vpack.c.b16 %v269, %v261
    %v390 = vpack.c.b16 %v270, %v262
    %v391 = vpack.c.b16 %v279, %v271
    %v392 = vpack.c.b16 %v280, %v272
    %v393 = vpack.c.b16 %v281, %v273
    %v394 = vpack.c.b16 %v282, %v274
    %v395 = vpack.c.b16 %v283, %v275
    %v396 = vpack.c.b16 %v284, %v276
    %v397 = vpack.c.b16 %v285, %v277
    %v398 = vpack.c.b16 %v286, %v278
    %v399 = vpack.c.b16 %v295, %v287
    %v400 = vpack.c.b16 %v296, %v288
    %v401 = vpack.c.b16 %v297, %v289
    %v402 = vpack.c.b16 %v298, %v290
    %v403 = vpack.c.b16 %v299, %v291
    %v404 = vpack.c.b16 %v300, %v292
    %v405 = vpack.c.b16 %v301, %v293
    %v406 = vpack.c.b16 %v302, %v294
    %v407 = vpack.c.b16 %v311, %v303
    %v408 = vpack.c.b16 %v312, %v304
    %v409 = vpack.c.b16 %v313, %v305
    %v410 = vpack.c.b16 %v314, %v306
    %v411 = vpack.c.b16 %v315, %v307
    %v412 = vpack.c.b16 %v316, %v308
    %v413 = vpack.c.b16 %v317, %v309
    %v414 = vpack.c.b16 %v318, %v310
    %v415 = vpack.c.b16 %v327, %v319
    %v416 = vpack.c.b16 %v328, %v320
    %v417 = vpack.c.b16 %v329, %v321
    %v418 = vpack.c.b16 %v330, %v322
    %v419 = vpack.c.b16 %v331, %v323
    %v420 = vpack.c.b16 %v332, %v324
    %v421 = vpack.c.b16 %v333, %v325
    %v422 = vpack.c.b16 %v334, %v326
    %v423 = vpack.c.b16 %v343, %v335
    %v424 = vpack.c.b16 %v344, %v336
    %v425 = vpack.c.b16 %v345, %v337
    %v426 = vpack.c.b16 %v346, %v338
    %v427 = vpack.c.b16 %v347, %v339
    %v428 = vpack.c.b16 %v348, %v340
    %v429 = vpack.c.b16 %v349, %v341
    %v430 = vpack.c.b16 %v350, %v342
    %v431 = vpack.c.b16 %v359, %v351
    %v432 = vpack.c.b16 %v360, %v352
    %v433 = vpack.c.b16 %v361, %v353
    %v434 = vpack.c.b16 %v362, %v354
    %v435 = vpack.c.b16 %v363, %v355
    %v436 = vpack.c.b16 %v364, %v356
    %v437 = vpack.c.b16 %v365, %v357
    %v438 = vpack.c.b16 %v366, %v358
    %v439 = vpack.c.b16 %v375, %v367
    %v440 = vpack.c.b16 %v376, %v368
    %v441 = vpack.c.b16 %v377, %v369
    %v442 = vpack.c.b16 %v378, %v370
    %v443 = vpack.c.b16 %v379, %v371
    %v444 = vpack.c.b16 %v380, %v372
    %v445 = vpack.c.b16 %v381, %v373
    %v446 = vpack.c.b16 %v382, %v374
    %511 = vmatprep.subr.bf16.mxu0 %v440
    %512 = vmatpush1.bf16.msra.mxu0 %v439
    %513 = vmatprep.subr.bf16.mxu0 %v432
    %514 = vmatpush1.bf16.msra.mxu0 %v431
    %515 = vmatprep.subr.bf16.mxu0 %v424
    %516 = vmatpush1.bf16.msra.mxu0 %v423
    %517 = vmatprep.subr.bf16.mxu0 %v416
    %518 = vmatpush1.bf16.msra.mxu0 %v415
    %519 = vmatprep.subr.bf16.mxu0 %v408
    %520 = vmatpush1.bf16.msra.mxu0 %v407
    %521 = vmatprep.subr.bf16.mxu0 %v400
    %522 = vmatpush1.bf16.msra.mxu0 %v399
    %523 = vmatprep.subr.bf16.mxu0 %v392
    %524 = vmatpush1.bf16.msra.mxu0 %v391
    %525 = vmatprep.subr.bf16.mxu0 %v384
    %526 = vmatpush1.bf16.msra.mxu0 %v383
    %527 = vmatprep.subr.bf16.mxu0 0
    %528 = vmatpush2.bf16.msra.mxu0 0
    %529 = vmatprep.subr.bf16.mxu0 0
    %530 = vmatpush2.bf16.msra.mxu0 0
    %531 = vmatprep.subr.bf16.mxu0 0
    %532 = vmatpush2.bf16.msra.mxu0 0
    %533 = vmatprep.subr.bf16.mxu0 0
    %534 = vmatpush2.bf16.msra.mxu0 0
    %535 = vmatprep.subr.bf16.mxu0 0
    %536 = vmatpush2.bf16.msra.mxu0 0
    %537 = vmatprep.subr.bf16.mxu0 0
    %538 = vmatpush2.bf16.msra.mxu0 0
    %539 = vmatprep.subr.bf16.mxu0 0
    %540 = vmatpush2.bf16.msra.mxu0 0
    %541 = vmatprep.subr.bf16.mxu0 0
    %542 = vmatpush2.bf16.msra.mxu0 0
    %543 = vmatprep.mubr.bf16.mxu0 0
    %544 = vmatmul.mubr.bf16.gmra.mxu0 %v84
    %v545 = vpop.f32.mrf.mxu0
    %v546 = vadd.f32 %v154, %v545
    %v547 = vpop.f32.mrf.mxu0
    %v548 = vadd.f32 %v158, %v547
    %v549 = vpop.f32.mrf.mxu0
    %v550 = vadd.f32 %v154, %v549
    %v551 = vpop.f32.mrf.mxu0
    %v552 = vadd.f32 %v158, %v551
    %553 = vdwg.mxu0
    %554 = vmatprep.subr.bf16.mxu0 %v442
    %555 = vmatpush1.bf16.msra.mxu0 %v441
    %556 = vmatprep.subr.bf16.mxu0 %v434
    %557 = vmatpush1.bf16.msra.mxu0 %v433
    %558 = vmatprep.subr.bf16.mxu0 %v426
    %559 = vmatpush1.bf16.msra.mxu0 %v425
    %560 = vmatprep.subr.bf16.mxu0 %v418
    %561 = vmatpush1.bf16.msra.mxu0 %v417
    %562 = vmatprep.subr.bf16.mxu0 %v410
    %563 = vmatpush1.bf16.msra.mxu0 %v409
    %564 = vmatprep.subr.bf16.mxu0 %v402
    %565 = vmatpush1.bf16.msra.mxu0 %v401
    %566 = vmatprep.subr.bf16.mxu0 %v394
    %567 = vmatpush1.bf16.msra.mxu0 %v393
    %568 = vmatprep.subr.bf16.mxu0 %v386
    %569 = vmatpush1.bf16.msra.mxu0 %v385
    %570 = vmatprep.subr.bf16.mxu0 0
    %571 = vmatpush2.bf16.msra.mxu0 0
    %572 = vmatprep.subr.bf16.mxu0 0
    %573 = vmatpush2.bf16.msra.mxu0 0
    %574 = vmatprep.subr.bf16.mxu0 0
    %575 = vmatpush2.bf16.msra.mxu0 0
    %576 = vmatprep.subr.bf16.mxu0 0
    %577 = vmatpush2.bf16.msra.mxu0 0
    %578 = vmatprep.subr.bf16.mxu0 0
    %579 = vmatpush2.bf16.msra.mxu0 0
    %580 = vmatprep.subr.bf16.mxu0 0
    %581 = vmatpush2.bf16.msra.mxu0 0
    %582 = vmatprep.subr.bf16.mxu0 0
    %583 = vmatpush2.bf16.msra.mxu0 0
    %584 = vmatprep.subr.bf16.mxu0 0
    %585 = vmatpush2.bf16.msra.mxu0 0
    %586 = vmatprep.mubr.bf16.mxu0 0
    %587 = vmatmul.mubr.bf16.gmra.mxu0 %v84
    %v588 = vpop.f32.mrf.mxu0
    %v589 = vadd.f32 %v162, %v588
    %v590 = vpop.f32.mrf.mxu0
    %v591 = vadd.f32 %v166, %v590
    %v592 = vpop.f32.mrf.mxu0
    %v593 = vadd.f32 %v162, %v592
    %v594 = vpop.f32.mrf.mxu0
    %v595 = vadd.f32 %v166, %v594
    %596 = vdwg.mxu0
    %597 = vmatprep.subr.bf16.mxu0 %v444
    %598 = vmatpush1.bf16.msra.mxu0 %v443
    %599 = vmatprep.subr.bf16.mxu0 %v436
    %600 = vmatpush1.bf16.msra.mxu0 %v435
    %601 = vmatprep.subr.bf16.mxu0 %v428
    %602 = vmatpush1.bf16.msra.mxu0 %v427
    %603 = vmatprep.subr.bf16.mxu0 %v420
    %604 = vmatpush1.bf16.msra.mxu0 %v419
    %605 = vmatprep.subr.bf16.mxu0 %v412
    %606 = vmatpush1.bf16.msra.mxu0 %v411
    %607 = vmatprep.subr.bf16.mxu0 %v404
    %608 = vmatpush1.bf16.msra.mxu0 %v403
    %609 = vmatprep.subr.bf16.mxu0 %v396
    %610 = vmatpush1.bf16.msra.mxu0 %v395
    %611 = vmatprep.subr.bf16.mxu0 %v388
    %612 = vmatpush1.bf16.msra.mxu0 %v387
    %613 = vmatprep.subr.bf16.mxu0 0
    %614 = vmatpush2.bf16.msra.mxu0 0
    %615 = vmatprep.subr.bf16.mxu0 0
    %616 = vmatpush2.bf16.msra.mxu0 0
    %617 = vmatprep.subr.bf16.mxu0 0
    %618 = vmatpush2.bf16.msra.mxu0 0
    %619 = vmatprep.subr.bf16.mxu0 0
    %620 = vmatpush2.bf16.msra.mxu0 0
    %621 = vmatprep.subr.bf16.mxu0 0
    %622 = vmatpush2.bf16.msra.mxu0 0
    %623 = vmatprep.subr.bf16.mxu0 0
    %624 = vmatpush2.bf16.msra.mxu0 0
    %625 = vmatprep.subr.bf16.mxu0 0
    %626 = vmatpush2.bf16.msra.mxu0 0
    %627 = vmatprep.subr.bf16.mxu0 0
    %628 = vmatpush2.bf16.msra.mxu0 0
    %629 = vmatprep.mubr.bf16.mxu0 0
    %630 = vmatmul.mubr.bf16.gmra.mxu0 %v84
    %v631 = vpop.f32.mrf.mxu0
    %v632 = vadd.f32 %v170, %v631
    %v633 = vpop.f32.mrf.mxu0
    %v634 = vadd.f32 %v174, %v633
    %v635 = vpop.f32.mrf.mxu0
    %v636 = vadd.f32 %v170, %v635
    %v637 = vpop.f32.mrf.mxu0
    %v638 = vadd.f32 %v174, %v637
    %639 = vdwg.mxu0
    %640 = vmatprep.subr.bf16.mxu0 %v446
    %641 = vmatpush1.bf16.msra.mxu0 %v445
    %642 = vmatprep.subr.bf16.mxu0 %v438
    %643 = vmatpush1.bf16.msra.mxu0 %v437
    %644 = vmatprep.subr.bf16.mxu0 %v430
    %645 = vmatpush1.bf16.msra.mxu0 %v429
    %646 = vmatprep.subr.bf16.mxu0 %v422
    %647 = vmatpush1.bf16.msra.mxu0 %v421
    %648 = vmatprep.subr.bf16.mxu0 %v414
    %649 = vmatpush1.bf16.msra.mxu0 %v413
    %650 = vmatprep.subr.bf16.mxu0 %v406
    %651 = vmatpush1.bf16.msra.mxu0 %v405
    %652 = vmatprep.subr.bf16.mxu0 %v398
    %653 = vmatpush1.bf16.msra.mxu0 %v397
    %654 = vmatprep.subr.bf16.mxu0 %v390
    %655 = vmatpush1.bf16.msra.mxu0 %v389
    %656 = vmatprep.subr.bf16.mxu0 0
    %657 = vmatpush2.bf16.msra.mxu0 0
    %658 = vmatprep.subr.bf16.mxu0 0
    %659 = vmatpush2.bf16.msra.mxu0 0
    %660 = vmatprep.subr.bf16.mxu0 0
    %661 = vmatpush2.bf16.msra.mxu0 0
    %662 = vmatprep.subr.bf16.mxu0 0
    %663 = vmatpush2.bf16.msra.mxu0 0
    %664 = vmatprep.subr.bf16.mxu0 0
    %665 = vmatpush2.bf16.msra.mxu0 0
    %666 = vmatprep.subr.bf16.mxu0 0
    %667 = vmatpush2.bf16.msra.mxu0 0
    %668 = vmatprep.subr.bf16.mxu0 0
    %669 = vmatpush2.bf16.msra.mxu0 0
    %670 = vmatprep.subr.bf16.mxu0 0
    %671 = vmatpush2.bf16.msra.mxu0 0
    %672 = vmatprep.mubr.bf16.mxu0 0
    %673 = vmatmul.mubr.bf16.gmra.mxu0 %v84
    %v674 = vpop.f32.mrf.mxu0
    %v675 = vadd.f32 %v178, %v674
    %v676 = vpop.f32.mrf.mxu0
    %v677 = vadd.f32 %v182, %v676
    %v678 = vpop.f32.mrf.mxu0
    %v679 = vadd.f32 %v178, %v678
    %v680 = vpop.f32.mrf.mxu0
    %v681 = vadd.f32 %v182, %v680
    %682 = vdwg.mxu0
    %683 = vst [vmem:[#allocation2] sm:$0xff] %v546
    %684 = vst [vmem:[#allocation2 + $0x8] sm:$0xff] %v548
    %685 = vst [vmem:[#allocation2 + $0x10] sm:$0xff] %v589
    %686 = vst [vmem:[#allocation2 + $0x18] sm:$0xff] %v591
    %687 = vst [vmem:[#allocation2 + $0x20] sm:$0xff] %v632
    %688 = vst [vmem:[#allocation2 + $0x28] sm:$0xff] %v634
    %689 = vst [vmem:[#allocation2 + $0x30] sm:$0xff] %v675
    %690 = vst [vmem:[#allocation2 + $0x38] sm:$0xff] %v677
    %691 = vst [vmem:[#allocation2 + $0x40] sm:$0xff] %v550
    %692 = vst [vmem:[#allocation2 + $0x48] sm:$0xff] %v552
    %693 = vst [vmem:[#allocation2 + $0x50] sm:$0xff] %v593
    %694 = vst [vmem:[#allocation2 + $0x58] sm:$0xff] %v595
    %695 = vst [vmem:[#allocation2 + $0x60] sm:$0xff] %v636
    %696 = vst [vmem:[#allocation2 + $0x68] sm:$0xff] %v638
    %697 = vst [vmem:[#allocation2 + $0x70] sm:$0xff] %v679
    %698 = vst [vmem:[#allocation2 + $0x78] sm:$0xff] %v681
    %v699 = vld [vmem:[%s3] sm:$0xff]
    %v700 = vld [vmem:[%s3 + $0x8] sm:$0xff]
    %v701 = vld [vmem:[%s3 + $0x10] sm:$0xff]
    %v702 = vld [vmem:[%s3 + $0x18] sm:$0xff]
    %v703 = vld [vmem:[%s3 + $0x20] sm:$0xff]
    %v704 = vld [vmem:[%s3 + $0x28] sm:$0xff]
    %v705 = vld [vmem:[%s3 + $0x30] sm:$0xff]
    %v706 = vld [vmem:[%s3 + $0x38] sm:$0xff]
    %v707 = vld [vmem:[%s3 + $0x40] sm:$0xff]
    %v708 = vld [vmem:[%s3 + $0x48] sm:$0xff]
    %v709 = vld [vmem:[%s3 + $0x50] sm:$0xff]
    %v710 = vld [vmem:[%s3 + $0x58] sm:$0xff]
    %v711 = vld [vmem:[%s3 + $0x60] sm:$0xff]
    %v712 = vld [vmem:[%s3 + $0x68] sm:$0xff]
    %v713 = vld [vmem:[%s3 + $0x70] sm:$0xff]
    %v714 = vld [vmem:[%s3 + $0x78] sm:$0xff]
    %v715 = vld [vmem:[%s3 + $0x80] sm:$0xff]
    %v716 = vld [vmem:[%s3 + $0x88] sm:$0xff]
    %v717 = vld [vmem:[%s3 + $0x90] sm:$0xff]
    %v718 = vld [vmem:[%s3 + $0x98] sm:$0xff]
    %v719 = vld [vmem:[%s3 + $0xa0] sm:$0xff]
    %v720 = vld [vmem:[%s3 + $0xa8] sm:$0xff]
    %v721 = vld [vmem:[%s3 + $0xb0] sm:$0xff]
    %v722 = vld [vmem:[%s3 + $0xb8] sm:$0xff]
    %v723 = vld [vmem:[%s3 + $0xc0] sm:$0xff]
    %v724 = vld [vmem:[%s3 + $0xc8] sm:$0xff]
    %v725 = vld [vmem:[%s3 + $0xd0] sm:$0xff]
    %v726 = vld [vmem:[%s3 + $0xd8] sm:$0xff]
    %v727 = vld [vmem:[%s3 + $0xe0] sm:$0xff]
    %v728 = vld [vmem:[%s3 + $0xe8] sm:$0xff]
    %v729 = vld [vmem:[%s3 + $0xf0] sm:$0xff]
    %v730 = vld [vmem:[%s3 + $0xf8] sm:$0xff]
    %v731 = vld [vmem:[#allocation10] sm:$0xff]
    %v732 = vld [vmem:[#allocation10 + $0x8] sm:$0xff]
    %v733 = vld [vmem:[#allocation10 + $0x10] sm:$0xff]
    %v734 = vld [vmem:[#allocation10 + $0x18] sm:$0xff]
    %v735 = vld [vmem:[#allocation10 + $0x20] sm:$0xff]
    %v736 = vld [vmem:[#allocation10 + $0x28] sm:$0xff]
    %v737 = vld [vmem:[#allocation10 + $0x30] sm:$0xff]
    %v738 = vld [vmem:[#allocation10 + $0x38] sm:$0xff]
    %v739 = vld [vmem:[#allocation10 + $0x40] sm:$0xff]
    %v740 = vld [vmem:[#allocation10 + $0x48] sm:$0xff]
    %v741 = vld [vmem:[#allocation10 + $0x50] sm:$0xff]
    %v742 = vld [vmem:[#allocation10 + $0x58] sm:$0xff]
    %v743 = vld [vmem:[#allocation10 + $0x60] sm:$0xff]
    %v744 = vld [vmem:[#allocation10 + $0x68] sm:$0xff]
    %v745 = vld [vmem:[#allocation10 + $0x70] sm:$0xff]
    %v746 = vld [vmem:[#allocation10 + $0x78] sm:$0xff]
    %v747 = vld [vmem:[#allocation10 + $0x80] sm:$0xff]
    %v748 = vld [vmem:[#allocation10 + $0x88] sm:$0xff]
    %v749 = vld [vmem:[#allocation10 + $0x90] sm:$0xff]
    %v750 = vld [vmem:[#allocation10 + $0x98] sm:$0xff]
    %v751 = vld [vmem:[#allocation10 + $0xa0] sm:$0xff]
    %v752 = vld [vmem:[#allocation10 + $0xa8] sm:$0xff]
    %v753 = vld [vmem:[#allocation10 + $0xb0] sm:$0xff]
    %v754 = vld [vmem:[#allocation10 + $0xb8] sm:$0xff]
    %v755 = vld [vmem:[#allocation10 + $0xc0] sm:$0xff]
    %v756 = vld [vmem:[#allocation10 + $0xc8] sm:$0xff]
    %v757 = vld [vmem:[#allocation10 + $0xd0] sm:$0xff]
    %v758 = vld [vmem:[#allocation10 + $0xd8] sm:$0xff]
    %v759 = vld [vmem:[#allocation10 + $0xe0] sm:$0xff]
    %v760 = vld [vmem:[#allocation10 + $0xe8] sm:$0xff]
    %v761 = vld [vmem:[#allocation10 + $0xf0] sm:$0xff]
    %v762 = vld [vmem:[#allocation10 + $0xf8] sm:$0xff]
    %v763 = vld [vmem:[#allocation2] sm:$0x3]
    %v764 = vld [vmem:[#allocation2 + $0x8] sm:$0x3]
    %v765 = vld [vmem:[#allocation2 + $0x10] sm:$0x3]
    %v766 = vld [vmem:[#allocation2 + $0x18] sm:$0x3]
    %v799 = vunpack.c.l.b16 %v699
    %v800 = vunpack.c.h.b16 %v699
    %v801 = vunpack.c.l.b16 %v700
    %v802 = vunpack.c.h.b16 %v700
    %v803 = vunpack.c.l.b16 %v701
    %v804 = vunpack.c.h.b16 %v701
    %v805 = vunpack.c.l.b16 %v702
    %v806 = vunpack.c.h.b16 %v702
    %v807 = vunpack.c.l.b16 %v703
    %v808 = vunpack.c.h.b16 %v703
    %v809 = vunpack.c.l.b16 %v704
    %v810 = vunpack.c.h.b16 %v704
    %v811 = vunpack.c.l.b16 %v705
    %v812 = vunpack.c.h.b16 %v705
    %v813 = vunpack.c.l.b16 %v706
    %v814 = vunpack.c.h.b16 %v706
    %v815 = vunpack.c.l.b16 %v707
    %v816 = vunpack.c.h.b16 %v707
    %v817 = vunpack.c.l.b16 %v708
    %v818 = vunpack.c.h.b16 %v708
    %v819 = vunpack.c.l.b16 %v709
    %v820 = vunpack.c.h.b16 %v709
    %v821 = vunpack.c.l.b16 %v710
    %v822 = vunpack.c.h.b16 %v710
    %v823 = vunpack.c.l.b16 %v711
    %v824 = vunpack.c.h.b16 %v711
    %v825 = vunpack.c.l.b16 %v712
    %v826 = vunpack.c.h.b16 %v712
    %v827 = vunpack.c.l.b16 %v713
    %v828 = vunpack.c.h.b16 %v713
    %v829 = vunpack.c.l.b16 %v714
    %v830 = vunpack.c.h.b16 %v714
    %v831 = vunpack.c.l.b16 %v715
    %v832 = vunpack.c.h.b16 %v715
    %v833 = vunpack.c.l.b16 %v716
    %v834 = vunpack.c.h.b16 %v716
    %v835 = vunpack.c.l.b16 %v717
    %v836 = vunpack.c.h.b16 %v717
    %v837 = vunpack.c.l.b16 %v718
    %v838 = vunpack.c.h.b16 %v718
    %v839 = vunpack.c.l.b16 %v719
    %v840 = vunpack.c.h.b16 %v719
    %v841 = vunpack.c.l.b16 %v720
    %v842 = vunpack.c.h.b16 %v720
    %v843 = vunpack.c.l.b16 %v721
    %v844 = vunpack.c.h.b16 %v721
    %v845 = vunpack.c.l.b16 %v722
    %v846 = vunpack.c.h.b16 %v722
    %v847 = vunpack.c.l.b16 %v723
    %v848 = vunpack.c.h.b16 %v723
    %v849 = vunpack.c.l.b16 %v724
    %v850 = vunpack.c.h.b16 %v724
    %v851 = vunpack.c.l.b16 %v725
    %v852 = vunpack.c.h.b16 %v725
    %v853 = vunpack.c.l.b16 %v726
    %v854 = vunpack.c.h.b16 %v726
    %v855 = vunpack.c.l.b16 %v727
    %v856 = vunpack.c.h.b16 %v727
    %v857 = vunpack.c.l.b16 %v728
    %v858 = vunpack.c.h.b16 %v728
    %v859 = vunpack.c.l.b16 %v729
    %v860 = vunpack.c.h.b16 %v729
    %v861 = vunpack.c.l.b16 %v730
    %v862 = vunpack.c.h.b16 %v730
    %v863 = vpack.c.b16 %v803, %v799
    %v864 = vpack.c.b16 %v804, %v800
    %v865 = vpack.c.b16 %v805, %v801
    %v866 = vpack.c.b16 %v806, %v802
    %v867 = vpack.c.b16 %v811, %v807
    %v868 = vpack.c.b16 %v812, %v808
    %v869 = vpack.c.b16 %v813, %v809
    %v870 = vpack.c.b16 %v814, %v810
    %v871 = vpack.c.b16 %v819, %v815
    %v872 = vpack.c.b16 %v820, %v816
    %v873 = vpack.c.b16 %v821, %v817
    %v874 = vpack.c.b16 %v822, %v818
    %v875 = vpack.c.b16 %v827, %v823
    %v876 = vpack.c.b16 %v828, %v824
    %v877 = vpack.c.b16 %v829, %v825
    %v878 = vpack.c.b16 %v830, %v826
    %v879 = vpack.c.b16 %v835, %v831
    %v880 = vpack.c.b16 %v836, %v832
    %v881 = vpack.c.b16 %v837, %v833
    %v882 = vpack.c.b16 %v838, %v834
    %v883 = vpack.c.b16 %v843, %v839
    %v884 = vpack.c.b16 %v844, %v840
    %v885 = vpack.c.b16 %v845, %v841
    %v886 = vpack.c.b16 %v846, %v842
    %v887 = vpack.c.b16 %v851, %v847
    %v888 = vpack.c.b16 %v852, %v848
    %v889 = vpack.c.b16 %v853, %v849
    %v890 = vpack.c.b16 %v854, %v850
    %v891 = vpack.c.b16 %v859, %v855
    %v892 = vpack.c.b16 %v860, %v856
    %v893 = vpack.c.b16 %v861, %v857
    %v894 = vpack.c.b16 %v862, %v858
    %927 = vmatprep.subr.bf16.mxu0 %v892
    %928 = vmatpush1.bf16.msra.mxu0 %v891
    %929 = vmatprep.subr.bf16.mxu0 %v888
    %930 = vmatpush1.bf16.msra.mxu0 %v887
    %931 = vmatprep.subr.bf16.mxu0 %v884
    %932 = vmatpush1.bf16.msra.mxu0 %v883
    %933 = vmatprep.subr.bf16.mxu0 %v880
    %934 = vmatpush1.bf16.msra.mxu0 %v879
    %935 = vmatprep.subr.bf16.mxu0 %v876
    %936 = vmatpush1.bf16.msra.mxu0 %v875
    %937 = vmatprep.subr.bf16.mxu0 %v872
    %938 = vmatpush1.bf16.msra.mxu0 %v871
    %939 = vmatprep.subr.bf16.mxu0 %v868
    %940 = vmatpush1.bf16.msra.mxu0 %v867
    %941 = vmatprep.subr.bf16.mxu0 %v864
    %942 = vmatpush1.bf16.msra.mxu0 %v863
    %943 = vmatprep.subr.bf16.mxu0 0
    %944 = vmatpush2.bf16.msra.mxu0 0
    %945 = vmatprep.subr.bf16.mxu0 0
    %946 = vmatpush2.bf16.msra.mxu0 0
    %947 = vmatprep.subr.bf16.mxu0 0
    %948 = vmatpush2.bf16.msra.mxu0 0
    %949 = vmatprep.subr.bf16.mxu0 0
    %950 = vmatpush2.bf16.msra.mxu0 0
    %951 = vmatprep.subr.bf16.mxu0 0
    %952 = vmatpush2.bf16.msra.mxu0 0
    %953 = vmatprep.subr.bf16.mxu0 0
    %954 = vmatpush2.bf16.msra.mxu0 0
    %955 = vmatprep.subr.bf16.mxu0 0
    %956 = vmatpush2.bf16.msra.mxu0 0
    %957 = vmatprep.subr.bf16.mxu0 0
    %958 = vmatpush2.bf16.msra.mxu0 0
    %959 = vmatprep.mubr.bf16.mxu0 0
    %960 = vmatmul.mubr.bf16.gmra.mxu0 0
    %v961 = vpop.f32.mrf.mxu0
    %v962 = vadd.f32 0.0, %v961
    %v963 = vpop.f32.mrf.mxu0
    %v964 = vadd.f32 0.0, %v963
    %v965 = vpop.f32.mrf.mxu0
    %v966 = vpop.f32.mrf.mxu0
    %967 = vdwg.mxu0
    %968 = vmatprep.subr.bf16.mxu0 %v894
    %969 = vmatpush1.bf16.msra.mxu0 %v893
    %970 = vmatprep.subr.bf16.mxu0 %v890
    %971 = vmatpush1.bf16.msra.mxu0 %v889
    %972 = vmatprep.subr.bf16.mxu0 %v886
    %973 = vmatpush1.bf16.msra.mxu0 %v885
    %974 = vmatprep.subr.bf16.mxu0 %v882
    %975 = vmatpush1.bf16.msra.mxu0 %v881
    %976 = vmatprep.subr.bf16.mxu0 %v878
    %977 = vmatpush1.bf16.msra.mxu0 %v877
    %978 = vmatprep.subr.bf16.mxu0 %v874
    %979 = vmatpush1.bf16.msra.mxu0 %v873
    %980 = vmatprep.subr.bf16.mxu0 %v870
    %981 = vmatpush1.bf16.msra.mxu0 %v869
    %982 = vmatprep.subr.bf16.mxu0 %v866
    %983 = vmatpush1.bf16.msra.mxu0 %v865
    %984 = vmatprep.subr.bf16.mxu0 0
    %985 = vmatpush2.bf16.msra.mxu0 0
    %986 = vmatprep.subr.bf16.mxu0 0
    %987 = vmatpush2.bf16.msra.mxu0 0
    %988 = vmatprep.subr.bf16.mxu0 0
    %989 = vmatpush2.bf16.msra.mxu0 0
    %990 = vmatprep.subr.bf16.mxu0 0
    %991 = vmatpush2.bf16.msra.mxu0 0
    %992 = vmatprep.subr.bf16.mxu0 0
    %993 = vmatpush2.bf16.msra.mxu0 0
    %994 = vmatprep.subr.bf16.mxu0 0
    %995 = vmatpush2.bf16.msra.mxu0 0
    %996 = vmatprep.subr.bf16.mxu0 0
    %997 = vmatpush2.bf16.msra.mxu0 0
    %998 = vmatprep.subr.bf16.mxu0 0
    %999 = vmatpush2.bf16.msra.mxu0 0
    %1000 = vmatprep.mubr.bf16.mxu0 0
    %1001 = vmatmul.mubr.bf16.gmra.mxu0 0
    %v1002 = vpop.f32.mrf.mxu0
    %v1003 = vadd.f32 0.0, %v1002
    %v1004 = vpop.f32.mrf.mxu0
    %v1005 = vadd.f32 0.0, %v1004
    %v1006 = vpop.f32.mrf.mxu0
    %v1007 = vpop.f32.mrf.mxu0
    %1008 = vdwg.mxu0
    %v1009 = vadd.f32 %v763, %v962
    %v1010 = vadd.f32 %v764, %v964
    %v1011 = vadd.f32 %v765, %v1003
    %v1012 = vadd.f32 %v766, %v1005
    %v1013 = vxor.u32 %v1009, 2147483648
    %v1014 = vxor.u32 %v1010, 2147483648
    %v1015 = vxor.u32 %v1011, 2147483648
    %v1016 = vmul.f32 %v1013, 1.442695
    %v1017 = vpow.pop %v1016
    %v1018 = vmul.f32 %v1014, 1.442695
    %v1019 = vpow.pop %v1018
    %v1020 = vmul.f32 %v1015, 1.442695
    %v1021 = vpow.pop %v1020
    %v1022 = vadd.f32 %v1017, 1.0
    %v1023 = vadd.f32 %v1019, 1.0
    %v1024 = vadd.f32 %v1021, 1.0
    %v1025 = vrcp.pop %v1022
    %v1026 = vmul.f32 1.0, %v1025
    %v1027 = vrcp.pop %v1023
    %v1028 = vmul.f32 1.0, %v1027
    %v1029 = vrcp.pop %v1024
    %v1030 = vmul.f32 1.0, %v1029
    %v1031 = vtanh.pop %v1012
    %v1032 = vmul.f32 %v1028, 0.0
    %v1033 = vmul.f32 %v1026, %v1031
    %v1034 = vadd.f32 %v1032, %v1033
    %v1035 = vtanh.pop %v1034
    %v1036 = vmul.f32 %v1030, %v1035
    %1037 = vst [vmem:[#allocation3] sm:$0x3] %v1036
    %v1038 = vld [vmem:[#allocation2] sm:$0xc]
    %v1039 = vld [vmem:[#allocation2 + $0x8] sm:$0xc]
    %v1040 = vld [vmem:[#allocation2 + $0x10] sm:$0xc]
    %v1041 = vld [vmem:[#allocation2 + $0x18] sm:$0xc]
    %v1042 = vpack.c.bf16 %v1036, %v1036
    %1043 = vmatprep.subr.bf16.mxu0 %v892
    %1044 = vmatpush1.bf16.msra.mxu0 %v891
    %1045 = vmatprep.subr.bf16.mxu0 %v888
    %1046 = vmatpush1.bf16.msra.mxu0 %v887
    %1047 = vmatprep.subr.bf16.mxu0 %v884
    %1048 = vmatpush1.bf16.msra.mxu0 %v883
    %1049 = vmatprep.subr.bf16.mxu0 %v880
    %1050 = vmatpush1.bf16.msra.mxu0 %v879
    %1051 = vmatprep.subr.bf16.mxu0 %v876
    %1052 = vmatpush1.bf16.msra.mxu0 %v875
    %1053 = vmatprep.subr.bf16.mxu0 %v872
    %1054 = vmatpush1.bf16.msra.mxu0 %v871
    %1055 = vmatprep.subr.bf16.mxu0 %v868
    %1056 = vmatpush1.bf16.msra.mxu0 %v867
    %1057 = vmatprep.subr.bf16.mxu0 %v864
    %1058 = vmatpush1.bf16.msra.mxu0 %v863
    %1059 = vmatprep.subr.bf16.mxu0 0
    %1060 = vmatpush2.bf16.msra.mxu0 0
    %1061 = vmatprep.subr.bf16.mxu0 0
    %1062 = vmatpush2.bf16.msra.mxu0 0
    %1063 = vmatprep.subr.bf16.mxu0 0
    %1064 = vmatpush2.bf16.msra.mxu0 0
    %1065 = vmatprep.subr.bf16.mxu0 0
    %1066 = vmatpush2.bf16.msra.mxu0 0
    %1067 = vmatprep.subr.bf16.mxu0 0
    %1068 = vmatpush2.bf16.msra.mxu0 0
    %1069 = vmatprep.subr.bf16.mxu0 0
    %1070 = vmatpush2.bf16.msra.mxu0 0
    %1071 = vmatprep.subr.bf16.mxu0 0
    %1072 = vmatpush2.bf16.msra.mxu0 0
    %1073 = vmatprep.subr.bf16.mxu0 0
    %1074 = vmatpush2.bf16.msra.mxu0 0
    %1075 = vmatprep.mubr.bf16.mxu0 0
    %1076 = vmatmul.mubr.bf16.gmra.mxu0 %v1042
    %v1077 = vpop.f32.mrf.mxu0
    %v1078 = vadd.f32 0.0, %v1077
    %v1079 = vpop.f32.mrf.mxu0
    %v1080 = vadd.f32 0.0, %v1079
    %v1081 = vpop.f32.mrf.mxu0
    %v1082 = vpop.f32.mrf.mxu0
    %1083 = vdwg.mxu0
    %1084 = vmatprep.subr.bf16.mxu0 %v894
    %1085 = vmatpush1.bf16.msra.mxu0 %v893
    %1086 = vmatprep.subr.bf16.mxu0 %v890
    %1087 = vmatpush1.bf16.msra.mxu0 %v889
    %1088 = vmatprep.subr.bf16.mxu0 %v886
    %1089 = vmatpush1.bf16.msra.mxu0 %v885
    %1090 = vmatprep.subr.bf16.mxu0 %v882
    %1091 = vmatpush1.bf16.msra.mxu0 %v881
    %1092 = vmatprep.subr.bf16.mxu0 %v878
    %1093 = vmatpush1.bf16.msra.mxu0 %v877
    %1094 = vmatprep.subr.bf16.mxu0 %v874
    %1095 = vmatpush1.bf16.msra.mxu0 %v873
    %1096 = vmatprep.subr.bf16.mxu0 %v870
    %1097 = vmatpush1.bf16.msra.mxu0 %v869
    %1098 = vmatprep.subr.bf16.mxu0 %v866
    %1099 = vmatpush1.bf16.msra.mxu0 %v865
    %1100 = vmatprep.subr.bf16.mxu0 0
    %1101 = vmatpush2.bf16.msra.mxu0 0
    %1102 = vmatprep.subr.bf16.mxu0 0
    %1103 = vmatpush2.bf16.msra.mxu0 0
    %1104 = vmatprep.subr.bf16.mxu0 0
    %1105 = vmatpush2.bf16.msra.mxu0 0
    %1106 = vmatprep.subr.bf16.mxu0 0
    %1107 = vmatpush2.bf16.msra.mxu0 0
    %1108 = vmatprep.subr.bf16.mxu0 0
    %1109 = vmatpush2.bf16.msra.mxu0 0
    %1110 = vmatprep.subr.bf16.mxu0 0
    %1111 = vmatpush2.bf16.msra.mxu0 0
    %1112 = vmatprep.subr.bf16.mxu0 0
    %1113 = vmatpush2.bf16.msra.mxu0 0
    %1114 = vmatprep.subr.bf16.mxu0 0
    %1115 = vmatpush2.bf16.msra.mxu0 0
    %1116 = vmatprep.mubr.bf16.mxu0 0
    %1117 = vmatmul.mubr.bf16.gmra.mxu0 %v1042
    %v1118 = vpop.f32.mrf.mxu0
    %v1119 = vadd.f32 0.0, %v1118
    %v1120 = vpop.f32.mrf.mxu0
    %v1121 = vadd.f32 0.0, %v1120
    %v1122 = vpop.f32.mrf.mxu0
    %v1123 = vpop.f32.mrf.mxu0
    %1124 = vdwg.mxu0
    %v1129 = vrot.slane %v1078, 6
    %v1130 = vrot.slane %v1080, 6
    %v1131 = vrot.slane %v1119, 6
    %v1132 = vrot.slane %v1121, 6
    %v1137 = vadd.f32 %v1038, %v1129
    %v1138 = vadd.f32 %v1039, %v1130
    %v1139 = vadd.f32 %v1040, %v1131
    %v1140 = vadd.f32 %v1041, %v1132
    %v1141 = vxor.u32 %v1137, 2147483648
    %v1142 = vxor.u32 %v1138, 2147483648
    %v1143 = vxor.u32 %v1139, 2147483648
    %v1144 = vmul.f32 %v1141, 1.442695
    %v1145 = vpow.pop %v1144
    %v1146 = vmul.f32 %v1142, 1.442695
    %v1147 = vpow.pop %v1146
    %v1148 = vmul.f32 %v1143, 1.442695
    %v1149 = vpow.pop %v1148
    %v1150 = vadd.f32 %v1145, 1.0
    %v1151 = vadd.f32 %v1147, 1.0
    %v1152 = vadd.f32 %v1149, 1.0
    %v1153 = vrcp.pop %v1150
    %v1154 = vmul.f32 1.0, %v1153
    %v1155 = vrcp.pop %v1151
    %v1156 = vmul.f32 1.0, %v1155
    %v1157 = vrcp.pop %v1152
    %v1158 = vmul.f32 1.0, %v1157
    %v1159 = vtanh.pop %v1140
    %v1161 = vrot.slane %v1034, 6
    %v1163 = vmul.f32 %v1156, %v1161
    %v1164 = vmul.f32 %v1154, %v1159
    %v1165 = vadd.f32 %v1163, %v1164
    %v1166 = vtanh.pop %v1165
    %v1167 = vmul.f32 %v1158, %v1166
    %1168 = vst [vmem:[#allocation3] sm:$0xc] %v1167
    %v1169 = vld [vmem:[#allocation2] sm:$0x30]
    %v1170 = vld [vmem:[#allocation2 + $0x8] sm:$0x30]
    %v1171 = vld [vmem:[#allocation2 + $0x10] sm:$0x30]
    %v1172 = vld [vmem:[#allocation2 + $0x18] sm:$0x30]
    %v1173 = vpack.c.bf16 %v1167, %v1167
    %v1175 = vrot.slane %v1173, 1
    %1177 = vmatprep.subr.bf16.mxu0 %v892
    %1178 = vmatpush1.bf16.msra.mxu0 %v891
    %1179 = vmatprep.subr.bf16.mxu0 %v888
    %1180 = vmatpush1.bf16.msra.mxu0 %v887
    %1181 = vmatprep.subr.bf16.mxu0 %v884
    %1182 = vmatpush1.bf16.msra.mxu0 %v883
    %1183 = vmatprep.subr.bf16.mxu0 %v880
    %1184 = vmatpush1.bf16.msra.mxu0 %v879
    %1185 = vmatprep.subr.bf16.mxu0 %v876
    %1186 = vmatpush1.bf16.msra.mxu0 %v875
    %1187 = vmatprep.subr.bf16.mxu0 %v872
    %1188 = vmatpush1.bf16.msra.mxu0 %v871
    %1189 = vmatprep.subr.bf16.mxu0 %v868
    %1190 = vmatpush1.bf16.msra.mxu0 %v867
    %1191 = vmatprep.subr.bf16.mxu0 %v864
    %1192 = vmatpush1.bf16.msra.mxu0 %v863
    %1193 = vmatprep.subr.bf16.mxu0 0
    %1194 = vmatpush2.bf16.msra.mxu0 0
    %1195 = vmatprep.subr.bf16.mxu0 0
    %1196 = vmatpush2.bf16.msra.mxu0 0
    %1197 = vmatprep.subr.bf16.mxu0 0
    %1198 = vmatpush2.bf16.msra.mxu0 0
    %1199 = vmatprep.subr.bf16.mxu0 0
    %1200 = vmatpush2.bf16.msra.mxu0 0
    %1201 = vmatprep.subr.bf16.mxu0 0
    %1202 = vmatpush2.bf16.msra.mxu0 0
    %1203 = vmatprep.subr.bf16.mxu0 0
    %1204 = vmatpush2.bf16.msra.mxu0 0
    %1205 = vmatprep.subr.bf16.mxu0 0
    %1206 = vmatpush2.bf16.msra.mxu0 0
    %1207 = vmatprep.subr.bf16.mxu0 0
    %1208 = vmatpush2.bf16.msra.mxu0 0
    %1209 = vmatprep.mubr.bf16.mxu0 0
    %1210 = vmatmul.mubr.bf16.gmra.mxu0 %v1175
    %v1211 = vpop.f32.mrf.mxu0
    %v1212 = vadd.f32 0.0, %v1211
    %v1213 = vpop.f32.mrf.mxu0
    %v1214 = vadd.f32 0.0, %v1213
    %v1215 = vpop.f32.mrf.mxu0
    %v1216 = vpop.f32.mrf.mxu0
    %1217 = vdwg.mxu0
    %1218 = vmatprep.subr.bf16.mxu0 %v894
    %1219 = vmatpush1.bf16.msra.mxu0 %v893
    %1220 = vmatprep.subr.bf16.mxu0 %v890
    %1221 = vmatpush1.bf16.msra.mxu0 %v889
    %1222 = vmatprep.subr.bf16.mxu0 %v886
    %1223 = vmatpush1.bf16.msra.mxu0 %v885
    %1224 = vmatprep.subr.bf16.mxu0 %v882
    %1225 = vmatpush1.bf16.msra.mxu0 %v881
    %1226 = vmatprep.subr.bf16.mxu0 %v878
    %1227 = vmatpush1.bf16.msra.mxu0 %v877
    %1228 = vmatprep.subr.bf16.mxu0 %v874
    %1229 = vmatpush1.bf16.msra.mxu0 %v873
    %1230 = vmatprep.subr.bf16.mxu0 %v870
    %1231 = vmatpush1.bf16.msra.mxu0 %v869
    %1232 = vmatprep.subr.bf16.mxu0 %v866
    %1233 = vmatpush1.bf16.msra.mxu0 %v865
    %1234 = vmatprep.subr.bf16.mxu0 0
    %1235 = vmatpush2.bf16.msra.mxu0 0
    %1236 = vmatprep.subr.bf16.mxu0 0
    %1237 = vmatpush2.bf16.msra.mxu0 0
    %1238 = vmatprep.subr.bf16.mxu0 0
    %1239 = vmatpush2.bf16.msra.mxu0 0
    %1240 = vmatprep.subr.bf16.mxu0 0
    %1241 = vmatpush2.bf16.msra.mxu0 0
    %1242 = vmatprep.subr.bf16.mxu0 0
    %1243 = vmatpush2.bf16.msra.mxu0 0
    %1244 = vmatprep.subr.bf16.mxu0 0
    %1245 = vmatpush2.bf16.msra.mxu0 0
    %1246 = vmatprep.subr.bf16.mxu0 0
    %1247 = vmatpush2.bf16.msra.mxu0 0
    %1248 = vmatprep.subr.bf16.mxu0 0
    %1249 = vmatpush2.bf16.msra.mxu0 0
    %1250 = vmatprep.mubr.bf16.mxu0 0
    %1251 = vmatmul.mubr.bf16.gmra.mxu0 %v1175
    %v1252 = vpop.f32.mrf.mxu0
    %v1253 = vadd.f32 0.0, %v1252
    %v1254 = vpop.f32.mrf.mxu0
    %v1255 = vadd.f32 0.0, %v1254
    %v1256 = vpop.f32.mrf.mxu0
    %v1257 = vpop.f32.mrf.mxu0
    %1258 = vdwg.mxu0
    %v1263 = vrot.slane %v1212, 4
    %v1264 = vrot.slane %v1214, 4
    %v1265 = vrot.slane %v1253, 4
    %v1266 = vrot.slane %v1255, 4
    %v1271 = vadd.f32 %v1169, %v1263
    %v1272 = vadd.f32 %v1170, %v1264
    %v1273 = vadd.f32 %v1171, %v1265
    %v1274 = vadd.f32 %v1172, %v1266
    %v1275 = vxor.u32 %v1271, 2147483648
    %v1276 = vxor.u32 %v1272, 2147483648
    %v1277 = vxor.u32 %v1273, 2147483648
    %v1278 = vmul.f32 %v1275, 1.442695
    %v1279 = vpow.pop %v1278
    %v1280 = vmul.f32 %v1276, 1.442695
    %v1281 = vpow.pop %v1280
    %v1282 = vmul.f32 %v1277, 1.442695
    %v1283 = vpow.pop %v1282
    %v1284 = vadd.f32 %v1279, 1.0
    %v1285 = vadd.f32 %v1281, 1.0
    %v1286 = vadd.f32 %v1283, 1.0
    %v1287 = vrcp.pop %v1284
    %v1288 = vmul.f32 1.0, %v1287
    %v1289 = vrcp.pop %v1285
    %v1290 = vmul.f32 1.0, %v1289
    %v1291 = vrcp.pop %v1286
    %v1292 = vmul.f32 1.0, %v1291
    %v1293 = vtanh.pop %v1274
    %v1295 = vrot.slane %v1165, 6
    %v1297 = vmul.f32 %v1290, %v1295
    %v1298 = vmul.f32 %v1288, %v1293
    %v1299 = vadd.f32 %v1297, %v1298
    %v1300 = vtanh.pop %v1299
    %v1301 = vmul.f32 %v1292, %v1300
    %1302 = vst [vmem:[#allocation3] sm:$0x30] %v1301
    %v1303 = vld [vmem:[#allocation2] sm:$0xc0]
    %v1304 = vld [vmem:[#allocation2 + $0x8] sm:$0xc0]
    %v1305 = vld [vmem:[#allocation2 + $0x10] sm:$0xc0]
    %v1306 = vld [vmem:[#allocation2 + $0x18] sm:$0xc0]
    %v1307 = vpack.c.bf16 %v1301, %v1301
    %v1309 = vrot.slane %v1307, 2
    %1311 = vmatprep.subr.bf16.mxu0 %v892
    %1312 = vmatpush1.bf16.msra.mxu0 %v891
    %1313 = vmatprep.subr.bf16.mxu0 %v888
    %1314 = vmatpush1.bf16.msra.mxu0 %v887
    %1315 = vmatprep.subr.bf16.mxu0 %v884
    %1316 = vmatpush1.bf16.msra.mxu0 %v883
    %1317 = vmatprep.subr.bf16.mxu0 %v880
    %1318 = vmatpush1.bf16.msra.mxu0 %v879
    %1319 = vmatprep.subr.bf16.mxu0 %v876
    %1320 = vmatpush1.bf16.msra.mxu0 %v875
    %1321 = vmatprep.subr.bf16.mxu0 %v872
    %1322 = vmatpush1.bf16.msra.mxu0 %v871
    %1323 = vmatprep.subr.bf16.mxu0 %v868
    %1324 = vmatpush1.bf16.msra.mxu0 %v867
    %1325 = vmatprep.subr.bf16.mxu0 %v864
    %1326 = vmatpush1.bf16.msra.mxu0 %v863
    %1327 = vmatprep.subr.bf16.mxu0 0
    %1328 = vmatpush2.bf16.msra.mxu0 0
    %1329 = vmatprep.subr.bf16.mxu0 0
    %1330 = vmatpush2.bf16.msra.mxu0 0
    %1331 = vmatprep.subr.bf16.mxu0 0
    %1332 = vmatpush2.bf16.msra.mxu0 0
    %1333 = vmatprep.subr.bf16.mxu0 0
    %1334 = vmatpush2.bf16.msra.mxu0 0
    %1335 = vmatprep.subr.bf16.mxu0 0
    %1336 = vmatpush2.bf16.msra.mxu0 0
    %1337 = vmatprep.subr.bf16.mxu0 0
    %1338 = vmatpush2.bf16.msra.mxu0 0
    %1339 = vmatprep.subr.bf16.mxu0 0
    %1340 = vmatpush2.bf16.msra.mxu0 0
    %1341 = vmatprep.subr.bf16.mxu0 0
    %1342 = vmatpush2.bf16.msra.mxu0 0
    %1343 = vmatprep.mubr.bf16.mxu0 0
    %1344 = vmatmul.mubr.bf16.gmra.mxu0 %v1309
    %v1345 = vpop.f32.mrf.mxu0
    %v1346 = vadd.f32 0.0, %v1345
    %v1347 = vpop.f32.mrf.mxu0
    %v1348 = vadd.f32 0.0, %v1347
    %v1349 = vpop.f32.mrf.mxu0
    %v1350 = vpop.f32.mrf.mxu0
    %1351 = vdwg.mxu0
    %1352 = vmatprep.subr.bf16.mxu0 %v894
    %1353 = vmatpush1.bf16.msra.mxu0 %v893
    %1354 = vmatprep.subr.bf16.mxu0 %v890
    %1355 = vmatpush1.bf16.msra.mxu0 %v889
    %1356 = vmatprep.subr.bf16.mxu0 %v886
    %1357 = vmatpush1.bf16.msra.mxu0 %v885
    %1358 = vmatprep.subr.bf16.mxu0 %v882
    %1359 = vmatpush1.bf16.msra.mxu0 %v881
    %1360 = vmatprep.subr.bf16.mxu0 %v878
    %1361 = vmatpush1.bf16.msra.mxu0 %v877
    %1362 = vmatprep.subr.bf16.mxu0 %v874
    %1363 = vmatpush1.bf16.msra.mxu0 %v873
    %1364 = vmatprep.subr.bf16.mxu0 %v870
    %1365 = vmatpush1.bf16.msra.mxu0 %v869
    %1366 = vmatprep.subr.bf16.mxu0 %v866
    %1367 = vmatpush1.bf16.msra.mxu0 %v865
    %1368 = vmatprep.subr.bf16.mxu0 0
    %1369 = vmatpush2.bf16.msra.mxu0 0
    %1370 = vmatprep.subr.bf16.mxu0 0
    %1371 = vmatpush2.bf16.msra.mxu0 0
    %1372 = vmatprep.subr.bf16.mxu0 0
    %1373 = vmatpush2.bf16.msra.mxu0 0
    %1374 = vmatprep.subr.bf16.mxu0 0
    %1375 = vmatpush2.bf16.msra.mxu0 0
    %1376 = vmatprep.subr.bf16.mxu0 0
    %1377 = vmatpush2.bf16.msra.mxu0 0
    %1378 = vmatprep.subr.bf16.mxu0 0
    %1379 = vmatpush2.bf16.msra.mxu0 0
    %1380 = vmatprep.subr.bf16.mxu0 0
    %1381 = vmatpush2.bf16.msra.mxu0 0
    %1382 = vmatprep.subr.bf16.mxu0 0
    %1383 = vmatpush2.bf16.msra.mxu0 0
    %1384 = vmatprep.mubr.bf16.mxu0 0
    %1385 = vmatmul.mubr.bf16.gmra.mxu0 %v1309
    %v1386 = vpop.f32.mrf.mxu0
    %v1387 = vadd.f32 0.0, %v1386
    %v1388 = vpop.f32.mrf.mxu0
    %v1389 = vadd.f32 0.0, %v1388
    %v1390 = vpop.f32.mrf.mxu0
    %v1391 = vpop.f32.mrf.mxu0
    %1392 = vdwg.mxu0
    %v1397 = vrot.slane %v1346, 2
    %v1398 = vrot.slane %v1348, 2
    %v1399 = vrot.slane %v1387, 2
    %v1400 = vrot.slane %v1389, 2
    %v1405 = vadd.f32 %v1303, %v1397
    %v1406 = vadd.f32 %v1304, %v1398
    %v1407 = vadd.f32 %v1305, %v1399
    %v1408 = vadd.f32 %v1306, %v1400
    %v1409 = vxor.u32 %v1405, 2147483648
    %v1410 = vxor.u32 %v1406, 2147483648
    %v1411 = vxor.u32 %v1407, 2147483648
    %v1412 = vmul.f32 %v1409, 1.442695
    %v1413 = vpow.pop %v1412
    %v1414 = vmul.f32 %v1410, 1.442695
    %v1415 = vpow.pop %v1414
    %v1416 = vmul.f32 %v1411, 1.442695
    %v1417 = vpow.pop %v1416
    %v1418 = vadd.f32 %v1413, 1.0
    %v1419 = vadd.f32 %v1415, 1.0
    %v1420 = vadd.f32 %v1417, 1.0
    %v1421 = vrcp.pop %v1418
    %v1422 = vmul.f32 1.0, %v1421
    %v1423 = vrcp.pop %v1419
    %v1424 = vmul.f32 1.0, %v1423
    %v1425 = vrcp.pop %v1420
    %v1426 = vmul.f32 1.0, %v1425
    %v1427 = vtanh.pop %v1408
    %v1429 = vrot.slane %v1299, 6
    %v1431 = vmul.f32 %v1424, %v1429
    %v1432 = vmul.f32 %v1422, %v1427
    %v1433 = vadd.f32 %v1431, %v1432
    %v1434 = vtanh.pop %v1433
    %v1435 = vmul.f32 %v1426, %v1434
    %1436 = vst [vmem:[#allocation3] sm:$0xc0] %v1435
    %v1437 = vld [vmem:[#allocation2 + $0x40] sm:$0x3]
    %v1438 = vld [vmem:[#allocation2 + $0x48] sm:$0x3]
    %v1439 = vld [vmem:[#allocation2 + $0x50] sm:$0x3]
    %v1440 = vld [vmem:[#allocation2 + $0x58] sm:$0x3]
    %v1441 = vpack.c.bf16 %v1435, %v1435
    %v1443 = vrot.slane %v1441, 3
    %1445 = vmatprep.subr.bf16.mxu0 %v892
    %1446 = vmatpush1.bf16.msra.mxu0 %v891
    %1447 = vmatprep.subr.bf16.mxu0 %v888
    %1448 = vmatpush1.bf16.msra.mxu0 %v887
    %1449 = vmatprep.subr.bf16.mxu0 %v884
    %1450 = vmatpush1.bf16.msra.mxu0 %v883
    %1451 = vmatprep.subr.bf16.mxu0 %v880
    %1452 = vmatpush1.bf16.msra.mxu0 %v879
    %1453 = vmatprep.subr.bf16.mxu0 %v876
    %1454 = vmatpush1.bf16.msra.mxu0 %v875
    %1455 = vmatprep.subr.bf16.mxu0 %v872
    %1456 = vmatpush1.bf16.msra.mxu0 %v871
    %1457 = vmatprep.subr.bf16.mxu0 %v868
    %1458 = vmatpush1.bf16.msra.mxu0 %v867
    %1459 = vmatprep.subr.bf16.mxu0 %v864
    %1460 = vmatpush1.bf16.msra.mxu0 %v863
    %1461 = vmatprep.subr.bf16.mxu0 0
    %1462 = vmatpush2.bf16.msra.mxu0 0
    %1463 = vmatprep.subr.bf16.mxu0 0
    %1464 = vmatpush2.bf16.msra.mxu0 0
    %1465 = vmatprep.subr.bf16.mxu0 0
    %1466 = vmatpush2.bf16.msra.mxu0 0
    %1467 = vmatprep.subr.bf16.mxu0 0
    %1468 = vmatpush2.bf16.msra.mxu0 0
    %1469 = vmatprep.subr.bf16.mxu0 0
    %1470 = vmatpush2.bf16.msra.mxu0 0
    %1471 = vmatprep.subr.bf16.mxu0 0
    %1472 = vmatpush2.bf16.msra.mxu0 0
    %1473 = vmatprep.subr.bf16.mxu0 0
    %1474 = vmatpush2.bf16.msra.mxu0 0
    %1475 = vmatprep.subr.bf16.mxu0 0
    %1476 = vmatpush2.bf16.msra.mxu0 0
    %1477 = vmatprep.mubr.bf16.mxu0 0
    %1478 = vmatmul.mubr.bf16.gmra.mxu0 %v1443
    %v1479 = vpop.f32.mrf.mxu0
    %v1480 = vadd.f32 0.0, %v1479
    %v1481 = vpop.f32.mrf.mxu0
    %v1482 = vadd.f32 0.0, %v1481
    %v1483 = vpop.f32.mrf.mxu0
    %v1484 = vpop.f32.mrf.mxu0
    %1485 = vdwg.mxu0
    %1486 = vmatprep.subr.bf16.mxu0 %v894
    %1487 = vmatpush1.bf16.msra.mxu0 %v893
    %1488 = vmatprep.subr.bf16.mxu0 %v890
    %1489 = vmatpush1.bf16.msra.mxu0 %v889
    %1490 = vmatprep.subr.bf16.mxu0 %v886
    %1491 = vmatpush1.bf16.msra.mxu0 %v885
    %1492 = vmatprep.subr.bf16.mxu0 %v882
    %1493 = vmatpush1.bf16.msra.mxu0 %v881
    %1494 = vmatprep.subr.bf16.mxu0 %v878
    %1495 = vmatpush1.bf16.msra.mxu0 %v877
    %1496 = vmatprep.subr.bf16.mxu0 %v874
    %1497 = vmatpush1.bf16.msra.mxu0 %v873
    %1498 = vmatprep.subr.bf16.mxu0 %v870
    %1499 = vmatpush1.bf16.msra.mxu0 %v869
    %1500 = vmatprep.subr.bf16.mxu0 %v866
    %1501 = vmatpush1.bf16.msra.mxu0 %v865
    %1502 = vmatprep.subr.bf16.mxu0 0
    %1503 = vmatpush2.bf16.msra.mxu0 0
    %1504 = vmatprep.subr.bf16.mxu0 0
    %1505 = vmatpush2.bf16.msra.mxu0 0
    %1506 = vmatprep.subr.bf16.mxu0 0
    %1507 = vmatpush2.bf16.msra.mxu0 0
    %1508 = vmatprep.subr.bf16.mxu0 0
    %1509 = vmatpush2.bf16.msra.mxu0 0
    %1510 = vmatprep.subr.bf16.mxu0 0
    %1511 = vmatpush2.bf16.msra.mxu0 0
    %1512 = vmatprep.subr.bf16.mxu0 0
    %1513 = vmatpush2.bf16.msra.mxu0 0
    %1514 = vmatprep.subr.bf16.mxu0 0
    %1515 = vmatpush2.bf16.msra.mxu0 0
    %1516 = vmatprep.subr.bf16.mxu0 0
    %1517 = vmatpush2.bf16.msra.mxu0 0
    %1518 = vmatprep.mubr.bf16.mxu0 0
    %1519 = vmatmul.mubr.bf16.gmra.mxu0 %v1443
    %v1520 = vpop.f32.mrf.mxu0
    %v1521 = vadd.f32 0.0, %v1520
    %v1522 = vpop.f32.mrf.mxu0
    %v1523 = vadd.f32 0.0, %v1522
    %v1524 = vpop.f32.mrf.mxu0
    %v1525 = vpop.f32.mrf.mxu0
    %1526 = vdwg.mxu0
    %v1527 = vadd.f32 %v1437, %v1480
    %v1528 = vadd.f32 %v1438, %v1482
    %v1529 = vadd.f32 %v1439, %v1521
    %v1530 = vadd.f32 %v1440, %v1523
    %v1531 = vxor.u32 %v1527, 2147483648
    %v1532 = vxor.u32 %v1528, 2147483648
    %v1533 = vxor.u32 %v1529, 2147483648
    %v1534 = vmul.f32 %v1531, 1.442695
    %v1535 = vpow.pop %v1534
    %v1536 = vmul.f32 %v1532, 1.442695
    %v1537 = vpow.pop %v1536
    %v1538 = vmul.f32 %v1533, 1.442695
    %v1539 = vpow.pop %v1538
    %v1540 = vadd.f32 %v1535, 1.0
    %v1541 = vadd.f32 %v1537, 1.0
    %v1542 = vadd.f32 %v1539, 1.0
    %v1543 = vrcp.pop %v1540
    %v1544 = vmul.f32 1.0, %v1543
    %v1545 = vrcp.pop %v1541
    %v1546 = vmul.f32 1.0, %v1545
    %v1547 = vrcp.pop %v1542
    %v1548 = vmul.f32 1.0, %v1547
    %v1549 = vtanh.pop %v1530
    %v1551 = vrot.slane %v1433, 6
    %v1553 = vmul.f32 %v1546, %v1551
    %v1554 = vmul.f32 %v1544, %v1549
    %v1555 = vadd.f32 %v1553, %v1554
    %v1556 = vtanh.pop %v1555
    %v1557 = vmul.f32 %v1548, %v1556
    %1558 = vst [vmem:[#allocation3 + $0x8] sm:$0x3] %v1557
    %v1559 = vld [vmem:[#allocation2 + $0x40] sm:$0xc]
    %v1560 = vld [vmem:[#allocation2 + $0x48] sm:$0xc]
    %v1561 = vld [vmem:[#allocation2 + $0x50] sm:$0xc]
    %v1562 = vld [vmem:[#allocation2 + $0x58] sm:$0xc]
    %v1563 = vpack.c.bf16 %v1557, %v1557
    %1564 = vmatprep.subr.bf16.mxu0 %v892
    %1565 = vmatpush1.bf16.msra.mxu0 %v891
    %1566 = vmatprep.subr.bf16.mxu0 %v888
    %1567 = vmatpush1.bf16.msra.mxu0 %v887
    %1568 = vmatprep.subr.bf16.mxu0 %v884
    %1569 = vmatpush1.bf16.msra.mxu0 %v883
    %1570 = vmatprep.subr.bf16.mxu0 %v880
    %1571 = vmatpush1.bf16.msra.mxu0 %v879
    %1572 = vmatprep.subr.bf16.mxu0 %v876
    %1573 = vmatpush1.bf16.msra.mxu0 %v875
    %1574 = vmatprep.subr.bf16.mxu0 %v872
    %1575 = vmatpush1.bf16.msra.mxu0 %v871
    %1576 = vmatprep.subr.bf16.mxu0 %v868
    %1577 = vmatpush1.bf16.msra.mxu0 %v867
    %1578 = vmatprep.subr.bf16.mxu0 %v864
    %1579 = vmatpush1.bf16.msra.mxu0 %v863
    %1580 = vmatprep.subr.bf16.mxu0 0
    %1581 = vmatpush2.bf16.msra.mxu0 0
    %1582 = vmatprep.subr.bf16.mxu0 0
    %1583 = vmatpush2.bf16.msra.mxu0 0
    %1584 = vmatprep.subr.bf16.mxu0 0
    %1585 = vmatpush2.bf16.msra.mxu0 0
    %1586 = vmatprep.subr.bf16.mxu0 0
    %1587 = vmatpush2.bf16.msra.mxu0 0
    %1588 = vmatprep.subr.bf16.mxu0 0
    %1589 = vmatpush2.bf16.msra.mxu0 0
    %1590 = vmatprep.subr.bf16.mxu0 0
    %1591 = vmatpush2.bf16.msra.mxu0 0
    %1592 = vmatprep.subr.bf16.mxu0 0
    %1593 = vmatpush2.bf16.msra.mxu0 0
    %1594 = vmatprep.subr.bf16.mxu0 0
    %1595 = vmatpush2.bf16.msra.mxu0 0
    %1596 = vmatprep.mubr.bf16.mxu0 0
    %1597 = vmatmul.mubr.bf16.gmra.mxu0 %v1563
    %v1598 = vpop.f32.mrf.mxu0
    %v1599 = vadd.f32 0.0, %v1598
    %v1600 = vpop.f32.mrf.mxu0
    %v1601 = vadd.f32 0.0, %v1600
    %v1602 = vpop.f32.mrf.mxu0
    %v1603 = vpop.f32.mrf.mxu0
    %1604 = vdwg.mxu0
    %1605 = vmatprep.subr.bf16.mxu0 %v894
    %1606 = vmatpush1.bf16.msra.mxu0 %v893
    %1607 = vmatprep.subr.bf16.mxu0 %v890
    %1608 = vmatpush1.bf16.msra.mxu0 %v889
    %1609 = vmatprep.subr.bf16.mxu0 %v886
    %1610 = vmatpush1.bf16.msra.mxu0 %v885
    %1611 = vmatprep.subr.bf16.mxu0 %v882
    %1612 = vmatpush1.bf16.msra.mxu0 %v881
    %1613 = vmatprep.subr.bf16.mxu0 %v878
    %1614 = vmatpush1.bf16.msra.mxu0 %v877
    %1615 = vmatprep.subr.bf16.mxu0 %v874
    %1616 = vmatpush1.bf16.msra.mxu0 %v873
    %1617 = vmatprep.subr.bf16.mxu0 %v870
    %1618 = vmatpush1.bf16.msra.mxu0 %v869
    %1619 = vmatprep.subr.bf16.mxu0 %v866
    %1620 = vmatpush1.bf16.msra.mxu0 %v865
    %1621 = vmatprep.subr.bf16.mxu0 0
    %1622 = vmatpush2.bf16.msra.mxu0 0
    %1623 = vmatprep.subr.bf16.mxu0 0
    %1624 = vmatpush2.bf16.msra.mxu0 0
    %1625 = vmatprep.subr.bf16.mxu0 0
    %1626 = vmatpush2.bf16.msra.mxu0 0
    %1627 = vmatprep.subr.bf16.mxu0 0
    %1628 = vmatpush2.bf16.msra.mxu0 0
    %1629 = vmatprep.subr.bf16.mxu0 0
    %1630 = vmatpush2.bf16.msra.mxu0 0
    %1631 = vmatprep.subr.bf16.mxu0 0
    %1632 = vmatpush2.bf16.msra.mxu0 0
    %1633 = vmatprep.subr.bf16.mxu0 0
    %1634 = vmatpush2.bf16.msra.mxu0 0
    %1635 = vmatprep.subr.bf16.mxu0 0
    %1636 = vmatpush2.bf16.msra.mxu0 0
    %1637 = vmatprep.mubr.bf16.mxu0 0
    %1638 = vmatmul.mubr.bf16.gmra.mxu0 %v1563
    %v1639 = vpop.f32.mrf.mxu0
    %v1640 = vadd.f32 0.0, %v1639
    %v1641 = vpop.f32.mrf.mxu0
    %v1642 = vadd.f32 0.0, %v1641
    %v1643 = vpop.f32.mrf.mxu0
    %v1644 = vpop.f32.mrf.mxu0
    %1645 = vdwg.mxu0
    %v1650 = vrot.slane %v1599, 6
    %v1651 = vrot.slane %v1601, 6
    %v1652 = vrot.slane %v1640, 6
    %v1653 = vrot.slane %v1642, 6
    %v1658 = vadd.f32 %v1559, %v1650
    %v1659 = vadd.f32 %v1560, %v1651
    %v1660 = vadd.f32 %v1561, %v1652
    %v1661 = vadd.f32 %v1562, %v1653
    %v1662 = vxor.u32 %v1658, 2147483648
    %v1663 = vxor.u32 %v1659, 2147483648
    %v1664 = vxor.u32 %v1660, 2147483648
    %v1665 = vmul.f32 %v1662, 1.442695
    %v1666 = vpow.pop %v1665
    %v1667 = vmul.f32 %v1663, 1.442695
    %v1668 = vpow.pop %v1667
    %v1669 = vmul.f32 %v1664, 1.442695
    %v1670 = vpow.pop %v1669
    %v1671 = vadd.f32 %v1666, 1.0
    %v1672 = vadd.f32 %v1668, 1.0
    %v1673 = vadd.f32 %v1670, 1.0
    %v1674 = vrcp.pop %v1671
    %v1675 = vmul.f32 1.0, %v1674
    %v1676 = vrcp.pop %v1672
    %v1677 = vmul.f32 1.0, %v1676
    %v1678 = vrcp.pop %v1673
    %v1679 = vmul.f32 1.0, %v1678
    %v1680 = vtanh.pop %v1661
    %v1682 = vrot.slane %v1555, 6
    %v1684 = vmul.f32 %v1677, %v1682
    %v1685 = vmul.f32 %v1675, %v1680
    %v1686 = vadd.f32 %v1684, %v1685
    %v1687 = vtanh.pop %v1686
    %v1688 = vmul.f32 %v1679, %v1687
    %1689 = vst [vmem:[#allocation3 + $0x8] sm:$0xc] %v1688
    %v1690 = vld [vmem:[#allocation2 + $0x40] sm:$0x30]
    %v1691 = vld [vmem:[#allocation2 + $0x48] sm:$0x30]
    %v1692 = vld [vmem:[#allocation2 + $0x50] sm:$0x30]
    %v1693 = vld [vmem:[#allocation2 + $0x58] sm:$0x30]
    %v1694 = vpack.c.bf16 %v1688, %v1688
    %v1696 = vrot.slane %v1694, 1
    %1698 = vmatprep.subr.bf16.mxu0 %v892
    %1699 = vmatpush1.bf16.msra.mxu0 %v891
    %1700 = vmatprep.subr.bf16.mxu0 %v888
    %1701 = vmatpush1.bf16.msra.mxu0 %v887
    %1702 = vmatprep.subr.bf16.mxu0 %v884
    %1703 = vmatpush1.bf16.msra.mxu0 %v883
    %1704 = vmatprep.subr.bf16.mxu0 %v880
    %1705 = vmatpush1.bf16.msra.mxu0 %v879
    %1706 = vmatprep.subr.bf16.mxu0 %v876
    %1707 = vmatpush1.bf16.msra.mxu0 %v875
    %1708 = vmatprep.subr.bf16.mxu0 %v872
    %1709 = vmatpush1.bf16.msra.mxu0 %v871
    %1710 = vmatprep.subr.bf16.mxu0 %v868
    %1711 = vmatpush1.bf16.msra.mxu0 %v867
    %1712 = vmatprep.subr.bf16.mxu0 %v864
    %1713 = vmatpush1.bf16.msra.mxu0 %v863
    %1714 = vmatprep.subr.bf16.mxu0 0
    %1715 = vmatpush2.bf16.msra.mxu0 0
    %1716 = vmatprep.subr.bf16.mxu0 0
    %1717 = vmatpush2.bf16.msra.mxu0 0
    %1718 = vmatprep.subr.bf16.mxu0 0
    %1719 = vmatpush2.bf16.msra.mxu0 0
    %1720 = vmatprep.subr.bf16.mxu0 0
    %1721 = vmatpush2.bf16.msra.mxu0 0
    %1722 = vmatprep.subr.bf16.mxu0 0
    %1723 = vmatpush2.bf16.msra.mxu0 0
    %1724 = vmatprep.subr.bf16.mxu0 0
    %1725 = vmatpush2.bf16.msra.mxu0 0
    %1726 = vmatprep.subr.bf16.mxu0 0
    %1727 = vmatpush2.bf16.msra.mxu0 0
    %1728 = vmatprep.subr.bf16.mxu0 0
    %1729 = vmatpush2.bf16.msra.mxu0 0
    %1730 = vmatprep.mubr.bf16.mxu0 0
    %1731 = vmatmul.mubr.bf16.gmra.mxu0 %v1696
    %v1732 = vpop.f32.mrf.mxu0
    %v1733 = vadd.f32 0.0, %v1732
    %v1734 = vpop.f32.mrf.mxu0
    %v1735 = vadd.f32 0.0, %v1734
    %v1736 = vpop.f32.mrf.mxu0
    %v1737 = vpop.f32.mrf.mxu0
    %1738 = vdwg.mxu0
    %1739 = vmatprep.subr.bf16.mxu0 %v894
    %1740 = vmatpush1.bf16.msra.mxu0 %v893
    %1741 = vmatprep.subr.bf16.mxu0 %v890
    %1742 = vmatpush1.bf16.msra.mxu0 %v889
    %1743 = vmatprep.subr.bf16.mxu0 %v886
    %1744 = vmatpush1.bf16.msra.mxu0 %v885
    %1745 = vmatprep.subr.bf16.mxu0 %v882
    %1746 = vmatpush1.bf16.msra.mxu0 %v881
    %1747 = vmatprep.subr.bf16.mxu0 %v878
    %1748 = vmatpush1.bf16.msra.mxu0 %v877
    %1749 = vmatprep.subr.bf16.mxu0 %v874
    %1750 = vmatpush1.bf16.msra.mxu0 %v873
    %1751 = vmatprep.subr.bf16.mxu0 %v870
    %1752 = vmatpush1.bf16.msra.mxu0 %v869
    %1753 = vmatprep.subr.bf16.mxu0 %v866
    %1754 = vmatpush1.bf16.msra.mxu0 %v865
    %1755 = vmatprep.subr.bf16.mxu0 0
    %1756 = vmatpush2.bf16.msra.mxu0 0
    %1757 = vmatprep.subr.bf16.mxu0 0
    %1758 = vmatpush2.bf16.msra.mxu0 0
    %1759 = vmatprep.subr.bf16.mxu0 0
    %1760 = vmatpush2.bf16.msra.mxu0 0
    %1761 = vmatprep.subr.bf16.mxu0 0
    %1762 = vmatpush2.bf16.msra.mxu0 0
    %1763 = vmatprep.subr.bf16.mxu0 0
    %1764 = vmatpush2.bf16.msra.mxu0 0
    %1765 = vmatprep.subr.bf16.mxu0 0
    %1766 = vmatpush2.bf16.msra.mxu0 0
    %1767 = vmatprep.subr.bf16.mxu0 0
    %1768 = vmatpush2.bf16.msra.mxu0 0
    %1769 = vmatprep.subr.bf16.mxu0 0
    %1770 = vmatpush2.bf16.msra.mxu0 0
    %1771 = vmatprep.mubr.bf16.mxu0 0
    %1772 = vmatmul.mubr.bf16.gmra.mxu0 %v1696
    %v1773 = vpop.f32.mrf.mxu0
    %v1774 = vadd.f32 0.0, %v1773
    %v1775 = vpop.f32.mrf.mxu0
    %v1776 = vadd.f32 0.0, %v1775
    %v1777 = vpop.f32.mrf.mxu0
    %v1778 = vpop.f32.mrf.mxu0
    %1779 = vdwg.mxu0
    %v1784 = vrot.slane %v1733, 4
    %v1785 = vrot.slane %v1735, 4
    %v1786 = vrot.slane %v1774, 4
    %v1787 = vrot.slane %v1776, 4
    %v1792 = vadd.f32 %v1690, %v1784
    %v1793 = vadd.f32 %v1691, %v1785
    %v1794 = vadd.f32 %v1692, %v1786
    %v1795 = vadd.f32 %v1693, %v1787
    %v1796 = vxor.u32 %v1792, 2147483648
    %v1797 = vxor.u32 %v1793, 2147483648
    %v1798 = vxor.u32 %v1794, 2147483648
    %v1799 = vmul.f32 %v1796, 1.442695
    %v1800 = vpow.pop %v1799
    %v1801 = vmul.f32 %v1797, 1.442695
    %v1802 = vpow.pop %v1801
    %v1803 = vmul.f32 %v1798, 1.442695
    %v1804 = vpow.pop %v1803
    %v1805 = vadd.f32 %v1800, 1.0
    %v1806 = vadd.f32 %v1802, 1.0
    %v1807 = vadd.f32 %v1804, 1.0
    %v1808 = vrcp.pop %v1805
    %v1809 = vmul.f32 1.0, %v1808
    %v1810 = vrcp.pop %v1806
    %v1811 = vmul.f32 1.0, %v1810
    %v1812 = vrcp.pop %v1807
    %v1813 = vmul.f32 1.0, %v1812
    %v1814 = vtanh.pop %v1795
    %v1816 = vrot.slane %v1686, 6
    %v1818 = vmul.f32 %v1811, %v1816
    %v1819 = vmul.f32 %v1809, %v1814
    %v1820 = vadd.f32 %v1818, %v1819
    %v1821 = vtanh.pop %v1820
    %v1822 = vmul.f32 %v1813, %v1821
    %1823 = vst [vmem:[#allocation3 + $0x8] sm:$0x30] %v1822
    %v1824 = vld [vmem:[#allocation2 + $0x40] sm:$0xc0]
    %v1825 = vld [vmem:[#allocation2 + $0x48] sm:$0xc0]
    %v1826 = vld [vmem:[#allocation2 + $0x50] sm:$0xc0]
    %v1827 = vld [vmem:[#allocation2 + $0x58] sm:$0xc0]
    %v1828 = vpack.c.bf16 %v1822, %v1822
    %v1830 = vrot.slane %v1828, 2
    %1832 = vmatprep.subr.bf16.mxu0 %v892
    %1833 = vmatpush1.bf16.msra.mxu0 %v891
    %1834 = vmatprep.subr.bf16.mxu0 %v888
    %1835 = vmatpush1.bf16.msra.mxu0 %v887
    %1836 = vmatprep.subr.bf16.mxu0 %v884
    %1837 = vmatpush1.bf16.msra.mxu0 %v883
    %1838 = vmatprep.subr.bf16.mxu0 %v880
    %1839 = vmatpush1.bf16.msra.mxu0 %v879
    %1840 = vmatprep.subr.bf16.mxu0 %v876
    %1841 = vmatpush1.bf16.msra.mxu0 %v875
    %1842 = vmatprep.subr.bf16.mxu0 %v872
    %1843 = vmatpush1.bf16.msra.mxu0 %v871
    %1844 = vmatprep.subr.bf16.mxu0 %v868
    %1845 = vmatpush1.bf16.msra.mxu0 %v867
    %1846 = vmatprep.subr.bf16.mxu0 %v864
    %1847 = vmatpush1.bf16.msra.mxu0 %v863
    %1848 = vmatprep.subr.bf16.mxu0 0
    %1849 = vmatpush2.bf16.msra.mxu0 0
    %1850 = vmatprep.subr.bf16.mxu0 0
    %1851 = vmatpush2.bf16.msra.mxu0 0
    %1852 = vmatprep.subr.bf16.mxu0 0
    %1853 = vmatpush2.bf16.msra.mxu0 0
    %1854 = vmatprep.subr.bf16.mxu0 0
    %1855 = vmatpush2.bf16.msra.mxu0 0
    %1856 = vmatprep.subr.bf16.mxu0 0
    %1857 = vmatpush2.bf16.msra.mxu0 0
    %1858 = vmatprep.subr.bf16.mxu0 0
    %1859 = vmatpush2.bf16.msra.mxu0 0
    %1860 = vmatprep.subr.bf16.mxu0 0
    %1861 = vmatpush2.bf16.msra.mxu0 0
    %1862 = vmatprep.subr.bf16.mxu0 0
    %1863 = vmatpush2.bf16.msra.mxu0 0
    %1864 = vmatprep.mubr.bf16.mxu0 0
    %1865 = vmatmul.mubr.bf16.gmra.mxu0 %v1830
    %v1866 = vpop.f32.mrf.mxu0
    %v1867 = vadd.f32 0.0, %v1866
    %v1868 = vpop.f32.mrf.mxu0
    %v1869 = vadd.f32 0.0, %v1868
    %v1870 = vpop.f32.mrf.mxu0
    %v1871 = vpop.f32.mrf.mxu0
    %1872 = vdwg.mxu0
    %1873 = vmatprep.subr.bf16.mxu0 %v894
    %1874 = vmatpush1.bf16.msra.mxu0 %v893
    %1875 = vmatprep.subr.bf16.mxu0 %v890
    %1876 = vmatpush1.bf16.msra.mxu0 %v889
    %1877 = vmatprep.subr.bf16.mxu0 %v886
    %1878 = vmatpush1.bf16.msra.mxu0 %v885
    %1879 = vmatprep.subr.bf16.mxu0 %v882
    %1880 = vmatpush1.bf16.msra.mxu0 %v881
    %1881 = vmatprep.subr.bf16.mxu0 %v878
    %1882 = vmatpush1.bf16.msra.mxu0 %v877
    %1883 = vmatprep.subr.bf16.mxu0 %v874
    %1884 = vmatpush1.bf16.msra.mxu0 %v873
    %1885 = vmatprep.subr.bf16.mxu0 %v870
    %1886 = vmatpush1.bf16.msra.mxu0 %v869
    %1887 = vmatprep.subr.bf16.mxu0 %v866
    %1888 = vmatpush1.bf16.msra.mxu0 %v865
    %1889 = vmatprep.subr.bf16.mxu0 0
    %1890 = vmatpush2.bf16.msra.mxu0 0
    %1891 = vmatprep.subr.bf16.mxu0 0
    %1892 = vmatpush2.bf16.msra.mxu0 0
    %1893 = vmatprep.subr.bf16.mxu0 0
    %1894 = vmatpush2.bf16.msra.mxu0 0
    %1895 = vmatprep.subr.bf16.mxu0 0
    %1896 = vmatpush2.bf16.msra.mxu0 0
    %1897 = vmatprep.subr.bf16.mxu0 0
    %1898 = vmatpush2.bf16.msra.mxu0 0
    %1899 = vmatprep.subr.bf16.mxu0 0
    %1900 = vmatpush2.bf16.msra.mxu0 0
    %1901 = vmatprep.subr.bf16.mxu0 0
    %1902 = vmatpush2.bf16.msra.mxu0 0
    %1903 = vmatprep.subr.bf16.mxu0 0
    %1904 = vmatpush2.bf16.msra.mxu0 0
    %1905 = vmatprep.mubr.bf16.mxu0 0
    %1906 = vmatmul.mubr.bf16.gmra.mxu0 %v1830
    %v1907 = vpop.f32.mrf.mxu0
    %v1908 = vadd.f32 0.0, %v1907
    %v1909 = vpop.f32.mrf.mxu0
    %v1910 = vadd.f32 0.0, %v1909
    %v1911 = vpop.f32.mrf.mxu0
    %v1912 = vpop.f32.mrf.mxu0
    %1913 = vdwg.mxu0
    %v1918 = vrot.slane %v1867, 2
    %v1919 = vrot.slane %v1869, 2
    %v1920 = vrot.slane %v1908, 2
    %v1921 = vrot.slane %v1910, 2
    %v1926 = vadd.f32 %v1824, %v1918
    %v1927 = vadd.f32 %v1825, %v1919
    %v1928 = vadd.f32 %v1826, %v1920
    %v1929 = vadd.f32 %v1827, %v1921
    %v1930 = vxor.u32 %v1926, 2147483648
    %v1931 = vxor.u32 %v1927, 2147483648
    %v1932 = vxor.u32 %v1928, 2147483648
    %v1933 = vmul.f32 %v1930, 1.442695
    %v1934 = vpow.pop %v1933
    %v1935 = vmul.f32 %v1931, 1.442695
    %v1936 = vpow.pop %v1935
    %v1937 = vmul.f32 %v1932, 1.442695
    %v1938 = vpow.pop %v1937
    %v1939 = vadd.f32 %v1934, 1.0
    %v1940 = vadd.f32 %v1936, 1.0
    %v1941 = vadd.f32 %v1938, 1.0
    %v1942 = vrcp.pop %v1939
    %v1943 = vmul.f32 1.0, %v1942
    %v1944 = vrcp.pop %v1940
    %v1945 = vmul.f32 1.0, %v1944
    %v1946 = vrcp.pop %v1941
    %v1947 = vmul.f32 1.0, %v1946
    %v1948 = vtanh.pop %v1929
    %v1950 = vrot.slane %v1820, 6
    %v1952 = vmul.f32 %v1945, %v1950
    %v1953 = vmul.f32 %v1943, %v1948
    %v1954 = vadd.f32 %v1952, %v1953
    %v1955 = vtanh.pop %v1954
    %v1956 = vmul.f32 %v1947, %v1955
    %1957 = vst [vmem:[#allocation3 + $0x8] sm:$0xc0] %v1956
    %v1958 = vld [vmem:[#allocation2 + $0x60] sm:$0xc0]
    %v1959 = vld [vmem:[#allocation2 + $0x68] sm:$0xc0]
    %v1960 = vld [vmem:[#allocation2 + $0x70] sm:$0xc0]
    %v1961 = vld [vmem:[#allocation2 + $0x78] sm:$0xc0]
    %v1994 = vunpack.c.l.b16 %v731
    %v1995 = vunpack.c.h.b16 %v731
    %v1996 = vunpack.c.l.b16 %v732
    %v1997 = vunpack.c.h.b16 %v732
    %v1998 = vunpack.c.l.b16 %v733
    %v1999 = vunpack.c.h.b16 %v733
    %v2000 = vunpack.c.l.b16 %v734
    %v2001 = vunpack.c.h.b16 %v734
    %v2002 = vunpack.c.l.b16 %v735
    %v2003 = vunpack.c.h.b16 %v735
    %v2004 = vunpack.c.l.b16 %v736
    %v2005 = vunpack.c.h.b16 %v736
    %v2006 = vunpack.c.l.b16 %v737
    %v2007 = vunpack.c.h.b16 %v737
    %v2008 = vunpack.c.l.b16 %v738
    %v2009 = vunpack.c.h.b16 %v738
    %v2010 = vunpack.c.l.b16 %v739
    %v2011 = vunpack.c.h.b16 %v739
    %v2012 = vunpack.c.l.b16 %v740
    %v2013 = vunpack.c.h.b16 %v740
    %v2014 = vunpack.c.l.b16 %v741
    %v2015 = vunpack.c.h.b16 %v741
    %v2016 = vunpack.c.l.b16 %v742
    %v2017 = vunpack.c.h.b16 %v742
    %v2018 = vunpack.c.l.b16 %v743
    %v2019 = vunpack.c.h.b16 %v743
    %v2020 = vunpack.c.l.b16 %v744
    %v2021 = vunpack.c.h.b16 %v744
    %v2022 = vunpack.c.l.b16 %v745
    %v2023 = vunpack.c.h.b16 %v745
    %v2024 = vunpack.c.l.b16 %v746
    %v2025 = vunpack.c.h.b16 %v746
    %v2026 = vunpack.c.l.b16 %v747
    %v2027 = vunpack.c.h.b16 %v747
    %v2028 = vunpack.c.l.b16 %v748
    %v2029 = vunpack.c.h.b16 %v748
    %v2030 = vunpack.c.l.b16 %v749
    %v2031 = vunpack.c.h.b16 %v749
    %v2032 = vunpack.c.l.b16 %v750
    %v2033 = vunpack.c.h.b16 %v750
    %v2034 = vunpack.c.l.b16 %v751
    %v2035 = vunpack.c.h.b16 %v751
    %v2036 = vunpack.c.l.b16 %v752
    %v2037 = vunpack.c.h.b16 %v752
    %v2038 = vunpack.c.l.b16 %v753
    %v2039 = vunpack.c.h.b16 %v753
    %v2040 = vunpack.c.l.b16 %v754
    %v2041 = vunpack.c.h.b16 %v754
    %v2042 = vunpack.c.l.b16 %v755
    %v2043 = vunpack.c.h.b16 %v755
    %v2044 = vunpack.c.l.b16 %v756
    %v2045 = vunpack.c.h.b16 %v756
    %v2046 = vunpack.c.l.b16 %v757
    %v2047 = vunpack.c.h.b16 %v757
    %v2048 = vunpack.c.l.b16 %v758
    %v2049 = vunpack.c.h.b16 %v758
    %v2050 = vunpack.c.l.b16 %v759
    %v2051 = vunpack.c.h.b16 %v759
    %v2052 = vunpack.c.l.b16 %v760
    %v2053 = vunpack.c.h.b16 %v760
    %v2054 = vunpack.c.l.b16 %v761
    %v2055 = vunpack.c.h.b16 %v761
    %v2056 = vunpack.c.l.b16 %v762
    %v2057 = vunpack.c.h.b16 %v762
    %v2058 = vpack.c.b16 %v1998, %v1994
    %v2059 = vpack.c.b16 %v1999, %v1995
    %v2060 = vpack.c.b16 %v2000, %v1996
    %v2061 = vpack.c.b16 %v2001, %v1997
    %v2062 = vpack.c.b16 %v2006, %v2002
    %v2063 = vpack.c.b16 %v2007, %v2003
    %v2064 = vpack.c.b16 %v2008, %v2004
    %v2065 = vpack.c.b16 %v2009, %v2005
    %v2066 = vpack.c.b16 %v2014, %v2010
    %v2067 = vpack.c.b16 %v2015, %v2011
    %v2068 = vpack.c.b16 %v2016, %v2012
    %v2069 = vpack.c.b16 %v2017, %v2013
    %v2070 = vpack.c.b16 %v2022, %v2018
    %v2071 = vpack.c.b16 %v2023, %v2019
    %v2072 = vpack.c.b16 %v2024, %v2020
    %v2073 = vpack.c.b16 %v2025, %v2021
    %v2074 = vpack.c.b16 %v2030, %v2026
    %v2075 = vpack.c.b16 %v2031, %v2027
    %v2076 = vpack.c.b16 %v2032, %v2028
    %v2077 = vpack.c.b16 %v2033, %v2029
    %v2078 = vpack.c.b16 %v2038, %v2034
    %v2079 = vpack.c.b16 %v2039, %v2035
    %v2080 = vpack.c.b16 %v2040, %v2036
    %v2081 = vpack.c.b16 %v2041, %v2037
    %v2082 = vpack.c.b16 %v2046, %v2042
    %v2083 = vpack.c.b16 %v2047, %v2043
    %v2084 = vpack.c.b16 %v2048, %v2044
    %v2085 = vpack.c.b16 %v2049, %v2045
    %v2086 = vpack.c.b16 %v2054, %v2050
    %v2087 = vpack.c.b16 %v2055, %v2051
    %v2088 = vpack.c.b16 %v2056, %v2052
    %v2089 = vpack.c.b16 %v2057, %v2053
    %2122 = vmatprep.subr.bf16.mxu0 %v2087
    %2123 = vmatpush1.bf16.msra.mxu0 %v2086
    %2124 = vmatprep.subr.bf16.mxu0 %v2083
    %2125 = vmatpush1.bf16.msra.mxu0 %v2082
    %2126 = vmatprep.subr.bf16.mxu0 %v2079
    %2127 = vmatpush1.bf16.msra.mxu0 %v2078
    %2128 = vmatprep.subr.bf16.mxu0 %v2075
    %2129 = vmatpush1.bf16.msra.mxu0 %v2074
    %2130 = vmatprep.subr.bf16.mxu0 %v2071
    %2131 = vmatpush1.bf16.msra.mxu0 %v2070
    %2132 = vmatprep.subr.bf16.mxu0 %v2067
    %2133 = vmatpush1.bf16.msra.mxu0 %v2066
    %2134 = vmatprep.subr.bf16.mxu0 %v2063
    %2135 = vmatpush1.bf16.msra.mxu0 %v2062
    %2136 = vmatprep.subr.bf16.mxu0 %v2059
    %2137 = vmatpush1.bf16.msra.mxu0 %v2058
    %2138 = vmatprep.subr.bf16.mxu0 0
    %2139 = vmatpush2.bf16.msra.mxu0 0
    %2140 = vmatprep.subr.bf16.mxu0 0
    %2141 = vmatpush2.bf16.msra.mxu0 0
    %2142 = vmatprep.subr.bf16.mxu0 0
    %2143 = vmatpush2.bf16.msra.mxu0 0
    %2144 = vmatprep.subr.bf16.mxu0 0
    %2145 = vmatpush2.bf16.msra.mxu0 0
    %2146 = vmatprep.subr.bf16.mxu0 0
    %2147 = vmatpush2.bf16.msra.mxu0 0
    %2148 = vmatprep.subr.bf16.mxu0 0
    %2149 = vmatpush2.bf16.msra.mxu0 0
    %2150 = vmatprep.subr.bf16.mxu0 0
    %2151 = vmatpush2.bf16.msra.mxu0 0
    %2152 = vmatprep.subr.bf16.mxu0 0
    %2153 = vmatpush2.bf16.msra.mxu0 0
    %2154 = vmatprep.mubr.bf16.mxu0 0
    %2155 = vmatmul.mubr.bf16.gmra.mxu0 0
    %v2156 = vpop.f32.mrf.mxu0
    %v2157 = vadd.f32 0.0, %v2156
    %v2158 = vpop.f32.mrf.mxu0
    %v2159 = vadd.f32 0.0, %v2158
    %v2160 = vpop.f32.mrf.mxu0
    %v2161 = vpop.f32.mrf.mxu0
    %2162 = vdwg.mxu0
    %2163 = vmatprep.subr.bf16.mxu0 %v2089
    %2164 = vmatpush1.bf16.msra.mxu0 %v2088
    %2165 = vmatprep.subr.bf16.mxu0 %v2085
    %2166 = vmatpush1.bf16.msra.mxu0 %v2084
    %2167 = vmatprep.subr.bf16.mxu0 %v2081
    %2168 = vmatpush1.bf16.msra.mxu0 %v2080
    %2169 = vmatprep.subr.bf16.mxu0 %v2077
    %2170 = vmatpush1.bf16.msra.mxu0 %v2076
    %2171 = vmatprep.subr.bf16.mxu0 %v2073
    %2172 = vmatpush1.bf16.msra.mxu0 %v2072
    %2173 = vmatprep.subr.bf16.mxu0 %v2069
    %2174 = vmatpush1.bf16.msra.mxu0 %v2068
    %2175 = vmatprep.subr.bf16.mxu0 %v2065
    %2176 = vmatpush1.bf16.msra.mxu0 %v2064
    %2177 = vmatprep.subr.bf16.mxu0 %v2061
    %2178 = vmatpush1.bf16.msra.mxu0 %v2060
    %2179 = vmatprep.subr.bf16.mxu0 0
    %2180 = vmatpush2.bf16.msra.mxu0 0
    %2181 = vmatprep.subr.bf16.mxu0 0
    %2182 = vmatpush2.bf16.msra.mxu0 0
    %2183 = vmatprep.subr.bf16.mxu0 0
    %2184 = vmatpush2.bf16.msra.mxu0 0
    %2185 = vmatprep.subr.bf16.mxu0 0
    %2186 = vmatpush2.bf16.msra.mxu0 0
    %2187 = vmatprep.subr.bf16.mxu0 0
    %2188 = vmatpush2.bf16.msra.mxu0 0
    %2189 = vmatprep.subr.bf16.mxu0 0
    %2190 = vmatpush2.bf16.msra.mxu0 0
    %2191 = vmatprep.subr.bf16.mxu0 0
    %2192 = vmatpush2.bf16.msra.mxu0 0
    %2193 = vmatprep.subr.bf16.mxu0 0
    %2194 = vmatpush2.bf16.msra.mxu0 0
    %2195 = vmatprep.mubr.bf16.mxu0 0
    %2196 = vmatmul.mubr.bf16.gmra.mxu0 0
    %v2197 = vpop.f32.mrf.mxu0
    %v2198 = vadd.f32 0.0, %v2197
    %v2199 = vpop.f32.mrf.mxu0
    %v2200 = vadd.f32 0.0, %v2199
    %v2201 = vpop.f32.mrf.mxu0
    %v2202 = vpop.f32.mrf.mxu0
    %2203 = vdwg.mxu0
    %v2208 = vrot.slane %v2157, 2
    %v2209 = vrot.slane %v2159, 2
    %v2210 = vrot.slane %v2198, 2
    %v2211 = vrot.slane %v2200, 2
    %v2216 = vadd.f32 %v1958, %v2208
    %v2217 = vadd.f32 %v1959, %v2209
    %v2218 = vadd.f32 %v1960, %v2210
    %v2219 = vadd.f32 %v1961, %v2211
    %v2220 = vxor.u32 %v2216, 2147483648
    %v2221 = vxor.u32 %v2217, 2147483648
    %v2222 = vxor.u32 %v2218, 2147483648
    %v2223 = vmul.f32 %v2220, 1.442695
    %v2224 = vpow.pop %v2223
    %v2225 = vmul.f32 %v2221, 1.442695
    %v2226 = vpow.pop %v2225
    %v2227 = vmul.f32 %v2222, 1.442695
    %v2228 = vpow.pop %v2227
    %v2229 = vadd.f32 %v2224, 1.0
    %v2230 = vadd.f32 %v2226, 1.0
    %v2231 = vadd.f32 %v2228, 1.0
    %v2232 = vrcp.pop %v2229
    %v2233 = vmul.f32 1.0, %v2232
    %v2234 = vrcp.pop %v2230
    %v2235 = vmul.f32 1.0, %v2234
    %v2236 = vrcp.pop %v2231
    %v2237 = vmul.f32 1.0, %v2236
    %v2238 = vtanh.pop %v2219
    %v2239 = vmul.f32 %v2235, 0.0
    %v2240 = vmul.f32 %v2233, %v2238
    %v2241 = vadd.f32 %v2239, %v2240
    %v2242 = vtanh.pop %v2241
    %v2243 = vmul.f32 %v2237, %v2242
    %2244 = vst [vmem:[#allocation4 + $0x8] sm:$0xc0] %v2243
    %v2245 = vld [vmem:[#allocation2 + $0x60] sm:$0x30]
    %v2246 = vld [vmem:[#allocation2 + $0x68] sm:$0x30]
    %v2247 = vld [vmem:[#allocation2 + $0x70] sm:$0x30]
    %v2248 = vld [vmem:[#allocation2 + $0x78] sm:$0x30]
    %v2249 = vpack.c.bf16 %v2243, %v2243
    %v2251 = vrot.slane %v2249, 3
    %2253 = vmatprep.subr.bf16.mxu0 %v2087
    %2254 = vmatpush1.bf16.msra.mxu0 %v2086
    %2255 = vmatprep.subr.bf16.mxu0 %v2083
    %2256 = vmatpush1.bf16.msra.mxu0 %v2082
    %2257 = vmatprep.subr.bf16.mxu0 %v2079
    %2258 = vmatpush1.bf16.msra.mxu0 %v2078
    %2259 = vmatprep.subr.bf16.mxu0 %v2075
    %2260 = vmatpush1.bf16.msra.mxu0 %v2074
    %2261 = vmatprep.subr.bf16.mxu0 %v2071
    %2262 = vmatpush1.bf16.msra.mxu0 %v2070
    %2263 = vmatprep.subr.bf16.mxu0 %v2067
    %2264 = vmatpush1.bf16.msra.mxu0 %v2066
    %2265 = vmatprep.subr.bf16.mxu0 %v2063
    %2266 = vmatpush1.bf16.msra.mxu0 %v2062
    %2267 = vmatprep.subr.bf16.mxu0 %v2059
    %2268 = vmatpush1.bf16.msra.mxu0 %v2058
    %2269 = vmatprep.subr.bf16.mxu0 0
    %2270 = vmatpush2.bf16.msra.mxu0 0
    %2271 = vmatprep.subr.bf16.mxu0 0
    %2272 = vmatpush2.bf16.msra.mxu0 0
    %2273 = vmatprep.subr.bf16.mxu0 0
    %2274 = vmatpush2.bf16.msra.mxu0 0
    %2275 = vmatprep.subr.bf16.mxu0 0
    %2276 = vmatpush2.bf16.msra.mxu0 0
    %2277 = vmatprep.subr.bf16.mxu0 0
    %2278 = vmatpush2.bf16.msra.mxu0 0
    %2279 = vmatprep.subr.bf16.mxu0 0
    %2280 = vmatpush2.bf16.msra.mxu0 0
    %2281 = vmatprep.subr.bf16.mxu0 0
    %2282 = vmatpush2.bf16.msra.mxu0 0
    %2283 = vmatprep.subr.bf16.mxu0 0
    %2284 = vmatpush2.bf16.msra.mxu0 0
    %2285 = vmatprep.mubr.bf16.mxu0 0
    %2286 = vmatmul.mubr.bf16.gmra.mxu0 %v2251
    %v2287 = vpop.f32.mrf.mxu0
    %v2288 = vadd.f32 0.0, %v2287
    %v2289 = vpop.f32.mrf.mxu0
    %v2290 = vadd.f32 0.0, %v2289
    %v2291 = vpop.f32.mrf.mxu0
    %v2292 = vpop.f32.mrf.mxu0
    %2293 = vdwg.mxu0
    %2294 = vmatprep.subr.bf16.mxu0 %v2089
    %2295 = vmatpush1.bf16.msra.mxu0 %v2088
    %2296 = vmatprep.subr.bf16.mxu0 %v2085
    %2297 = vmatpush1.bf16.msra.mxu0 %v2084
    %2298 = vmatprep.subr.bf16.mxu0 %v2081
    %2299 = vmatpush1.bf16.msra.mxu0 %v2080
    %2300 = vmatprep.subr.bf16.mxu0 %v2077
    %2301 = vmatpush1.bf16.msra.mxu0 %v2076
    %2302 = vmatprep.subr.bf16.mxu0 %v2073
    %2303 = vmatpush1.bf16.msra.mxu0 %v2072
    %2304 = vmatprep.subr.bf16.mxu0 %v2069
    %2305 = vmatpush1.bf16.msra.mxu0 %v2068
    %2306 = vmatprep.subr.bf16.mxu0 %v2065
    %2307 = vmatpush1.bf16.msra.mxu0 %v2064
    %2308 = vmatprep.subr.bf16.mxu0 %v2061
    %2309 = vmatpush1.bf16.msra.mxu0 %v2060
    %2310 = vmatprep.subr.bf16.mxu0 0
    %2311 = vmatpush2.bf16.msra.mxu0 0
    %2312 = vmatprep.subr.bf16.mxu0 0
    %2313 = vmatpush2.bf16.msra.mxu0 0
    %2314 = vmatprep.subr.bf16.mxu0 0
    %2315 = vmatpush2.bf16.msra.mxu0 0
    %2316 = vmatprep.subr.bf16.mxu0 0
    %2317 = vmatpush2.bf16.msra.mxu0 0
    %2318 = vmatprep.subr.bf16.mxu0 0
    %2319 = vmatpush2.bf16.msra.mxu0 0
    %2320 = vmatprep.subr.bf16.mxu0 0
    %2321 = vmatpush2.bf16.msra.mxu0 0
    %2322 = vmatprep.subr.bf16.mxu0 0
    %2323 = vmatpush2.bf16.msra.mxu0 0
    %2324 = vmatprep.subr.bf16.mxu0 0
    %2325 = vmatpush2.bf16.msra.mxu0 0
    %2326 = vmatprep.mubr.bf16.mxu0 0
    %2327 = vmatmul.mubr.bf16.gmra.mxu0 %v2251
    %v2328 = vpop.f32.mrf.mxu0
    %v2329 = vadd.f32 0.0, %v2328
    %v2330 = vpop.f32.mrf.mxu0
    %v2331 = vadd.f32 0.0, %v2330
    %v2332 = vpop.f32.mrf.mxu0
    %v2333 = vpop.f32.mrf.mxu0
    %2334 = vdwg.mxu0
    %v2339 = vrot.slane %v2288, 4
    %v2340 = vrot.slane %v2290, 4
    %v2341 = vrot.slane %v2329, 4
    %v2342 = vrot.slane %v2331, 4
    %v2347 = vadd.f32 %v2245, %v2339
    %v2348 = vadd.f32 %v2246, %v2340
    %v2349 = vadd.f32 %v2247, %v2341
    %v2350 = vadd.f32 %v2248, %v2342
    %v2351 = vxor.u32 %v2347, 2147483648
    %v2352 = vxor.u32 %v2348, 2147483648
    %v2353 = vxor.u32 %v2349, 2147483648
    %v2354 = vmul.f32 %v2351, 1.442695
    %v2355 = vpow.pop %v2354
    %v2356 = vmul.f32 %v2352, 1.442695
    %v2357 = vpow.pop %v2356
    %v2358 = vmul.f32 %v2353, 1.442695
    %v2359 = vpow.pop %v2358
    %v2360 = vadd.f32 %v2355, 1.0
    %v2361 = vadd.f32 %v2357, 1.0
    %v2362 = vadd.f32 %v2359, 1.0
    %v2363 = vrcp.pop %v2360
    %v2364 = vmul.f32 1.0, %v2363
    %v2365 = vrcp.pop %v2361
    %v2366 = vmul.f32 1.0, %v2365
    %v2367 = vrcp.pop %v2362
    %v2368 = vmul.f32 1.0, %v2367
    %v2369 = vtanh.pop %v2350
    %v2371 = vrot.slane %v2241, 2
    %v2373 = vmul.f32 %v2366, %v2371
    %v2374 = vmul.f32 %v2364, %v2369
    %v2375 = vadd.f32 %v2373, %v2374
    %v2376 = vtanh.pop %v2375
    %v2377 = vmul.f32 %v2368, %v2376
    %2378 = vst [vmem:[#allocation4 + $0x8] sm:$0x30] %v2377
    %v2379 = vld [vmem:[#allocation2 + $0x60] sm:$0xc]
    %v2380 = vld [vmem:[#allocation2 + $0x68] sm:$0xc]
    %v2381 = vld [vmem:[#allocation2 + $0x70] sm:$0xc]
    %v2382 = vld [vmem:[#allocation2 + $0x78] sm:$0xc]
    %v2383 = vpack.c.bf16 %v2377, %v2377
    %v2385 = vrot.slane %v2383, 2
    %2387 = vmatprep.subr.bf16.mxu0 %v2087
    %2388 = vmatpush1.bf16.msra.mxu0 %v2086
    %2389 = vmatprep.subr.bf16.mxu0 %v2083
    %2390 = vmatpush1.bf16.msra.mxu0 %v2082
    %2391 = vmatprep.subr.bf16.mxu0 %v2079
    %2392 = vmatpush1.bf16.msra.mxu0 %v2078
    %2393 = vmatprep.subr.bf16.mxu0 %v2075
    %2394 = vmatpush1.bf16.msra.mxu0 %v2074
    %2395 = vmatprep.subr.bf16.mxu0 %v2071
    %2396 = vmatpush1.bf16.msra.mxu0 %v2070
    %2397 = vmatprep.subr.bf16.mxu0 %v2067
    %2398 = vmatpush1.bf16.msra.mxu0 %v2066
    %2399 = vmatprep.subr.bf16.mxu0 %v2063
    %2400 = vmatpush1.bf16.msra.mxu0 %v2062
    %2401 = vmatprep.subr.bf16.mxu0 %v2059
    %2402 = vmatpush1.bf16.msra.mxu0 %v2058
    %2403 = vmatprep.subr.bf16.mxu0 0
    %2404 = vmatpush2.bf16.msra.mxu0 0
    %2405 = vmatprep.subr.bf16.mxu0 0
    %2406 = vmatpush2.bf16.msra.mxu0 0
    %2407 = vmatprep.subr.bf16.mxu0 0
    %2408 = vmatpush2.bf16.msra.mxu0 0
    %2409 = vmatprep.subr.bf16.mxu0 0
    %2410 = vmatpush2.bf16.msra.mxu0 0
    %2411 = vmatprep.subr.bf16.mxu0 0
    %2412 = vmatpush2.bf16.msra.mxu0 0
    %2413 = vmatprep.subr.bf16.mxu0 0
    %2414 = vmatpush2.bf16.msra.mxu0 0
    %2415 = vmatprep.subr.bf16.mxu0 0
    %2416 = vmatpush2.bf16.msra.mxu0 0
    %2417 = vmatprep.subr.bf16.mxu0 0
    %2418 = vmatpush2.bf16.msra.mxu0 0
    %2419 = vmatprep.mubr.bf16.mxu0 0
    %2420 = vmatmul.mubr.bf16.gmra.mxu0 %v2385
    %v2421 = vpop.f32.mrf.mxu0
    %v2422 = vadd.f32 0.0, %v2421
    %v2423 = vpop.f32.mrf.mxu0
    %v2424 = vadd.f32 0.0, %v2423
    %v2425 = vpop.f32.mrf.mxu0
    %v2426 = vpop.f32.mrf.mxu0
    %2427 = vdwg.mxu0
    %2428 = vmatprep.subr.bf16.mxu0 %v2089
    %2429 = vmatpush1.bf16.msra.mxu0 %v2088
    %2430 = vmatprep.subr.bf16.mxu0 %v2085
    %2431 = vmatpush1.bf16.msra.mxu0 %v2084
    %2432 = vmatprep.subr.bf16.mxu0 %v2081
    %2433 = vmatpush1.bf16.msra.mxu0 %v2080
    %2434 = vmatprep.subr.bf16.mxu0 %v2077
    %2435 = vmatpush1.bf16.msra.mxu0 %v2076
    %2436 = vmatprep.subr.bf16.mxu0 %v2073
    %2437 = vmatpush1.bf16.msra.mxu0 %v2072
    %2438 = vmatprep.subr.bf16.mxu0 %v2069
    %2439 = vmatpush1.bf16.msra.mxu0 %v2068
    %2440 = vmatprep.subr.bf16.mxu0 %v2065
    %2441 = vmatpush1.bf16.msra.mxu0 %v2064
    %2442 = vmatprep.subr.bf16.mxu0 %v2061
    %2443 = vmatpush1.bf16.msra.mxu0 %v2060
    %2444 = vmatprep.subr.bf16.mxu0 0
    %2445 = vmatpush2.bf16.msra.mxu0 0
    %2446 = vmatprep.subr.bf16.mxu0 0
    %2447 = vmatpush2.bf16.msra.mxu0 0
    %2448 = vmatprep.subr.bf16.mxu0 0
    %2449 = vmatpush2.bf16.msra.mxu0 0
    %2450 = vmatprep.subr.bf16.mxu0 0
    %2451 = vmatpush2.bf16.msra.mxu0 0
    %2452 = vmatprep.subr.bf16.mxu0 0
    %2453 = vmatpush2.bf16.msra.mxu0 0
    %2454 = vmatprep.subr.bf16.mxu0 0
    %2455 = vmatpush2.bf16.msra.mxu0 0
    %2456 = vmatprep.subr.bf16.mxu0 0
    %2457 = vmatpush2.bf16.msra.mxu0 0
    %2458 = vmatprep.subr.bf16.mxu0 0
    %2459 = vmatpush2.bf16.msra.mxu0 0
    %2460 = vmatprep.mubr.bf16.mxu0 0
    %2461 = vmatmul.mubr.bf16.gmra.mxu0 %v2385
    %v2462 = vpop.f32.mrf.mxu0
    %v2463 = vadd.f32 0.0, %v2462
    %v2464 = vpop.f32.mrf.mxu0
    %v2465 = vadd.f32 0.0, %v2464
    %v2466 = vpop.f32.mrf.mxu0
    %v2467 = vpop.f32.mrf.mxu0
    %2468 = vdwg.mxu0
    %v2473 = vrot.slane %v2422, 6
    %v2474 = vrot.slane %v2424, 6
    %v2475 = vrot.slane %v2463, 6
    %v2476 = vrot.slane %v2465, 6
    %v2481 = vadd.f32 %v2379, %v2473
    %v2482 = vadd.f32 %v2380, %v2474
    %v2483 = vadd.f32 %v2381, %v2475
    %v2484 = vadd.f32 %v2382, %v2476
    %v2485 = vxor.u32 %v2481, 2147483648
    %v2486 = vxor.u32 %v2482, 2147483648
    %v2487 = vxor.u32 %v2483, 2147483648
    %v2488 = vmul.f32 %v2485, 1.442695
    %v2489 = vpow.pop %v2488
    %v2490 = vmul.f32 %v2486, 1.442695
    %v2491 = vpow.pop %v2490
    %v2492 = vmul.f32 %v2487, 1.442695
    %v2493 = vpow.pop %v2492
    %v2494 = vadd.f32 %v2489, 1.0
    %v2495 = vadd.f32 %v2491, 1.0
    %v2496 = vadd.f32 %v2493, 1.0
    %v2497 = vrcp.pop %v2494
    %v2498 = vmul.f32 1.0, %v2497
    %v2499 = vrcp.pop %v2495
    %v2500 = vmul.f32 1.0, %v2499
    %v2501 = vrcp.pop %v2496
    %v2502 = vmul.f32 1.0, %v2501
    %v2503 = vtanh.pop %v2484
    %v2505 = vrot.slane %v2375, 2
    %v2507 = vmul.f32 %v2500, %v2505
    %v2508 = vmul.f32 %v2498, %v2503
    %v2509 = vadd.f32 %v2507, %v2508
    %v2510 = vtanh.pop %v2509
    %v2511 = vmul.f32 %v2502, %v2510
    %2512 = vst [vmem:[#allocation4 + $0x8] sm:$0xc] %v2511
    %v2513 = vld [vmem:[#allocation2 + $0x60] sm:$0x3]
    %v2514 = vld [vmem:[#allocation2 + $0x68] sm:$0x3]
    %v2515 = vld [vmem:[#allocation2 + $0x70] sm:$0x3]
    %v2516 = vld [vmem:[#allocation2 + $0x78] sm:$0x3]
    %v2517 = vpack.c.bf16 %v2511, %v2511
    %v2519 = vrot.slane %v2517, 1
    %2521 = vmatprep.subr.bf16.mxu0 %v2087
    %2522 = vmatpush1.bf16.msra.mxu0 %v2086
    %2523 = vmatprep.subr.bf16.mxu0 %v2083
    %2524 = vmatpush1.bf16.msra.mxu0 %v2082
    %2525 = vmatprep.subr.bf16.mxu0 %v2079
    %2526 = vmatpush1.bf16.msra.mxu0 %v2078
    %2527 = vmatprep.subr.bf16.mxu0 %v2075
    %2528 = vmatpush1.bf16.msra.mxu0 %v2074
    %2529 = vmatprep.subr.bf16.mxu0 %v2071
    %2530 = vmatpush1.bf16.msra.mxu0 %v2070
    %2531 = vmatprep.subr.bf16.mxu0 %v2067
    %2532 = vmatpush1.bf16.msra.mxu0 %v2066
    %2533 = vmatprep.subr.bf16.mxu0 %v2063
    %2534 = vmatpush1.bf16.msra.mxu0 %v2062
    %2535 = vmatprep.subr.bf16.mxu0 %v2059
    %2536 = vmatpush1.bf16.msra.mxu0 %v2058
    %2537 = vmatprep.subr.bf16.mxu0 0
    %2538 = vmatpush2.bf16.msra.mxu0 0
    %2539 = vmatprep.subr.bf16.mxu0 0
    %2540 = vmatpush2.bf16.msra.mxu0 0
    %2541 = vmatprep.subr.bf16.mxu0 0
    %2542 = vmatpush2.bf16.msra.mxu0 0
    %2543 = vmatprep.subr.bf16.mxu0 0
    %2544 = vmatpush2.bf16.msra.mxu0 0
    %2545 = vmatprep.subr.bf16.mxu0 0
    %2546 = vmatpush2.bf16.msra.mxu0 0
    %2547 = vmatprep.subr.bf16.mxu0 0
    %2548 = vmatpush2.bf16.msra.mxu0 0
    %2549 = vmatprep.subr.bf16.mxu0 0
    %2550 = vmatpush2.bf16.msra.mxu0 0
    %2551 = vmatprep.subr.bf16.mxu0 0
    %2552 = vmatpush2.bf16.msra.mxu0 0
    %2553 = vmatprep.mubr.bf16.mxu0 0
    %2554 = vmatmul.mubr.bf16.gmra.mxu0 %v2519
    %v2555 = vpop.f32.mrf.mxu0
    %v2556 = vadd.f32 0.0, %v2555
    %v2557 = vpop.f32.mrf.mxu0
    %v2558 = vadd.f32 0.0, %v2557
    %v2559 = vpop.f32.mrf.mxu0
    %v2560 = vpop.f32.mrf.mxu0
    %2561 = vdwg.mxu0
    %2562 = vmatprep.subr.bf16.mxu0 %v2089
    %2563 = vmatpush1.bf16.msra.mxu0 %v2088
    %2564 = vmatprep.subr.bf16.mxu0 %v2085
    %2565 = vmatpush1.bf16.msra.mxu0 %v2084
    %2566 = vmatprep.subr.bf16.mxu0 %v2081
    %2567 = vmatpush1.bf16.msra.mxu0 %v2080
    %2568 = vmatprep.subr.bf16.mxu0 %v2077
    %2569 = vmatpush1.bf16.msra.mxu0 %v2076
    %2570 = vmatprep.subr.bf16.mxu0 %v2073
    %2571 = vmatpush1.bf16.msra.mxu0 %v2072
    %2572 = vmatprep.subr.bf16.mxu0 %v2069
    %2573 = vmatpush1.bf16.msra.mxu0 %v2068
    %2574 = vmatprep.subr.bf16.mxu0 %v2065
    %2575 = vmatpush1.bf16.msra.mxu0 %v2064
    %2576 = vmatprep.subr.bf16.mxu0 %v2061
    %2577 = vmatpush1.bf16.msra.mxu0 %v2060
    %2578 = vmatprep.subr.bf16.mxu0 0
    %2579 = vmatpush2.bf16.msra.mxu0 0
    %2580 = vmatprep.subr.bf16.mxu0 0
    %2581 = vmatpush2.bf16.msra.mxu0 0
    %2582 = vmatprep.subr.bf16.mxu0 0
    %2583 = vmatpush2.bf16.msra.mxu0 0
    %2584 = vmatprep.subr.bf16.mxu0 0
    %2585 = vmatpush2.bf16.msra.mxu0 0
    %2586 = vmatprep.subr.bf16.mxu0 0
    %2587 = vmatpush2.bf16.msra.mxu0 0
    %2588 = vmatprep.subr.bf16.mxu0 0
    %2589 = vmatpush2.bf16.msra.mxu0 0
    %2590 = vmatprep.subr.bf16.mxu0 0
    %2591 = vmatpush2.bf16.msra.mxu0 0
    %2592 = vmatprep.subr.bf16.mxu0 0
    %2593 = vmatpush2.bf16.msra.mxu0 0
    %2594 = vmatprep.mubr.bf16.mxu0 0
    %2595 = vmatmul.mubr.bf16.gmra.mxu0 %v2519
    %v2596 = vpop.f32.mrf.mxu0
    %v2597 = vadd.f32 0.0, %v2596
    %v2598 = vpop.f32.mrf.mxu0
    %v2599 = vadd.f32 0.0, %v2598
    %v2600 = vpop.f32.mrf.mxu0
    %v2601 = vpop.f32.mrf.mxu0
    %2602 = vdwg.mxu0
    %v2603 = vadd.f32 %v2513, %v2556
    %v2604 = vadd.f32 %v2514, %v2558
    %v2605 = vadd.f32 %v2515, %v2597
    %v2606 = vadd.f32 %v2516, %v2599
    %v2607 = vxor.u32 %v2603, 2147483648
    %v2608 = vxor.u32 %v2604, 2147483648
    %v2609 = vxor.u32 %v2605, 2147483648
    %v2610 = vmul.f32 %v2607, 1.442695
    %v2611 = vpow.pop %v2610
    %v2612 = vmul.f32 %v2608, 1.442695
    %v2613 = vpow.pop %v2612
    %v2614 = vmul.f32 %v2609, 1.442695
    %v2615 = vpow.pop %v2614
    %v2616 = vadd.f32 %v2611, 1.0
    %v2617 = vadd.f32 %v2613, 1.0
    %v2618 = vadd.f32 %v2615, 1.0
    %v2619 = vrcp.pop %v2616
    %v2620 = vmul.f32 1.0, %v2619
    %v2621 = vrcp.pop %v2617
    %v2622 = vmul.f32 1.0, %v2621
    %v2623 = vrcp.pop %v2618
    %v2624 = vmul.f32 1.0, %v2623
    %v2625 = vtanh.pop %v2606
    %v2627 = vrot.slane %v2509, 2
    %v2629 = vmul.f32 %v2622, %v2627
    %v2630 = vmul.f32 %v2620, %v2625
    %v2631 = vadd.f32 %v2629, %v2630
    %v2632 = vtanh.pop %v2631
    %v2633 = vmul.f32 %v2624, %v2632
    %2634 = vst [vmem:[#allocation4 + $0x8] sm:$0x3] %v2633
    %v2635 = vld [vmem:[#allocation2 + $0x20] sm:$0xc0]
    %v2636 = vld [vmem:[#allocation2 + $0x28] sm:$0xc0]
    %v2637 = vld [vmem:[#allocation2 + $0x30] sm:$0xc0]
    %v2638 = vld [vmem:[#allocation2 + $0x38] sm:$0xc0]
    %v2639 = vpack.c.bf16 %v2633, %v2633
    %2640 = vmatprep.subr.bf16.mxu0 %v2087
    %2641 = vmatpush1.bf16.msra.mxu0 %v2086
    %2642 = vmatprep.subr.bf16.mxu0 %v2083
    %2643 = vmatpush1.bf16.msra.mxu0 %v2082
    %2644 = vmatprep.subr.bf16.mxu0 %v2079
    %2645 = vmatpush1.bf16.msra.mxu0 %v2078
    %2646 = vmatprep.subr.bf16.mxu0 %v2075
    %2647 = vmatpush1.bf16.msra.mxu0 %v2074
    %2648 = vmatprep.subr.bf16.mxu0 %v2071
    %2649 = vmatpush1.bf16.msra.mxu0 %v2070
    %2650 = vmatprep.subr.bf16.mxu0 %v2067
    %2651 = vmatpush1.bf16.msra.mxu0 %v2066
    %2652 = vmatprep.subr.bf16.mxu0 %v2063
    %2653 = vmatpush1.bf16.msra.mxu0 %v2062
    %2654 = vmatprep.subr.bf16.mxu0 %v2059
    %2655 = vmatpush1.bf16.msra.mxu0 %v2058
    %2656 = vmatprep.subr.bf16.mxu0 0
    %2657 = vmatpush2.bf16.msra.mxu0 0
    %2658 = vmatprep.subr.bf16.mxu0 0
    %2659 = vmatpush2.bf16.msra.mxu0 0
    %2660 = vmatprep.subr.bf16.mxu0 0
    %2661 = vmatpush2.bf16.msra.mxu0 0
    %2662 = vmatprep.subr.bf16.mxu0 0
    %2663 = vmatpush2.bf16.msra.mxu0 0
    %2664 = vmatprep.subr.bf16.mxu0 0
    %2665 = vmatpush2.bf16.msra.mxu0 0
    %2666 = vmatprep.subr.bf16.mxu0 0
    %2667 = vmatpush2.bf16.msra.mxu0 0
    %2668 = vmatprep.subr.bf16.mxu0 0
    %2669 = vmatpush2.bf16.msra.mxu0 0
    %2670 = vmatprep.subr.bf16.mxu0 0
    %2671 = vmatpush2.bf16.msra.mxu0 0
    %2672 = vmatprep.mubr.bf16.mxu0 0
    %2673 = vmatmul.mubr.bf16.gmra.mxu0 %v2639
    %v2674 = vpop.f32.mrf.mxu0
    %v2675 = vadd.f32 0.0, %v2674
    %v2676 = vpop.f32.mrf.mxu0
    %v2677 = vadd.f32 0.0, %v2676
    %v2678 = vpop.f32.mrf.mxu0
    %v2679 = vpop.f32.mrf.mxu0
    %2680 = vdwg.mxu0
    %2681 = vmatprep.subr.bf16.mxu0 %v2089
    %2682 = vmatpush1.bf16.msra.mxu0 %v2088
    %2683 = vmatprep.subr.bf16.mxu0 %v2085
    %2684 = vmatpush1.bf16.msra.mxu0 %v2084
    %2685 = vmatprep.subr.bf16.mxu0 %v2081
    %2686 = vmatpush1.bf16.msra.mxu0 %v2080
    %2687 = vmatprep.subr.bf16.mxu0 %v2077
    %2688 = vmatpush1.bf16.msra.mxu0 %v2076
    %2689 = vmatprep.subr.bf16.mxu0 %v2073
    %2690 = vmatpush1.bf16.msra.mxu0 %v2072
    %2691 = vmatprep.subr.bf16.mxu0 %v2069
    %2692 = vmatpush1.bf16.msra.mxu0 %v2068
    %2693 = vmatprep.subr.bf16.mxu0 %v2065
    %2694 = vmatpush1.bf16.msra.mxu0 %v2064
    %2695 = vmatprep.subr.bf16.mxu0 %v2061
    %2696 = vmatpush1.bf16.msra.mxu0 %v2060
    %2697 = vmatprep.subr.bf16.mxu0 0
    %2698 = vmatpush2.bf16.msra.mxu0 0
    %2699 = vmatprep.subr.bf16.mxu0 0
    %2700 = vmatpush2.bf16.msra.mxu0 0
    %2701 = vmatprep.subr.bf16.mxu0 0
    %2702 = vmatpush2.bf16.msra.mxu0 0
    %2703 = vmatprep.subr.bf16.mxu0 0
    %2704 = vmatpush2.bf16.msra.mxu0 0
    %2705 = vmatprep.subr.bf16.mxu0 0
    %2706 = vmatpush2.bf16.msra.mxu0 0
    %2707 = vmatprep.subr.bf16.mxu0 0
    %2708 = vmatpush2.bf16.msra.mxu0 0
    %2709 = vmatprep.subr.bf16.mxu0 0
    %2710 = vmatpush2.bf16.msra.mxu0 0
    %2711 = vmatprep.subr.bf16.mxu0 0
    %2712 = vmatpush2.bf16.msra.mxu0 0
    %2713 = vmatprep.mubr.bf16.mxu0 0
    %2714 = vmatmul.mubr.bf16.gmra.mxu0 %v2639
    %v2715 = vpop.f32.mrf.mxu0
    %v2716 = vadd.f32 0.0, %v2715
    %v2717 = vpop.f32.mrf.mxu0
    %v2718 = vadd.f32 0.0, %v2717
    %v2719 = vpop.f32.mrf.mxu0
    %v2720 = vpop.f32.mrf.mxu0
    %2721 = vdwg.mxu0
    %v2726 = vrot.slane %v2675, 2
    %v2727 = vrot.slane %v2677, 2
    %v2728 = vrot.slane %v2716, 2
    %v2729 = vrot.slane %v2718, 2
    %v2734 = vadd.f32 %v2635, %v2726
    %v2735 = vadd.f32 %v2636, %v2727
    %v2736 = vadd.f32 %v2637, %v2728
    %v2737 = vadd.f32 %v2638, %v2729
    %v2738 = vxor.u32 %v2734, 2147483648
    %v2739 = vxor.u32 %v2735, 2147483648
    %v2740 = vxor.u32 %v2736, 2147483648
    %v2741 = vmul.f32 %v2738, 1.442695
    %v2742 = vpow.pop %v2741
    %v2743 = vmul.f32 %v2739, 1.442695
    %v2744 = vpow.pop %v2743
    %v2745 = vmul.f32 %v2740, 1.442695
    %v2746 = vpow.pop %v2745
    %v2747 = vadd.f32 %v2742, 1.0
    %v2748 = vadd.f32 %v2744, 1.0
    %v2749 = vadd.f32 %v2746, 1.0
    %v2750 = vrcp.pop %v2747
    %v2751 = vmul.f32 1.0, %v2750
    %v2752 = vrcp.pop %v2748
    %v2753 = vmul.f32 1.0, %v2752
    %v2754 = vrcp.pop %v2749
    %v2755 = vmul.f32 1.0, %v2754
    %v2756 = vtanh.pop %v2737
    %v2758 = vrot.slane %v2631, 2
    %v2760 = vmul.f32 %v2753, %v2758
    %v2761 = vmul.f32 %v2751, %v2756
    %v2762 = vadd.f32 %v2760, %v2761
    %v2763 = vtanh.pop %v2762
    %v2764 = vmul.f32 %v2755, %v2763
    %2765 = vst [vmem:[#allocation4] sm:$0xc0] %v2764
    %v2766 = vld [vmem:[#allocation2 + $0x20] sm:$0x30]
    %v2767 = vld [vmem:[#allocation2 + $0x28] sm:$0x30]
    %v2768 = vld [vmem:[#allocation2 + $0x30] sm:$0x30]
    %v2769 = vld [vmem:[#allocation2 + $0x38] sm:$0x30]
    %v2770 = vpack.c.bf16 %v2764, %v2764
    %v2772 = vrot.slane %v2770, 3
    %2774 = vmatprep.subr.bf16.mxu0 %v2087
    %2775 = vmatpush1.bf16.msra.mxu0 %v2086
    %2776 = vmatprep.subr.bf16.mxu0 %v2083
    %2777 = vmatpush1.bf16.msra.mxu0 %v2082
    %2778 = vmatprep.subr.bf16.mxu0 %v2079
    %2779 = vmatpush1.bf16.msra.mxu0 %v2078
    %2780 = vmatprep.subr.bf16.mxu0 %v2075
    %2781 = vmatpush1.bf16.msra.mxu0 %v2074
    %2782 = vmatprep.subr.bf16.mxu0 %v2071
    %2783 = vmatpush1.bf16.msra.mxu0 %v2070
    %2784 = vmatprep.subr.bf16.mxu0 %v2067
    %2785 = vmatpush1.bf16.msra.mxu0 %v2066
    %2786 = vmatprep.subr.bf16.mxu0 %v2063
    %2787 = vmatpush1.bf16.msra.mxu0 %v2062
    %2788 = vmatprep.subr.bf16.mxu0 %v2059
    %2789 = vmatpush1.bf16.msra.mxu0 %v2058
    %2790 = vmatprep.subr.bf16.mxu0 0
    %2791 = vmatpush2.bf16.msra.mxu0 0
    %2792 = vmatprep.subr.bf16.mxu0 0
    %2793 = vmatpush2.bf16.msra.mxu0 0
    %2794 = vmatprep.subr.bf16.mxu0 0
    %2795 = vmatpush2.bf16.msra.mxu0 0
    %2796 = vmatprep.subr.bf16.mxu0 0
    %2797 = vmatpush2.bf16.msra.mxu0 0
    %2798 = vmatprep.subr.bf16.mxu0 0
    %2799 = vmatpush2.bf16.msra.mxu0 0
    %2800 = vmatprep.subr.bf16.mxu0 0
    %2801 = vmatpush2.bf16.msra.mxu0 0
    %2802 = vmatprep.subr.bf16.mxu0 0
    %2803 = vmatpush2.bf16.msra.mxu0 0
    %2804 = vmatprep.subr.bf16.mxu0 0
    %2805 = vmatpush2.bf16.msra.mxu0 0
    %2806 = vmatprep.mubr.bf16.mxu0 0
    %2807 = vmatmul.mubr.bf16.gmra.mxu0 %v2772
    %v2808 = vpop.f32.mrf.mxu0
    %v2809 = vadd.f32 0.0, %v2808
    %v2810 = vpop.f32.mrf.mxu0
    %v2811 = vadd.f32 0.0, %v2810
    %v2812 = vpop.f32.mrf.mxu0
    %v2813 = vpop.f32.mrf.mxu0
    %2814 = vdwg.mxu0
    %2815 = vmatprep.subr.bf16.mxu0 %v2089
    %2816 = vmatpush1.bf16.msra.mxu0 %v2088
    %2817 = vmatprep.subr.bf16.mxu0 %v2085
    %2818 = vmatpush1.bf16.msra.mxu0 %v2084
    %2819 = vmatprep.subr.bf16.mxu0 %v2081
    %2820 = vmatpush1.bf16.msra.mxu0 %v2080
    %2821 = vmatprep.subr.bf16.mxu0 %v2077
    %2822 = vmatpush1.bf16.msra.mxu0 %v2076
    %2823 = vmatprep.subr.bf16.mxu0 %v2073
    %2824 = vmatpush1.bf16.msra.mxu0 %v2072
    %2825 = vmatprep.subr.bf16.mxu0 %v2069
    %2826 = vmatpush1.bf16.msra.mxu0 %v2068
    %2827 = vmatprep.subr.bf16.mxu0 %v2065
    %2828 = vmatpush1.bf16.msra.mxu0 %v2064
    %2829 = vmatprep.subr.bf16.mxu0 %v2061
    %2830 = vmatpush1.bf16.msra.mxu0 %v2060
    %2831 = vmatprep.subr.bf16.mxu0 0
    %2832 = vmatpush2.bf16.msra.mxu0 0
    %2833 = vmatprep.subr.bf16.mxu0 0
    %2834 = vmatpush2.bf16.msra.mxu0 0
    %2835 = vmatprep.subr.bf16.mxu0 0
    %2836 = vmatpush2.bf16.msra.mxu0 0
    %2837 = vmatprep.subr.bf16.mxu0 0
    %2838 = vmatpush2.bf16.msra.mxu0 0
    %2839 = vmatprep.subr.bf16.mxu0 0
    %2840 = vmatpush2.bf16.msra.mxu0 0
    %2841 = vmatprep.subr.bf16.mxu0 0
    %2842 = vmatpush2.bf16.msra.mxu0 0
    %2843 = vmatprep.subr.bf16.mxu0 0
    %2844 = vmatpush2.bf16.msra.mxu0 0
    %2845 = vmatprep.subr.bf16.mxu0 0
    %2846 = vmatpush2.bf16.msra.mxu0 0
    %2847 = vmatprep.mubr.bf16.mxu0 0
    %2848 = vmatmul.mubr.bf16.gmra.mxu0 %v2772
    %v2849 = vpop.f32.mrf.mxu0
    %v2850 = vadd.f32 0.0, %v2849
    %v2851 = vpop.f32.mrf.mxu0
    %v2852 = vadd.f32 0.0, %v2851
    %v2853 = vpop.f32.mrf.mxu0
    %v2854 = vpop.f32.mrf.mxu0
    %2855 = vdwg.mxu0
    %v2860 = vrot.slane %v2809, 4
    %v2861 = vrot.slane %v2811, 4
    %v2862 = vrot.slane %v2850, 4
    %v2863 = vrot.slane %v2852, 4
    %v2868 = vadd.f32 %v2766, %v2860
    %v2869 = vadd.f32 %v2767, %v2861
    %v2870 = vadd.f32 %v2768, %v2862
    %v2871 = vadd.f32 %v2769, %v2863
    %v2872 = vxor.u32 %v2868, 2147483648
    %v2873 = vxor.u32 %v2869, 2147483648
    %v2874 = vxor.u32 %v2870, 2147483648
    %v2875 = vmul.f32 %v2872, 1.442695
    %v2876 = vpow.pop %v2875
    %v2877 = vmul.f32 %v2873, 1.442695
    %v2878 = vpow.pop %v2877
    %v2879 = vmul.f32 %v2874, 1.442695
    %v2880 = vpow.pop %v2879
    %v2881 = vadd.f32 %v2876, 1.0
    %v2882 = vadd.f32 %v2878, 1.0
    %v2883 = vadd.f32 %v2880, 1.0
    %v2884 = vrcp.pop %v2881
    %v2885 = vmul.f32 1.0, %v2884
    %v2886 = vrcp.pop %v2882
    %v2887 = vmul.f32 1.0, %v2886
    %v2888 = vrcp.pop %v2883
    %v2889 = vmul.f32 1.0, %v2888
    %v2890 = vtanh.pop %v2871
    %v2892 = vrot.slane %v2762, 2
    %v2894 = vmul.f32 %v2887, %v2892
    %v2895 = vmul.f32 %v2885, %v2890
    %v2896 = vadd.f32 %v2894, %v2895
    %v2897 = vtanh.pop %v2896
    %v2898 = vmul.f32 %v2889, %v2897
    %2899 = vst [vmem:[#allocation4] sm:$0x30] %v2898
    %v2900 = vld [vmem:[#allocation2 + $0x20] sm:$0xc]
    %v2901 = vld [vmem:[#allocation2 + $0x28] sm:$0xc]
    %v2902 = vld [vmem:[#allocation2 + $0x30] sm:$0xc]
    %v2903 = vld [vmem:[#allocation2 + $0x38] sm:$0xc]
    %v2904 = vpack.c.bf16 %v2898, %v2898
    %v2906 = vrot.slane %v2904, 2
    %2908 = vmatprep.subr.bf16.mxu0 %v2087
    %2909 = vmatpush1.bf16.msra.mxu0 %v2086
    %2910 = vmatprep.subr.bf16.mxu0 %v2083
    %2911 = vmatpush1.bf16.msra.mxu0 %v2082
    %2912 = vmatprep.subr.bf16.mxu0 %v2079
    %2913 = vmatpush1.bf16.msra.mxu0 %v2078
    %2914 = vmatprep.subr.bf16.mxu0 %v2075
    %2915 = vmatpush1.bf16.msra.mxu0 %v2074
    %2916 = vmatprep.subr.bf16.mxu0 %v2071
    %2917 = vmatpush1.bf16.msra.mxu0 %v2070
    %2918 = vmatprep.subr.bf16.mxu0 %v2067
    %2919 = vmatpush1.bf16.msra.mxu0 %v2066
    %2920 = vmatprep.subr.bf16.mxu0 %v2063
    %2921 = vmatpush1.bf16.msra.mxu0 %v2062
    %2922 = vmatprep.subr.bf16.mxu0 %v2059
    %2923 = vmatpush1.bf16.msra.mxu0 %v2058
    %2924 = vmatprep.subr.bf16.mxu0 0
    %2925 = vmatpush2.bf16.msra.mxu0 0
    %2926 = vmatprep.subr.bf16.mxu0 0
    %2927 = vmatpush2.bf16.msra.mxu0 0
    %2928 = vmatprep.subr.bf16.mxu0 0
    %2929 = vmatpush2.bf16.msra.mxu0 0
    %2930 = vmatprep.subr.bf16.mxu0 0
    %2931 = vmatpush2.bf16.msra.mxu0 0
    %2932 = vmatprep.subr.bf16.mxu0 0
    %2933 = vmatpush2.bf16.msra.mxu0 0
    %2934 = vmatprep.subr.bf16.mxu0 0
    %2935 = vmatpush2.bf16.msra.mxu0 0
    %2936 = vmatprep.subr.bf16.mxu0 0
    %2937 = vmatpush2.bf16.msra.mxu0 0
    %2938 = vmatprep.subr.bf16.mxu0 0
    %2939 = vmatpush2.bf16.msra.mxu0 0
    %2940 = vmatprep.mubr.bf16.mxu0 0
    %2941 = vmatmul.mubr.bf16.gmra.mxu0 %v2906
    %v2942 = vpop.f32.mrf.mxu0
    %v2943 = vadd.f32 0.0, %v2942
    %v2944 = vpop.f32.mrf.mxu0
    %v2945 = vadd.f32 0.0, %v2944
    %v2946 = vpop.f32.mrf.mxu0
    %v2947 = vpop.f32.mrf.mxu0
    %2948 = vdwg.mxu0
    %2949 = vmatprep.subr.bf16.mxu0 %v2089
    %2950 = vmatpush1.bf16.msra.mxu0 %v2088
    %2951 = vmatprep.subr.bf16.mxu0 %v2085
    %2952 = vmatpush1.bf16.msra.mxu0 %v2084
    %2953 = vmatprep.subr.bf16.mxu0 %v2081
    %2954 = vmatpush1.bf16.msra.mxu0 %v2080
    %2955 = vmatprep.subr.bf16.mxu0 %v2077
    %2956 = vmatpush1.bf16.msra.mxu0 %v2076
    %2957 = vmatprep.subr.bf16.mxu0 %v2073
    %2958 = vmatpush1.bf16.msra.mxu0 %v2072
    %2959 = vmatprep.subr.bf16.mxu0 %v2069
    %2960 = vmatpush1.bf16.msra.mxu0 %v2068
    %2961 = vmatprep.subr.bf16.mxu0 %v2065
    %2962 = vmatpush1.bf16.msra.mxu0 %v2064
    %2963 = vmatprep.subr.bf16.mxu0 %v2061
    %2964 = vmatpush1.bf16.msra.mxu0 %v2060
    %2965 = vmatprep.subr.bf16.mxu0 0
    %2966 = vmatpush2.bf16.msra.mxu0 0
    %2967 = vmatprep.subr.bf16.mxu0 0
    %2968 = vmatpush2.bf16.msra.mxu0 0
    %2969 = vmatprep.subr.bf16.mxu0 0
    %2970 = vmatpush2.bf16.msra.mxu0 0
    %2971 = vmatprep.subr.bf16.mxu0 0
    %2972 = vmatpush2.bf16.msra.mxu0 0
    %2973 = vmatprep.subr.bf16.mxu0 0
    %2974 = vmatpush2.bf16.msra.mxu0 0
    %2975 = vmatprep.subr.bf16.mxu0 0
    %2976 = vmatpush2.bf16.msra.mxu0 0
    %2977 = vmatprep.subr.bf16.mxu0 0
    %2978 = vmatpush2.bf16.msra.mxu0 0
    %2979 = vmatprep.subr.bf16.mxu0 0
    %2980 = vmatpush2.bf16.msra.mxu0 0
    %2981 = vmatprep.mubr.bf16.mxu0 0
    %2982 = vmatmul.mubr.bf16.gmra.mxu0 %v2906
    %v2983 = vpop.f32.mrf.mxu0
    %v2984 = vadd.f32 0.0, %v2983
    %v2985 = vpop.f32.mrf.mxu0
    %v2986 = vadd.f32 0.0, %v2985
    %v2987 = vpop.f32.mrf.mxu0
    %v2988 = vpop.f32.mrf.mxu0
    %2989 = vdwg.mxu0
    %v2994 = vrot.slane %v2943, 6
    %v2995 = vrot.slane %v2945, 6
    %v2996 = vrot.slane %v2984, 6
    %v2997 = vrot.slane %v2986, 6
    %v3002 = vadd.f32 %v2900, %v2994
    %v3003 = vadd.f32 %v2901, %v2995
    %v3004 = vadd.f32 %v2902, %v2996
    %v3005 = vadd.f32 %v2903, %v2997
    %v3006 = vxor.u32 %v3002, 2147483648
    %v3007 = vxor.u32 %v3003, 2147483648
    %v3008 = vxor.u32 %v3004, 2147483648
    %v3009 = vmul.f32 %v3006, 1.442695
    %v3010 = vpow.pop %v3009
    %v3011 = vmul.f32 %v3007, 1.442695
    %v3012 = vpow.pop %v3011
    %v3013 = vmul.f32 %v3008, 1.442695
    %v3014 = vpow.pop %v3013
    %v3015 = vadd.f32 %v3010, 1.0
    %v3016 = vadd.f32 %v3012, 1.0
    %v3017 = vadd.f32 %v3014, 1.0
    %v3018 = vrcp.pop %v3015
    %v3019 = vmul.f32 1.0, %v3018
    %v3020 = vrcp.pop %v3016
    %v3021 = vmul.f32 1.0, %v3020
    %v3022 = vrcp.pop %v3017
    %v3023 = vmul.f32 1.0, %v3022
    %v3024 = vtanh.pop %v3005
    %v3026 = vrot.slane %v2896, 2
    %v3028 = vmul.f32 %v3021, %v3026
    %v3029 = vmul.f32 %v3019, %v3024
    %v3030 = vadd.f32 %v3028, %v3029
    %v3031 = vtanh.pop %v3030
    %v3032 = vmul.f32 %v3023, %v3031
    %3033 = vst [vmem:[#allocation4] sm:$0xc] %v3032
    %v3034 = vld [vmem:[#allocation2 + $0x20] sm:$0x3]
    %v3035 = vld [vmem:[#allocation2 + $0x28] sm:$0x3]
    %v3036 = vld [vmem:[#allocation2 + $0x30] sm:$0x3]
    %v3037 = vld [vmem:[#allocation2 + $0x38] sm:$0x3]
    %v3038 = vpack.c.bf16 %v3032, %v3032
    %v3040 = vrot.slane %v3038, 1
    %3042 = vmatprep.subr.bf16.mxu0 %v2087
    %3043 = vmatpush1.bf16.msra.mxu0 %v2086
    %3044 = vmatprep.subr.bf16.mxu0 %v2083
    %3045 = vmatpush1.bf16.msra.mxu0 %v2082
    %3046 = vmatprep.subr.bf16.mxu0 %v2079
    %3047 = vmatpush1.bf16.msra.mxu0 %v2078
    %3048 = vmatprep.subr.bf16.mxu0 %v2075
    %3049 = vmatpush1.bf16.msra.mxu0 %v2074
    %3050 = vmatprep.subr.bf16.mxu0 %v2071
    %3051 = vmatpush1.bf16.msra.mxu0 %v2070
    %3052 = vmatprep.subr.bf16.mxu0 %v2067
    %3053 = vmatpush1.bf16.msra.mxu0 %v2066
    %3054 = vmatprep.subr.bf16.mxu0 %v2063
    %3055 = vmatpush1.bf16.msra.mxu0 %v2062
    %3056 = vmatprep.subr.bf16.mxu0 %v2059
    %3057 = vmatpush1.bf16.msra.mxu0 %v2058
    %3058 = vmatprep.subr.bf16.mxu0 0
    %3059 = vmatpush2.bf16.msra.mxu0 0
    %3060 = vmatprep.subr.bf16.mxu0 0
    %3061 = vmatpush2.bf16.msra.mxu0 0
    %3062 = vmatprep.subr.bf16.mxu0 0
    %3063 = vmatpush2.bf16.msra.mxu0 0
    %3064 = vmatprep.subr.bf16.mxu0 0
    %3065 = vmatpush2.bf16.msra.mxu0 0
    %3066 = vmatprep.subr.bf16.mxu0 0
    %3067 = vmatpush2.bf16.msra.mxu0 0
    %3068 = vmatprep.subr.bf16.mxu0 0
    %3069 = vmatpush2.bf16.msra.mxu0 0
    %3070 = vmatprep.subr.bf16.mxu0 0
    %3071 = vmatpush2.bf16.msra.mxu0 0
    %3072 = vmatprep.subr.bf16.mxu0 0
    %3073 = vmatpush2.bf16.msra.mxu0 0
    %3074 = vmatprep.mubr.bf16.mxu0 0
    %3075 = vmatmul.mubr.bf16.gmra.mxu0 %v3040
    %v3076 = vpop.f32.mrf.mxu0
    %v3077 = vadd.f32 0.0, %v3076
    %v3078 = vpop.f32.mrf.mxu0
    %v3079 = vadd.f32 0.0, %v3078
    %v3080 = vpop.f32.mrf.mxu0
    %v3081 = vpop.f32.mrf.mxu0
    %3082 = vdwg.mxu0
    %3083 = vmatprep.subr.bf16.mxu0 %v2089
    %3084 = vmatpush1.bf16.msra.mxu0 %v2088
    %3085 = vmatprep.subr.bf16.mxu0 %v2085
    %3086 = vmatpush1.bf16.msra.mxu0 %v2084
    %3087 = vmatprep.subr.bf16.mxu0 %v2081
    %3088 = vmatpush1.bf16.msra.mxu0 %v2080
    %3089 = vmatprep.subr.bf16.mxu0 %v2077
    %3090 = vmatpush1.bf16.msra.mxu0 %v2076
    %3091 = vmatprep.subr.bf16.mxu0 %v2073
    %3092 = vmatpush1.bf16.msra.mxu0 %v2072
    %3093 = vmatprep.subr.bf16.mxu0 %v2069
    %3094 = vmatpush1.bf16.msra.mxu0 %v2068
    %3095 = vmatprep.subr.bf16.mxu0 %v2065
    %3096 = vmatpush1.bf16.msra.mxu0 %v2064
    %3097 = vmatprep.subr.bf16.mxu0 %v2061
    %3098 = vmatpush1.bf16.msra.mxu0 %v2060
    %3099 = vmatprep.subr.bf16.mxu0 0
    %3100 = vmatpush2.bf16.msra.mxu0 0
    %3101 = vmatprep.subr.bf16.mxu0 0
    %3102 = vmatpush2.bf16.msra.mxu0 0
    %3103 = vmatprep.subr.bf16.mxu0 0
    %3104 = vmatpush2.bf16.msra.mxu0 0
    %3105 = vmatprep.subr.bf16.mxu0 0
    %3106 = vmatpush2.bf16.msra.mxu0 0
    %3107 = vmatprep.subr.bf16.mxu0 0
    %3108 = vmatpush2.bf16.msra.mxu0 0
    %3109 = vmatprep.subr.bf16.mxu0 0
    %3110 = vmatpush2.bf16.msra.mxu0 0
    %3111 = vmatprep.subr.bf16.mxu0 0
    %3112 = vmatpush2.bf16.msra.mxu0 0
    %3113 = vmatprep.subr.bf16.mxu0 0
    %3114 = vmatpush2.bf16.msra.mxu0 0
    %3115 = vmatprep.mubr.bf16.mxu0 0
    %3116 = vmatmul.mubr.bf16.gmra.mxu0 %v3040
    %v3117 = vpop.f32.mrf.mxu0
    %v3118 = vadd.f32 0.0, %v3117
    %v3119 = vpop.f32.mrf.mxu0
    %v3120 = vadd.f32 0.0, %v3119
    %v3121 = vpop.f32.mrf.mxu0
    %v3122 = vpop.f32.mrf.mxu0
    %3123 = vdwg.mxu0
    %v3124 = vadd.f32 %v3034, %v3077
    %v3125 = vadd.f32 %v3035, %v3079
    %v3126 = vadd.f32 %v3036, %v3118
    %v3127 = vadd.f32 %v3037, %v3120
    %v3128 = vxor.u32 %v3124, 2147483648
    %v3129 = vxor.u32 %v3125, 2147483648
    %v3130 = vxor.u32 %v3126, 2147483648
    %v3131 = vmul.f32 %v3128, 1.442695
    %v3132 = vpow.pop %v3131
    %v3133 = vmul.f32 %v3129, 1.442695
    %v3134 = vpow.pop %v3133
    %v3135 = vmul.f32 %v3130, 1.442695
    %v3136 = vpow.pop %v3135
    %v3137 = vadd.f32 %v3132, 1.0
    %v3138 = vadd.f32 %v3134, 1.0
    %v3139 = vadd.f32 %v3136, 1.0
    %v3140 = vrcp.pop %v3137
    %v3141 = vmul.f32 1.0, %v3140
    %v3142 = vrcp.pop %v3138
    %v3143 = vmul.f32 1.0, %v3142
    %v3144 = vrcp.pop %v3139
    %v3145 = vmul.f32 1.0, %v3144
    %v3146 = vtanh.pop %v3127
    %v3148 = vrot.slane %v3030, 2
    %v3150 = vmul.f32 %v3143, %v3148
    %v3151 = vmul.f32 %v3141, %v3146
    %v3152 = vadd.f32 %v3150, %v3151
    %v3153 = vtanh.pop %v3152
    %v3154 = vmul.f32 %v3145, %v3153
    %3155 = vst [vmem:[#allocation4] sm:$0x3] %v3154
    %v3156 = vpack.c.bf16 %v1956, %v1956
    %v3157 = vld [vmem:[%s5] sm:$0xf]
    %v3158 = vld [vmem:[%s5 + $0x4] sm:$0xf]
    %v3159 = vld [vmem:[%s5 + $0x8] sm:$0xf]
    %v3160 = vld [vmem:[%s5 + $0xc] sm:$0xf]
    %v3161 = vld [vmem:[%s5 + $0x10] sm:$0xf]
    %v3162 = vld [vmem:[%s5 + $0x14] sm:$0xf]
    %v3163 = vld [vmem:[%s5 + $0x18] sm:$0xf]
    %v3164 = vld [vmem:[%s5 + $0x1c] sm:$0xf]
    %v3165 = vld [vmem:[%s5 + $0x20] sm:$0xf]
    %v3166 = vld [vmem:[%s5 + $0x24] sm:$0xf]
    %v3167 = vld [vmem:[%s5 + $0x28] sm:$0xf]
    %v3168 = vld [vmem:[%s5 + $0x2c] sm:$0xf]
    %v3169 = vld [vmem:[%s5 + $0x30] sm:$0xf]
    %v3170 = vld [vmem:[%s5 + $0x34] sm:$0xf]
    %v3171 = vld [vmem:[%s5 + $0x38] sm:$0xf]
    %v3172 = vld [vmem:[%s5 + $0x3c] sm:$0xf]
    %v3173 = vpack.c.bf16 %v3154, %v3154
    %v3174 = vld [vmem:[%s6] sm:$0xf]
    %v3175 = vld [vmem:[%s6 + $0x4] sm:$0xf]
    %v3176 = vld [vmem:[%s6 + $0x8] sm:$0xf]
    %v3177 = vld [vmem:[%s6 + $0xc] sm:$0xf]
    %v3178 = vld [vmem:[%s6 + $0x10] sm:$0xf]
    %v3179 = vld [vmem:[%s6 + $0x14] sm:$0xf]
    %v3180 = vld [vmem:[%s6 + $0x18] sm:$0xf]
    %v3181 = vld [vmem:[%s6 + $0x1c] sm:$0xf]
    %v3182 = vld [vmem:[%s6 + $0x20] sm:$0xf]
    %v3183 = vld [vmem:[%s6 + $0x24] sm:$0xf]
    %v3184 = vld [vmem:[%s6 + $0x28] sm:$0xf]
    %v3185 = vld [vmem:[%s6 + $0x2c] sm:$0xf]
    %v3186 = vld [vmem:[%s6 + $0x30] sm:$0xf]
    %v3187 = vld [vmem:[%s6 + $0x34] sm:$0xf]
    %v3188 = vld [vmem:[%s6 + $0x38] sm:$0xf]
    %v3189 = vld [vmem:[%s6 + $0x3c] sm:$0xf]
    %v3206 = vunpack.c.l.b16 %v3174
    %v3207 = vunpack.c.l.b16 %v3175
    %v3208 = vunpack.c.l.b16 %v3176
    %v3209 = vunpack.c.l.b16 %v3177
    %v3210 = vunpack.c.l.b16 %v3178
    %v3211 = vunpack.c.l.b16 %v3179
    %v3212 = vunpack.c.l.b16 %v3180
    %v3213 = vunpack.c.l.b16 %v3181
    %v3214 = vunpack.c.l.b16 %v3182
    %v3215 = vunpack.c.l.b16 %v3183
    %v3216 = vunpack.c.l.b16 %v3184
    %v3217 = vunpack.c.l.b16 %v3185
    %v3218 = vunpack.c.l.b16 %v3186
    %v3219 = vunpack.c.l.b16 %v3187
    %v3220 = vunpack.c.l.b16 %v3188
    %v3221 = vunpack.c.l.b16 %v3189
    %v3222 = vpack.c.b16 %v3207, %v3206
    %v3223 = vpack.c.b16 %v3209, %v3208
    %v3224 = vpack.c.b16 %v3211, %v3210
    %v3225 = vpack.c.b16 %v3213, %v3212
    %v3226 = vpack.c.b16 %v3215, %v3214
    %v3227 = vpack.c.b16 %v3217, %v3216
    %v3228 = vpack.c.b16 %v3219, %v3218
    %v3229 = vpack.c.b16 %v3221, %v3220
    %3238 = vmatprep.subr.bf16.mxu0 0
    %3239 = vmatpush1.bf16.msra.mxu0 %v3229
    %3240 = vmatprep.subr.bf16.mxu0 0
    %3241 = vmatpush1.bf16.msra.mxu0 %v3228
    %3242 = vmatprep.subr.bf16.mxu0 0
    %3243 = vmatpush1.bf16.msra.mxu0 %v3227
    %3244 = vmatprep.subr.bf16.mxu0 0
    %3245 = vmatpush1.bf16.msra.mxu0 %v3226
    %3246 = vmatprep.subr.bf16.mxu0 0
    %3247 = vmatpush1.bf16.msra.mxu0 %v3225
    %3248 = vmatprep.subr.bf16.mxu0 0
    %3249 = vmatpush1.bf16.msra.mxu0 %v3224
    %3250 = vmatprep.subr.bf16.mxu0 0
    %3251 = vmatpush1.bf16.msra.mxu0 %v3223
    %3252 = vmatprep.subr.bf16.mxu0 0
    %3253 = vmatpush1.bf16.msra.mxu0 %v3222
    %3254 = vmatprep.subr.bf16.mxu0 0
    %3255 = vmatpush2.bf16.msra.mxu0 0
    %3256 = vmatprep.subr.bf16.mxu0 0
    %3257 = vmatpush2.bf16.msra.mxu0 0
    %3258 = vmatprep.subr.bf16.mxu0 0
    %3259 = vmatpush2.bf16.msra.mxu0 0
    %3260 = vmatprep.subr.bf16.mxu0 0
    %3261 = vmatpush2.bf16.msra.mxu0 0
    %3262 = vmatprep.subr.bf16.mxu0 0
    %3263 = vmatpush2.bf16.msra.mxu0 0
    %3264 = vmatprep.subr.bf16.mxu0 0
    %3265 = vmatpush2.bf16.msra.mxu0 0
    %3266 = vmatprep.subr.bf16.mxu0 0
    %3267 = vmatpush2.bf16.msra.mxu0 0
    %3268 = vmatprep.subr.bf16.mxu0 0
    %3269 = vmatpush2.bf16.msra.mxu0 0
    %3270 = vmatprep.mubr.bf16.mxu0 0
    %3271 = vmatmul.mubr.bf16.gmra.mxu0 %v3173
    %v3272 = vpop.f32.mrf.mxu0
    %v3273 = vadd.f32 0.0, %v3272
    %v3274 = vpop.f32.mrf.mxu0
    %v3275 = vpop.f32.mrf.mxu0
    %v3276 = vpop.f32.mrf.mxu0
    %3277 = vdwg.mxu0
    %v3279 = vrot.slane %v3156, 3
    %v3297 = vunpack.c.l.b16 %v3157
    %v3298 = vunpack.c.l.b16 %v3158
    %v3299 = vunpack.c.l.b16 %v3159
    %v3300 = vunpack.c.l.b16 %v3160
    %v3301 = vunpack.c.l.b16 %v3161
    %v3302 = vunpack.c.l.b16 %v3162
    %v3303 = vunpack.c.l.b16 %v3163
    %v3304 = vunpack.c.l.b16 %v3164
    %v3305 = vunpack.c.l.b16 %v3165
    %v3306 = vunpack.c.l.b16 %v3166
    %v3307 = vunpack.c.l.b16 %v3167
    %v3308 = vunpack.c.l.b16 %v3168
    %v3309 = vunpack.c.l.b16 %v3169
    %v3310 = vunpack.c.l.b16 %v3170
    %v3311 = vunpack.c.l.b16 %v3171
    %v3312 = vunpack.c.l.b16 %v3172
    %v3313 = vpack.c.b16 %v3298, %v3297
    %v3314 = vpack.c.b16 %v3300, %v3299
    %v3315 = vpack.c.b16 %v3302, %v3301
    %v3316 = vpack.c.b16 %v3304, %v3303
    %v3317 = vpack.c.b16 %v3306, %v3305
    %v3318 = vpack.c.b16 %v3308, %v3307
    %v3319 = vpack.c.b16 %v3310, %v3309
    %v3320 = vpack.c.b16 %v3312, %v3311
    %3329 = vmatprep.subr.bf16.mxu0 0
    %3330 = vmatpush1.bf16.msra.mxu0 %v3320
    %3331 = vmatprep.subr.bf16.mxu0 0
    %3332 = vmatpush1.bf16.msra.mxu0 %v3319
    %3333 = vmatprep.subr.bf16.mxu0 0
    %3334 = vmatpush1.bf16.msra.mxu0 %v3318
    %3335 = vmatprep.subr.bf16.mxu0 0
    %3336 = vmatpush1.bf16.msra.mxu0 %v3317
    %3337 = vmatprep.subr.bf16.mxu0 0
    %3338 = vmatpush1.bf16.msra.mxu0 %v3316
    %3339 = vmatprep.subr.bf16.mxu0 0
    %3340 = vmatpush1.bf16.msra.mxu0 %v3315
    %3341 = vmatprep.subr.bf16.mxu0 0
    %3342 = vmatpush1.bf16.msra.mxu0 %v3314
    %3343 = vmatprep.subr.bf16.mxu0 0
    %3344 = vmatpush1.bf16.msra.mxu0 %v3313
    %3345 = vmatprep.subr.bf16.mxu0 0
    %3346 = vmatpush2.bf16.msra.mxu0 0
    %3347 = vmatprep.subr.bf16.mxu0 0
    %3348 = vmatpush2.bf16.msra.mxu0 0
    %3349 = vmatprep.subr.bf16.mxu0 0
    %3350 = vmatpush2.bf16.msra.mxu0 0
    %3351 = vmatprep.subr.bf16.mxu0 0
    %3352 = vmatpush2.bf16.msra.mxu0 0
    %3353 = vmatprep.subr.bf16.mxu0 0
    %3354 = vmatpush2.bf16.msra.mxu0 0
    %3355 = vmatprep.subr.bf16.mxu0 0
    %3356 = vmatpush2.bf16.msra.mxu0 0
    %3357 = vmatprep.subr.bf16.mxu0 0
    %3358 = vmatpush2.bf16.msra.mxu0 0
    %3359 = vmatprep.subr.bf16.mxu0 0
    %3360 = vmatpush2.bf16.msra.mxu0 0
    %3361 = vmatprep.mubr.bf16.mxu0 0
    %3362 = vmatmul.mubr.bf16.gmra.mxu0 %v3279
    %v3363 = vpop.f32.mrf.mxu0
    %v3364 = vadd.f32 %v3273, %v3363
    %v3365 = vpop.f32.mrf.mxu0
    %v3366 = vpop.f32.mrf.mxu0
    %v3367 = vpop.f32.mrf.mxu0
    %3368 = vdwg.mxu0
    %v3369 = vld [vmem:[%s7] sm:$0x1]
    %v3371 = vlaneseq
    %v3372 = vshrl.u32 %v3371, 7
    %v3373 = vsub.s32 0, %v3372
    %v3374 = vrot.slane %v3369, %v3373
    %v3376 = vadd.f32 %v3364, %v3374
    %vm3377 = vcmask 50176
    %3378 = vst.msk [vmem:[#allocation11] sm:$0x3] %vm3377, %v3376
    %v3379 = vld [vmem:[#allocation3] sm:$0xff]
    %v3380 = vld [vmem:[#allocation3 + $0x8] sm:$0xff]
    %v3381 = vpack.c.bf16 %v3380, %v3379
    %v3382 = vld [vmem:[%s8] sm:$0xf]
    %v3383 = vld [vmem:[%s8 + $0x4] sm:$0xf]
    %v3384 = vld [vmem:[%s8 + $0x8] sm:$0xf]
    %v3385 = vld [vmem:[%s8 + $0xc] sm:$0xf]
    %v3386 = vld [vmem:[%s8 + $0x10] sm:$0xf]
    %v3387 = vld [vmem:[%s8 + $0x14] sm:$0xf]
    %v3388 = vld [vmem:[%s8 + $0x18] sm:$0xf]
    %v3389 = vld [vmem:[%s8 + $0x1c] sm:$0xf]
    %v3390 = vld [vmem:[%s8 + $0x20] sm:$0xf]
    %v3391 = vld [vmem:[%s8 + $0x24] sm:$0xf]
    %v3392 = vld [vmem:[%s8 + $0x28] sm:$0xf]
    %v3393 = vld [vmem:[%s8 + $0x2c] sm:$0xf]
    %v3394 = vld [vmem:[%s8 + $0x30] sm:$0xf]
    %v3395 = vld [vmem:[%s8 + $0x34] sm:$0xf]
    %v3396 = vld [vmem:[%s8 + $0x38] sm:$0xf]
    %v3397 = vld [vmem:[%s8 + $0x3c] sm:$0xf]
    %v3398 = vld [vmem:[#allocation4] sm:$0xff]
    %v3399 = vld [vmem:[#allocation4 + $0x8] sm:$0xff]
    %v3400 = vpack.c.bf16 %v3399, %v3398
    %v3401 = vld [vmem:[%s9] sm:$0xf]
    %v3402 = vld [vmem:[%s9 + $0x4] sm:$0xf]
    %v3403 = vld [vmem:[%s9 + $0x8] sm:$0xf]
    %v3404 = vld [vmem:[%s9 + $0xc] sm:$0xf]
    %v3405 = vld [vmem:[%s9 + $0x10] sm:$0xf]
    %v3406 = vld [vmem:[%s9 + $0x14] sm:$0xf]
    %v3407 = vld [vmem:[%s9 + $0x18] sm:$0xf]
    %v3408 = vld [vmem:[%s9 + $0x1c] sm:$0xf]
    %v3409 = vld [vmem:[%s9 + $0x20] sm:$0xf]
    %v3410 = vld [vmem:[%s9 + $0x24] sm:$0xf]
    %v3411 = vld [vmem:[%s9 + $0x28] sm:$0xf]
    %v3412 = vld [vmem:[%s9 + $0x2c] sm:$0xf]
    %v3413 = vld [vmem:[%s9 + $0x30] sm:$0xf]
    %v3414 = vld [vmem:[%s9 + $0x34] sm:$0xf]
    %v3415 = vld [vmem:[%s9 + $0x38] sm:$0xf]
    %v3416 = vld [vmem:[%s9 + $0x3c] sm:$0xf]
    %v3433 = vunpack.c.l.b16 %v3401
    %v3434 = vunpack.c.l.b16 %v3402
    %v3435 = vunpack.c.l.b16 %v3403
    %v3436 = vunpack.c.l.b16 %v3404
    %v3437 = vunpack.c.l.b16 %v3405
    %v3438 = vunpack.c.l.b16 %v3406
    %v3439 = vunpack.c.l.b16 %v3407
    %v3440 = vunpack.c.l.b16 %v3408
    %v3441 = vunpack.c.l.b16 %v3409
    %v3442 = vunpack.c.l.b16 %v3410
    %v3443 = vunpack.c.l.b16 %v3411
    %v3444 = vunpack.c.l.b16 %v3412
    %v3445 = vunpack.c.l.b16 %v3413
    %v3446 = vunpack.c.l.b16 %v3414
    %v3447 = vunpack.c.l.b16 %v3415
    %v3448 = vunpack.c.l.b16 %v3416
    %v3449 = vpack.c.b16 %v3434, %v3433
    %v3450 = vpack.c.b16 %v3436, %v3435
    %v3451 = vpack.c.b16 %v3438, %v3437
    %v3452 = vpack.c.b16 %v3440, %v3439
    %v3453 = vpack.c.b16 %v3442, %v3441
    %v3454 = vpack.c.b16 %v3444, %v3443
    %v3455 = vpack.c.b16 %v3446, %v3445
    %v3456 = vpack.c.b16 %v3448, %v3447
    %3465 = vmatprep.subr.bf16.mxu0 0
    %3466 = vmatpush1.bf16.msra.mxu0 %v3456
    %3467 = vmatprep.subr.bf16.mxu0 0
    %3468 = vmatpush1.bf16.msra.mxu0 %v3455
    %3469 = vmatprep.subr.bf16.mxu0 0
    %3470 = vmatpush1.bf16.msra.mxu0 %v3454
    %3471 = vmatprep.subr.bf16.mxu0 0
    %3472 = vmatpush1.bf16.msra.mxu0 %v3453
    %3473 = vmatprep.subr.bf16.mxu0 0
    %3474 = vmatpush1.bf16.msra.mxu0 %v3452
    %3475 = vmatprep.subr.bf16.mxu0 0
    %3476 = vmatpush1.bf16.msra.mxu0 %v3451
    %3477 = vmatprep.subr.bf16.mxu0 0
    %3478 = vmatpush1.bf16.msra.mxu0 %v3450
    %3479 = vmatprep.subr.bf16.mxu0 0
    %3480 = vmatpush1.bf16.msra.mxu0 %v3449
    %3481 = vmatprep.subr.bf16.mxu0 0
    %3482 = vmatpush2.bf16.msra.mxu0 0
    %3483 = vmatprep.subr.bf16.mxu0 0
    %3484 = vmatpush2.bf16.msra.mxu0 0
    %3485 = vmatprep.subr.bf16.mxu0 0
    %3486 = vmatpush2.bf16.msra.mxu0 0
    %3487 = vmatprep.subr.bf16.mxu0 0
    %3488 = vmatpush2.bf16.msra.mxu0 0
    %3489 = vmatprep.subr.bf16.mxu0 0
    %3490 = vmatpush2.bf16.msra.mxu0 0
    %3491 = vmatprep.subr.bf16.mxu0 0
    %3492 = vmatpush2.bf16.msra.mxu0 0
    %3493 = vmatprep.subr.bf16.mxu0 0
    %3494 = vmatpush2.bf16.msra.mxu0 0
    %3495 = vmatprep.subr.bf16.mxu0 0
    %3496 = vmatpush2.bf16.msra.mxu0 0
    %3497 = vmatprep.mubr.bf16.mxu0 0
    %3498 = vmatmul.mubr.bf16.gmra.mxu0 %v3400
    %v3499 = vpop.f32.mrf.mxu0
    %v3500 = vadd.f32 0.0, %v3499
    %v3501 = vpop.f32.mrf.mxu0
    %v3502 = vpop.f32.mrf.mxu0
    %v3503 = vadd.f32 0.0, %v3502
    %v3504 = vpop.f32.mrf.mxu0
    %3505 = vdwg.mxu0
    %v3522 = vunpack.c.l.b16 %v3382
    %v3523 = vunpack.c.l.b16 %v3383
    %v3524 = vunpack.c.l.b16 %v3384
    %v3525 = vunpack.c.l.b16 %v3385
    %v3526 = vunpack.c.l.b16 %v3386
    %v3527 = vunpack.c.l.b16 %v3387
    %v3528 = vunpack.c.l.b16 %v3388
    %v3529 = vunpack.c.l.b16 %v3389
    %v3530 = vunpack.c.l.b16 %v3390
    %v3531 = vunpack.c.l.b16 %v3391
    %v3532 = vunpack.c.l.b16 %v3392
    %v3533 = vunpack.c.l.b16 %v3393
    %v3534 = vunpack.c.l.b16 %v3394
    %v3535 = vunpack.c.l.b16 %v3395
    %v3536 = vunpack.c.l.b16 %v3396
    %v3537 = vunpack.c.l.b16 %v3397
    %v3538 = vpack.c.b16 %v3523, %v3522
    %v3539 = vpack.c.b16 %v3525, %v3524
    %v3540 = vpack.c.b16 %v3527, %v3526
    %v3541 = vpack.c.b16 %v3529, %v3528
    %v3542 = vpack.c.b16 %v3531, %v3530
    %v3543 = vpack.c.b16 %v3533, %v3532
    %v3544 = vpack.c.b16 %v3535, %v3534
    %v3545 = vpack.c.b16 %v3537, %v3536
    %3554 = vmatprep.subr.bf16.mxu0 0
    %3555 = vmatpush1.bf16.msra.mxu0 %v3545
    %3556 = vmatprep.subr.bf16.mxu0 0
    %3557 = vmatpush1.bf16.msra.mxu0 %v3544
    %3558 = vmatprep.subr.bf16.mxu0 0
    %3559 = vmatpush1.bf16.msra.mxu0 %v3543
    %3560 = vmatprep.subr.bf16.mxu0 0
    %3561 = vmatpush1.bf16.msra.mxu0 %v3542
    %3562 = vmatprep.subr.bf16.mxu0 0
    %3563 = vmatpush1.bf16.msra.mxu0 %v3541
    %3564 = vmatprep.subr.bf16.mxu0 0
    %3565 = vmatpush1.bf16.msra.mxu0 %v3540
    %3566 = vmatprep.subr.bf16.mxu0 0
    %3567 = vmatpush1.bf16.msra.mxu0 %v3539
    %3568 = vmatprep.subr.bf16.mxu0 0
    %3569 = vmatpush1.bf16.msra.mxu0 %v3538
    %3570 = vmatprep.subr.bf16.mxu0 0
    %3571 = vmatpush2.bf16.msra.mxu0 0
    %3572 = vmatprep.subr.bf16.mxu0 0
    %3573 = vmatpush2.bf16.msra.mxu0 0
    %3574 = vmatprep.subr.bf16.mxu0 0
    %3575 = vmatpush2.bf16.msra.mxu0 0
    %3576 = vmatprep.subr.bf16.mxu0 0
    %3577 = vmatpush2.bf16.msra.mxu0 0
    %3578 = vmatprep.subr.bf16.mxu0 0
    %3579 = vmatpush2.bf16.msra.mxu0 0
    %3580 = vmatprep.subr.bf16.mxu0 0
    %3581 = vmatpush2.bf16.msra.mxu0 0
    %3582 = vmatprep.subr.bf16.mxu0 0
    %3583 = vmatpush2.bf16.msra.mxu0 0
    %3584 = vmatprep.subr.bf16.mxu0 0
    %3585 = vmatpush2.bf16.msra.mxu0 0
    %3586 = vmatprep.mubr.bf16.mxu0 0
    %3587 = vmatmul.mubr.bf16.gmra.mxu0 %v3381
    %v3588 = vpop.f32.mrf.mxu0
    %v3589 = vadd.f32 %v3500, %v3588
    %v3590 = vpop.f32.mrf.mxu0
    %v3591 = vpop.f32.mrf.mxu0
    %v3592 = vadd.f32 %v3503, %v3591
    %v3593 = vpop.f32.mrf.mxu0
    %3594 = vdwg.mxu0
    %v3595 = vld [vmem:[%s10] sm:$0x1]
    %v3597 = vlaneseq
    %v3598 = vshrl.u32 %v3597, 7
    %v3599 = vsub.s32 0, %v3598
    %v3600 = vrot.slane %v3595, %v3599
    %v3602 = vadd.f32 %v3589, %v3600
    %v3603 = vadd.f32 %v3592, %v3600
    %vm3604 = vcmask 72704
    %3605 = vst.msk [vmem:[#allocation12] sm:$0xff] %vm3604, %v3602
    %3606 = vst.msk [vmem:[#allocation12 + $0x8] sm:$0xff] %vm3604, %v3603
    // Predicated region
    $region58: #{tpu_custom_call.1} parent=1 // pred_check
      _
    $region59: #{tpu_custom_call.1} parent=1 // pred_check_branch
      %3608 = sbr.rel (0) target = $region61
    $region60: #{tpu_custom_call.1} parent=1 // pred_region
      %s3610 = ssub.s32 32, 32
      %3611 = vsyncadd [#allocation7], %s3610
      %s3613 = sshll.u32 [#allocation11], 4
      %s3614 = int_to_ptr.vmem [resolvable:$true] %s3613
      %3616 = dma.vmem_to_hbm [thread:$0]  %s3614, 32, %s11, [#allocation7]
    $region61: #{tpu_custom_call.1} parent=1 // pred_fallthru
      _
    // Predicated region
    $region62: #{tpu_custom_call.1} parent=1 // pred_check
      _
    $region63: #{tpu_custom_call.1} parent=1 // pred_check_branch
      %3618 = sbr.rel (0) target = $region65
    $region64: #{tpu_custom_call.1} parent=1 // pred_region
      %s3620 = ssub.s32 256, 256
      %3621 = vsyncadd [#allocation13], %s3620
      %s3622 = sshll.u32 [#allocation12], 4
      %s3623 = int_to_ptr.vmem [resolvable:$true] %s3622
      %3628 = dma.vmem_to_hbm [thread:$0]  %s3623, 256, %s12, [#allocation13], 128, 128, 8
    $region65: #{tpu_custom_call.1} parent=1 // pred_fallthru
      _
    // Predicated region
    $region66: #{tpu_custom_call.1} parent=1 // pred_check
      _
    $region67: #{tpu_custom_call.1} parent=1 // pred_check_branch
      %3630 = sbr.rel (0) target = $region69
    $region68: #{tpu_custom_call.1} parent=1 // pred_region
      %3631 = dma.done [#allocation7], 32
    $region69: #{tpu_custom_call.1} parent=1 // pred_fallthru
      _
    // Predicated region
    $region70: #{tpu_custom_call.1} parent=1 // pred_check
      _
    $region71: #{tpu_custom_call.1} parent=1 // pred_check_branch
      %3633 = sbr.rel (0) target = $region73
    $region72: #{tpu_custom_call.1} parent=1 // pred_region
      %3634 = dma.done [#allocation13], 256
    $region73: #{tpu_custom_call.1} parent=1 // pred_fallthru
      _
    %3635 = vsyncpa [#allocation6], 1
    %3636 = vsyncpa [#allocation9], 1
    %3637 = vsyncpa [#allocation7], 1
    %3638 = vsyncpa [#allocation13], 1

</llo_original>
